<compile_context>
chip_gen: v6e
topology: v6e:2x2x1
jax: 0.10.0
libtpu: 0.0.40
codegen_flags: <defaults>
</compile_context>

<pallas_src>
import functools

import jax
import jax.numpy as jnp
from jax import lax
from jax.experimental import pallas as pl
from jax.experimental.pallas import tpu as pltpu

BN_EPS = 1e-5


# ----------------------------------------------------------------------------
# Fused Bottleneck kernel
# ----------------------------------------------------------------------------
def _make_bottleneck_kernel(TH, W, Cin, Chid, Cout, use_add):
    BAND = TH * W                 # pixels produced per grid step
    HALO_BAND = (TH + 2) * W      # pixels of the haloed input band

    def kernel(xc_ref, xt_ref, xb_ref, w1_ref, s1_ref, b1_ref,
               w2_ref, s2_ref, b2_ref, o_ref, hs_ref, acc_ref):
        b = pl.program_id(1)
        nb = pl.num_programs(1)

        # ---- conv1 (1x1) + folded BN + SiLU over the haloed band (bf16 MXU, f32 acc)
        xband = jnp.concatenate([xt_ref[0], xc_ref[0], xb_ref[0]], axis=0)  # (HALO_BAND, Cin)
        h = jnp.dot(xband, w1_ref[...], preferred_element_type=jnp.float32)  # (HALO_BAND, Chid)
        h = h * s1_ref[...] + b1_ref[...]
        h = h * jax.nn.sigmoid(h)

        # zero h on rows that are conv2 zero-padding (halo rows outside the image)
        ridx = lax.broadcasted_iota(jnp.int32, (HALO_BAND, 1), 0)
        top_pad = jnp.logical_and(ridx < W, b == 0)
        bot_pad = jnp.logical_and(ridx >= (TH + 1) * W, b == nb - 1)
        h = jnp.where(jnp.logical_or(top_pad, bot_pad), 0.0, h)

        # left/right shifted copies (kw = 0 / 2 taps), zero at the W borders
        col = ridx % W
        zrow = jnp.zeros((1, Chid), jnp.float32)
        h_left = jnp.where(col >= 1,
                           jnp.concatenate([zrow, h[:-1, :]], axis=0), 0.0)   # h[r, c-1]
        h_right = jnp.where(col <= W - 2,
                            jnp.concatenate([h[1:, :], zrow], axis=0), 0.0)   # h[r, c+1]

        # im2col strips in VMEM scratch: lanes ordered (kw, ci) -> K = 3*Chid
        hs_ref[:, 0 * Chid:1 * Chid] = h_left.astype(jnp.bfloat16)
        hs_ref[:, 1 * Chid:2 * Chid] = h.astype(jnp.bfloat16)
        hs_ref[:, 2 * Chid:3 * Chid] = h_right.astype(jnp.bfloat16)

        # ---- conv2 (3x3, pad 1): 3 matmuls, one per kernel row, f32 accumulation
        for kh in range(3):
            patch = hs_ref[pl.ds(kh * W, BAND), :]                            # (BAND, 3*Chid)
            contrib = jnp.dot(patch, w2_ref[kh], preferred_element_type=jnp.float32)
            if kh == 0:
                acc_ref[...] = contrib
            else:
                acc_ref[...] += contrib

        # ---- folded BN + SiLU (+ residual) epilogue in f32
        y = acc_ref[...] * s2_ref[...] + b2_ref[...]
        y = y * jax.nn.sigmoid(y)
        if use_add:  # static python bool
            y = y + xc_ref[0].astype(jnp.float32)
        o_ref[...] = y[None].astype(o_ref.dtype)

    return kernel


def _pick_band_rows(H, W, Cin, Chid, Cout, vmem_budget_bytes=8 * 1024 * 1024):
    """Largest divisor of H whose per-step VMEM footprint fits a conservative budget."""
    def pad128(c):
        return ((c + 127) // 128) * 128

    best = 1
    for th in range(1, H + 1):
        if H % th:
            continue
        band = th * W
        halo_band = (th + 2) * W
        est = (
            2 * halo_band * pad128(Cin) * 2          # double-buffered x blocks (bf16)
            + 2 * band * pad128(Cout) * 4            # double-buffered output block
            + halo_band * pad128(3 * Chid) * 2       # im2col strip scratch (bf16)
            + band * pad128(Cout) * 4                # accumulator scratch (f32)
            + 3 * halo_band * pad128(Chid) * 4       # live conv1 temporaries (f32)
        )
        if est <= vmem_budget_bytes:
            best = th
    return best


def _fold_bn(gamma, beta, mean, var):
    scale = gamma / jnp.sqrt(var + BN_EPS)
    bias = beta - mean * scale
    return scale, bias


def bottleneck_forward(x_nchw, params, shortcut=True, band_rows=None):
    """Bottleneck forward.  x_nchw: (N, Cin, H, W) float32 (PyTorch layout)."""
    N, Cin, H, W = x_nchw.shape
    Chid = params["w1"].shape[0]
    Cout = params["w2"].shape[0]
    assert params["w1"].shape[1] == Cin
    assert W % 8 == 0, "W must be a multiple of 8 (sublane tile)"
    use_add = shortcut and (Cin == Cout)

    TH = band_rows if band_rows is not None else _pick_band_rows(H, W, Cin, Chid, Cout)
    assert H % TH == 0, "band_rows must divide H"
    nb = H // TH

    # NCHW -> (N, H*W, C) with channels on lanes; bf16 MXU operands (one fused XLA pass).
    x_flat = jnp.transpose(x_nchw, (0, 2, 3, 1)).reshape(N, H * W, Cin).astype(jnp.bfloat16)

    # conv1 weights: (Chid, Cin, 1, 1) -> (Cin, Chid)
    w1 = jnp.transpose(params["w1"][:, :, 0, 0], (1, 0)).astype(jnp.bfloat16)
    s1, b1 = _fold_bn(params["g1"], params["b1"], params["m1"], params["v1"])
    # conv2 weights: (Cout, Chid, 3, 3) -> (kh, kw, ci, co) -> (3, 3*Chid, Cout), kw-major
    w2 = jnp.transpose(params["w2"], (2, 3, 1, 0)).reshape(3, 3 * Chid, Cout).astype(jnp.bfloat16)
    s2, b2 = _fold_bn(params["g2"], params["b2"], params["m2"], params["v2"])

    kernel = _make_bottleneck_kernel(TH, W, Cin, Chid, Cout, use_add)

    out = pl.pallas_call(
        kernel,
        out_shape=jax.ShapeDtypeStruct((N, H * W, Cout), x_nchw.dtype),
        grid_spec=pltpu.PrefetchScalarGridSpec(
            num_scalar_prefetch=0,
            grid=(N, nb),
            in_specs=[
                # center band (TH rows of pixels)
                pl.BlockSpec((1, TH * W, Cin), lambda n, b: (n, b, 0)),
                # top / bottom halo rows (1 row each, clamped at the image border)
                pl.BlockSpec((1, W, Cin),
                             lambda n, b: (n, jnp.maximum(b * TH - 1, 0), 0)),
                pl.BlockSpec((1, W, Cin),
                             lambda n, b: (n, jnp.minimum((b + 1) * TH, H - 1), 0)),
                # resident weights / folded BN params
                pl.BlockSpec((Cin, Chid), lambda n, b: (0, 0)),
                pl.BlockSpec((1, Chid), lambda n, b: (0, 0)),
                pl.BlockSpec((1, Chid), lambda n, b: (0, 0)),
                pl.BlockSpec((3, 3 * Chid, Cout), lambda n, b: (0, 0, 0)),
                pl.BlockSpec((1, Cout), lambda n, b: (0, 0)),
                pl.BlockSpec((1, Cout), lambda n, b: (0, 0)),
            ],
            out_specs=pl.BlockSpec((1, TH * W, Cout), lambda n, b: (n, b, 0)),
            scratch_shapes=[
                pltpu.VMEM(((TH + 2) * W, 3 * Chid), jnp.bfloat16),   # im2col strips
                pltpu.VMEM((TH * W, Cout), jnp.float32),              # conv2 accumulator
            ],
        ),
        compiler_params=pltpu.CompilerParams(
            dimension_semantics=("parallel", "parallel")),
    )(x_flat, x_flat, x_flat,
      w1, s1.reshape(1, Chid), b1.reshape(1, Chid),
      w2, s2.reshape(1, Cout), b2.reshape(1, Cout))

    return jnp.transpose(out.reshape(N, H, W, Cout), (0, 3, 1, 2))


# ----------------------------------------------------------------------------
# Parameter init (PyTorch weight shapes) and pure-JAX f32 reference
# ----------------------------------------------------------------------------
def init_bottleneck_params(key, in_channels, out_channels, expansion=0.5):
    hidden = int(out_channels * expansion)
    ks = jax.random.split(key, 10)
    return {
        "w1": 0.1 * jax.random.normal(ks[0], (hidden, in_channels, 1, 1), jnp.float32),
        "g1": 1.0 + 0.1 * jax.random.normal(ks[1], (hidden,), jnp.float32),
        "b1": 0.1 * jax.random.normal(ks[2], (hidden,), jnp.float32),
        "m1": 0.1 * jax.random.normal(ks[3], (hidden,), jnp.float32),
        "v1": jnp.abs(1.0 + 0.1 * jax.random.normal(ks[4], (hidden,), jnp.float32)),
        "w2": 0.1 * jax.random.normal(ks[5], (out_channels, hidden, 3, 3), jnp.float32),
        "g2": 1.0 + 0.1 * jax.random.normal(ks[6], (out_channels,), jnp.float32),
        "b2": 0.1 * jax.random.normal(ks[7], (out_channels,), jnp.float32),
        "m2": 0.1 * jax.random.normal(ks[8], (out_channels,), jnp.float32),
        "v2": jnp.abs(1.0 + 0.1 * jax.random.normal(ks[9], (out_channels,), jnp.float32)),
    }


def _ref_conv_bn_silu(x, w_oihw, gamma, beta, mean, var, pad):
    y = lax.conv_general_dilated(
        x, w_oihw, window_strides=(1, 1), padding=[(pad, pad), (pad, pad)],
        dimension_numbers=("NCHW", "OIHW", "NCHW"))
    scale = gamma / jnp.sqrt(var + BN_EPS)
    bias = beta - mean * scale
    y = y * scale[None, :, None, None] + bias[None, :, None, None]
    return y * jax.nn.sigmoid(y)


def bottleneck_ref(x_nchw, params, shortcut=True):
    in_c = x_nchw.shape[1]
    out_c = params["w2"].shape[0]
    y = _ref_conv_bn_silu(x_nchw, params["w1"], params["g1"], params["b1"],
                          params["m1"], params["v1"], pad=0)
    y = _ref_conv_bn_silu(y, params["w2"], params["g2"], params["b2"],
                          params["m2"], params["v2"], pad=1)
    if shortcut and in_c == out_c:
        y = y + x_nchw
    return y


if __name__ == "__main__":
    key = jax.random.PRNGKey(0)
    k_x, k_p, k_p2 = jax.random.split(key, 3)

    # Config 1: in_channels == out_channels -> residual path; 2 row-bands (halo path).
    N, C, H, W = 2, 16, 16, 16
    x = jax.random.normal(k_x, (N, C, H, W), jnp.float32)
    params = init_bottleneck_params(k_p, in_channels=C, out_channels=C, expansion=0.5)

    fwd = jax.jit(functools.partial(bottleneck_forward, shortcut=True, band_rows=8))
    out = jax.block_until_ready(fwd(x, params))
    ref = jax.block_until_ready(bottleneck_ref(x, params, shortcut=True))
    assert out.shape == (N, C, H, W) and out.dtype == jnp.float32
    # bf16 MXU operands -> loosened tolerance vs the f32 reference
    assert jnp.allclose(out, ref, atol=3e-2, rtol=3e-2), (
        f"mismatch vs reference, max abs err {jnp.max(jnp.abs(out - ref))}")

    # Config 2: different in/out channels (no residual), auto band selection.
    C2_out = 32
    params2 = init_bottleneck_params(k_p2, in_channels=C, out_channels=C2_out, expansion=0.5)
    fwd2 = jax.jit(functools.partial(bottleneck_forward, shortcut=True))
    out2 = jax.block_until_ready(fwd2(x, params2))
    ref2 = jax.block_until_ready(bottleneck_ref(x, params2, shortcut=True))
    assert out2.shape == (N, C2_out, H, W)
    assert jnp.allclose(out2, ref2, atol=3e-2, rtol=3e-2), (
        f"mismatch vs reference (cfg2), max abs err {jnp.max(jnp.abs(out2 - ref2))}")

    print("KERNEL_OK")
</pallas_src>

<mosaic_0001>
module attributes {stable_mosaic.version = 11 : i64} {
  func.func @kernel(%arg0: i32, %arg1: i32, %arg2: memref<1x128x16xbf16, #tpu.memory_space<vmem>>, %arg3: memref<1x16x16xbf16, #tpu.memory_space<vmem>>, %arg4: memref<1x16x16xbf16, #tpu.memory_space<vmem>>, %arg5: memref<16x8xbf16, #tpu.memory_space<vmem>>, %arg6: memref<1x8xf32, #tpu.memory_space<vmem>>, %arg7: memref<1x8xf32, #tpu.memory_space<vmem>>, %arg8: memref<3x24x16xbf16, #tpu.memory_space<vmem>>, %arg9: memref<1x16xf32, #tpu.memory_space<vmem>>, %arg10: memref<1x16xf32, #tpu.memory_space<vmem>>, %arg11: memref<1x128x16xf32, #tpu.memory_space<vmem>>, %arg12: memref<160x24xbf16, #tpu.memory_space<vmem>>, %arg13: memref<128x16xf32, #tpu.memory_space<vmem>>) attributes {dimension_semantics = [#tpu.dimension_semantics<parallel>, #tpu.dimension_semantics<parallel>], iteration_bounds = array<i64: 2, 2>, scalar_prefetch = 0 : i64, scratch_operands = 2 : i64, tpu.core_type = #tpu.core_type<tc>, window_params = [{transform_indices = @transform_0, window_bounds = array<i64: 1, 128, 16>}, {transform_indices = @transform_1, window_bounds = array<i64: 1, 16, 16>}, {transform_indices = @transform_2, window_bounds = array<i64: 1, 16, 16>}, {pipeline_mode = #tpu.pipeline_mode<synchronous>, transform_indices = @transform_3, window_bounds = array<i64: 16, 8>}, {pipeline_mode = #tpu.pipeline_mode<synchronous>, transform_indices = @transform_4, window_bounds = array<i64: 1, 8>}, {pipeline_mode = #tpu.pipeline_mode<synchronous>, transform_indices = @transform_5, window_bounds = array<i64: 1, 8>}, {pipeline_mode = #tpu.pipeline_mode<synchronous>, transform_indices = @transform_6, window_bounds = array<i64: 3, 24, 16>}, {pipeline_mode = #tpu.pipeline_mode<synchronous>, transform_indices = @transform_7, window_bounds = array<i64: 1, 16>}, {pipeline_mode = #tpu.pipeline_mode<synchronous>, transform_indices = @transform_8, window_bounds = array<i64: 1, 16>}, {transform_indices = @transform_9, window_bounds = array<i64: 1, 128, 16>}]} {
    %c0 = arith.constant 0 : index
    %c0_0 = arith.constant 0 : index
    %c0_1 = arith.constant 0 : index
    %0 = vector.load %arg3[%c0, %c0_0, %c0_1] : memref<1x16x16xbf16, #tpu.memory_space<vmem>>, vector<1x16x16xbf16>
    %1 = vector.shape_cast %0 : vector<1x16x16xbf16> to vector<16x16xbf16>
    %c0_2 = arith.constant 0 : index
    %c0_3 = arith.constant 0 : index
    %c0_4 = arith.constant 0 : index
    %2 = vector.load %arg2[%c0_2, %c0_3, %c0_4] : memref<1x128x16xbf16, #tpu.memory_space<vmem>>, vector<1x128x16xbf16>
    %3 = vector.shape_cast %2 : vector<1x128x16xbf16> to vector<128x16xbf16>
    %c0_5 = arith.constant 0 : index
    %c0_6 = arith.constant 0 : index
    %c0_7 = arith.constant 0 : index
    %4 = vector.load %arg4[%c0_5, %c0_6, %c0_7] : memref<1x16x16xbf16, #tpu.memory_space<vmem>>, vector<1x16x16xbf16>
    %5 = vector.shape_cast %4 : vector<1x16x16xbf16> to vector<16x16xbf16>
    %6 = tpu.concatenate %1, %3, %5 in 0 : vector<16x16xbf16>, vector<128x16xbf16>, vector<16x16xbf16> -> vector<160x16xbf16>
    %c0_8 = arith.constant 0 : index
    %c0_9 = arith.constant 0 : index
    %7 = vector.load %arg5[%c0_8, %c0_9] : memref<16x8xbf16, #tpu.memory_space<vmem>>, vector<16x8xbf16>
    %cst = arith.constant dense<0.000000e+00> : vector<160x8xf32>
    %8 = tpu.matmul %6, %7, %cst {dimension_numbers = #tpu.dot_dimension_numbers<[1], [0], [0], [1], [0, 0, 1, 1], [], []>} : vector<160x16xbf16>, vector<16x8xbf16>, vector<160x8xf32> -> vector<160x8xf32>
    %c0_10 = arith.constant 0 : index
    %c0_11 = arith.constant 0 : index
    %9 = vector.load %arg6[%c0_10, %c0_11] : memref<1x8xf32, #tpu.memory_space<vmem>>, vector<1x8xf32>
    %10 = vector.broadcast %9 : vector<1x8xf32> to vector<160x8xf32>
    %11 = arith.mulf %8, %10 : vector<160x8xf32>
    %c0_12 = arith.constant 0 : index
    %c0_13 = arith.constant 0 : index
    %12 = vector.load %arg7[%c0_12, %c0_13] : memref<1x8xf32, #tpu.memory_space<vmem>>, vector<1x8xf32>
    %13 = vector.broadcast %12 : vector<1x8xf32> to vector<160x8xf32>
    %14 = arith.addf %11, %13 : vector<160x8xf32>
    %15 = arith.negf %14 : vector<160x8xf32>
    %16 = math.exp %15 : vector<160x8xf32>
    %cst_14 = arith.constant 1.000000e+00 : f32
    %17 = vector.broadcast %cst_14 : f32 to vector<160x8xf32>
    %18 = arith.addf %17, %16 : vector<160x8xf32>
    %19 = arith.divf %17, %18 : vector<160x8xf32>
    %20 = arith.mulf %14, %19 : vector<160x8xf32>
    %21 = tpu.iota {dimensions = array<i32: 0>} : vector<160x1xi32>
    %c16_i32 = arith.constant 16 : i32
    %22 = vector.broadcast %c16_i32 : i32 to vector<160x1xi32>
    %23 = arith.cmpi slt, %21, %22 : vector<160x1xi32>
    %c0_i32 = arith.constant 0 : i32
    %24 = arith.cmpi eq, %arg1, %c0_i32 : i32
    %25 = vector.broadcast %24 : i1 to vector<160x1xi1>
    %26 = arith.andi %23, %25 : vector<160x1xi1>
    %c144_i32 = arith.constant 144 : i32
    %27 = vector.broadcast %c144_i32 : i32 to vector<160x1xi32>
    %28 = arith.cmpi sge, %21, %27 : vector<160x1xi32>
    %c1_i32 = arith.constant 1 : i32
    %29 = arith.cmpi eq, %arg1, %c1_i32 : i32
    %30 = vector.broadcast %29 : i1 to vector<160x1xi1>
    %31 = arith.andi %28, %30 : vector<160x1xi1>
    %32 = arith.ori %26, %31 : vector<160x1xi1>
    %cst_15 = arith.constant 0.000000e+00 : f32
    %33 = vector.shape_cast %32 : vector<160x1xi1> to vector<160x1xi1>
    %34 = vector.broadcast %33 : vector<160x1xi1> to vector<160x8xi1>
    %35 = vector.broadcast %cst_15 : f32 to vector<160x8xf32>
    %36 = arith.select %34, %35, %20 : vector<160x8xi1>, vector<160x8xf32>
    %c16_i32_16 = arith.constant 16 : i32
    %c0_i32_17 = arith.constant 0 : i32
    %37 = arith.cmpi eq, %c16_i32_16, %c0_i32_17 : i32
    %c1_i32_18 = arith.constant 1 : i32
    %38 = arith.select %37, %c1_i32_18, %c16_i32_16 : i32
    %39 = vector.broadcast %38 : i32 to vector<160x1xi32>
    %40 = arith.remsi %21, %39 : vector<160x1xi32>
    %c0_i32_19 = arith.constant 0 : i32
    %41 = vector.broadcast %c0_i32_19 : i32 to vector<160x1xi32>
    %42 = arith.cmpi ne, %40, %41 : vector<160x1xi32>
    %c0_i32_20 = arith.constant 0 : i32
    %43 = vector.broadcast %c0_i32_20 : i32 to vector<160x1xi32>
    %44 = arith.cmpi slt, %40, %43 : vector<160x1xi32>
    %c0_i32_21 = arith.constant 0 : i32
    %45 = arith.cmpi slt, %38, %c0_i32_21 : i32
    %46 = vector.broadcast %45 : i1 to vector<160x1xi1>
    %47 = vector.broadcast %46 : vector<160x1xi1> to vector<160x1xi1>
    %48 = arith.xori %44, %47 : vector<160x1xi1>
    %49 = arith.andi %48, %42 : vector<160x1xi1>
    %50 = vector.broadcast %38 : i32 to vector<160x1xi32>
    %51 = arith.addi %40, %50 : vector<160x1xi32>
    %52 = arith.select %49, %51, %40 : vector<160x1xi1>, vector<160x1xi32>
    %cst_22 = arith.constant 0.000000e+00 : f32
    %53 = vector.broadcast %cst_22 : f32 to vector<1x8xf32>
    %c1_i32_23 = arith.constant 1 : i32
    %54 = vector.broadcast %c1_i32_23 : i32 to vector<160x1xi32>
    %55 = arith.cmpi sge, %52, %54 : vector<160x1xi32>
    %56 = vector.extract_strided_slice %36 {offsets = [0, 0], sizes = [159, 8], strides = [1, 1]} : vector<160x8xf32> to vector<159x8xf32>
    %57 = tpu.concatenate %53, %56 in 0 : vector<1x8xf32>, vector<159x8xf32> -> vector<160x8xf32>
    %cst_24 = arith.constant 0.000000e+00 : f32
    %58 = vector.shape_cast %55 : vector<160x1xi1> to vector<160x1xi1>
    %59 = vector.broadcast %58 : vector<160x1xi1> to vector<160x8xi1>
    %60 = vector.broadcast %cst_24 : f32 to vector<160x8xf32>
    %61 = arith.select %59, %57, %60 : vector<160x8xi1>, vector<160x8xf32>
    %c14_i32 = arith.constant 14 : i32
    %62 = vector.broadcast %c14_i32 : i32 to vector<160x1xi32>
    %63 = arith.cmpi sle, %52, %62 : vector<160x1xi32>
    %64 = vector.extract_strided_slice %36 {offsets = [1, 0], sizes = [159, 8], strides = [1, 1]} : vector<160x8xf32> to vector<159x8xf32>
    %65 = tpu.concatenate %64, %53 in 0 : vector<159x8xf32>, vector<1x8xf32> -> vector<160x8xf32>
    %cst_25 = arith.constant 0.000000e+00 : f32
    %66 = vector.shape_cast %63 : vector<160x1xi1> to vector<160x1xi1>
    %67 = vector.broadcast %66 : vector<160x1xi1> to vector<160x8xi1>
    %68 = vector.broadcast %cst_25 : f32 to vector<160x8xf32>
    %69 = arith.select %67, %65, %68 : vector<160x8xi1>, vector<160x8xf32>
    %70 = arith.truncf %61 : vector<160x8xf32> to vector<160x8xbf16>
    %c0_26 = arith.constant 0 : index
    %c0_27 = arith.constant 0 : index
    %71 = vector.load %arg12[%c0_26, %c0_27] : memref<160x24xbf16, #tpu.memory_space<vmem>>, vector<160x8xbf16>
    tpu.vector_store %arg12[%c0_26, %c0_27], %70 {strides = array<i32>} : memref<160x24xbf16, #tpu.memory_space<vmem>>, vector<160x8xbf16>,
    %72 = arith.truncf %36 : vector<160x8xf32> to vector<160x8xbf16>
    %c0_28 = arith.constant 0 : index
    %c8 = arith.constant 8 : index
    %73 = vector.load %arg12[%c0_28, %c8] : memref<160x24xbf16, #tpu.memory_space<vmem>>, vector<160x8xbf16>
    tpu.vector_store %arg12[%c0_28, %c8], %72 {strides = array<i32>} : memref<160x24xbf16, #tpu.memory_space<vmem>>, vector<160x8xbf16>,
    %74 = arith.truncf %69 : vector<160x8xf32> to vector<160x8xbf16>
    %c0_29 = arith.constant 0 : index
    %c16 = arith.constant 16 : index
    %75 = vector.load %arg12[%c0_29, %c16] : memref<160x24xbf16, #tpu.memory_space<vmem>>, vector<160x8xbf16>
    tpu.vector_store %arg12[%c0_29, %c16], %74 {strides = array<i32>} : memref<160x24xbf16, #tpu.memory_space<vmem>>, vector<160x8xbf16>,
    %c0_30 = arith.constant 0 : index
    %c0_31 = arith.constant 0 : index
    %76 = vector.load %arg12[%c0_30, %c0_31] : memref<160x24xbf16, #tpu.memory_space<vmem>>, vector<128x24xbf16>
    %c0_32 = arith.constant 0 : index
    %c0_33 = arith.constant 0 : index
    %c0_34 = arith.constant 0 : index
    %77 = vector.load %arg8[%c0_32, %c0_33, %c0_34] : memref<3x24x16xbf16, #tpu.memory_space<vmem>>, vector<1x24x16xbf16>
    %78 = vector.shape_cast %77 : vector<1x24x16xbf16> to vector<24x16xbf16>
    %cst_35 = arith.constant dense<0.000000e+00> : vector<128x16xf32>
    %79 = tpu.matmul %76, %78, %cst_35 {dimension_numbers = #tpu.dot_dimension_numbers<[1], [0], [0], [1], [0, 0, 1, 1], [], []>} : vector<128x24xbf16>, vector<24x16xbf16>, vector<128x16xf32> -> vector<128x16xf32>
    %c0_36 = arith.constant 0 : index
    %c0_37 = arith.constant 0 : index
    %80 = vector.load %arg13[%c0_36, %c0_37] : memref<128x16xf32, #tpu.memory_space<vmem>>, vector<128x16xf32>
    tpu.vector_store %arg13[%c0_36, %c0_37], %79 {strides = array<i32>} : memref<128x16xf32, #tpu.memory_space<vmem>>, vector<128x16xf32>,
    %c16_38 = arith.constant 16 : index
    %c0_39 = arith.constant 0 : index
    %81 = vector.load %arg12[%c16_38, %c0_39] : memref<160x24xbf16, #tpu.memory_space<vmem>>, vector<128x24xbf16>
    %c1 = arith.constant 1 : index
    %c0_40 = arith.constant 0 : index
    %c0_41 = arith.constant 0 : index
    %82 = vector.load %arg8[%c1, %c0_40, %c0_41] : memref<3x24x16xbf16, #tpu.memory_space<vmem>>, vector<1x24x16xbf16>
    %83 = vector.shape_cast %82 : vector<1x24x16xbf16> to vector<24x16xbf16>
    %cst_42 = arith.constant dense<0.000000e+00> : vector<128x16xf32>
    %84 = tpu.matmul %81, %83, %cst_42 {dimension_numbers = #tpu.dot_dimension_numbers<[1], [0], [0], [1], [0, 0, 1, 1], [], []>} : vector<128x24xbf16>, vector<24x16xbf16>, vector<128x16xf32> -> vector<128x16xf32>
    %c0_43 = arith.constant 0 : index
    %c0_44 = arith.constant 0 : index
    %85 = vector.load %arg13[%c0_43, %c0_44] : memref<128x16xf32, #tpu.memory_space<vmem>>, vector<128x16xf32>
    %86 = arith.addf %85, %84 : vector<128x16xf32>
    %c0_45 = arith.constant 0 : index
    %c0_46 = arith.constant 0 : index
    %87 = vector.load %arg13[%c0_45, %c0_46] : memref<128x16xf32, #tpu.memory_space<vmem>>, vector<128x16xf32>
    tpu.vector_store %arg13[%c0_45, %c0_46], %86 {strides = array<i32>} : memref<128x16xf32, #tpu.memory_space<vmem>>, vector<128x16xf32>,
    %c32 = arith.constant 32 : index
    %c0_47 = arith.constant 0 : index
    %88 = vector.load %arg12[%c32, %c0_47] : memref<160x24xbf16, #tpu.memory_space<vmem>>, vector<128x24xbf16>
    %c2 = arith.constant 2 : index
    %c0_48 = arith.constant 0 : index
    %c0_49 = arith.constant 0 : index
    %89 = vector.load %arg8[%c2, %c0_48, %c0_49] : memref<3x24x16xbf16, #tpu.memory_space<vmem>>, vector<1x24x16xbf16>
    %90 = vector.shape_cast %89 : vector<1x24x16xbf16> to vector<24x16xbf16>
    %cst_50 = arith.constant dense<0.000000e+00> : vector<128x16xf32>
    %91 = tpu.matmul %88, %90, %cst_50 {dimension_numbers = #tpu.dot_dimension_numbers<[1], [0], [0], [1], [0, 0, 1, 1], [], []>} : vector<128x24xbf16>, vector<24x16xbf16>, vector<128x16xf32> -> vector<128x16xf32>
    %c0_51 = arith.constant 0 : index
    %c0_52 = arith.constant 0 : index
    %92 = vector.load %arg13[%c0_51, %c0_52] : memref<128x16xf32, #tpu.memory_space<vmem>>, vector<128x16xf32>
    %93 = arith.addf %92, %91 : vector<128x16xf32>
    %c0_53 = arith.constant 0 : index
    %c0_54 = arith.constant 0 : index
    %94 = vector.load %arg13[%c0_53, %c0_54] : memref<128x16xf32, #tpu.memory_space<vmem>>, vector<128x16xf32>
    tpu.vector_store %arg13[%c0_53, %c0_54], %93 {strides = array<i32>} : memref<128x16xf32, #tpu.memory_space<vmem>>, vector<128x16xf32>,
    %c0_55 = arith.constant 0 : index
    %c0_56 = arith.constant 0 : index
    %95 = vector.load %arg13[%c0_55, %c0_56] : memref<128x16xf32, #tpu.memory_space<vmem>>, vector<128x16xf32>
    %c0_57 = arith.constant 0 : index
    %c0_58 = arith.constant 0 : index
    %96 = vector.load %arg9[%c0_57, %c0_58] : memref<1x16xf32, #tpu.memory_space<vmem>>, vector<1x16xf32>
    %97 = vector.broadcast %96 : vector<1x16xf32> to vector<128x16xf32>
    %98 = arith.mulf %95, %97 : vector<128x16xf32>
    %c0_59 = arith.constant 0 : index
    %c0_60 = arith.constant 0 : index
    %99 = vector.load %arg10[%c0_59, %c0_60] : memref<1x16xf32, #tpu.memory_space<vmem>>, vector<1x16xf32>
    %100 = vector.broadcast %99 : vector<1x16xf32> to vector<128x16xf32>
    %101 = arith.addf %98, %100 : vector<128x16xf32>
    %102 = arith.negf %101 : vector<128x16xf32>
    %103 = math.exp %102 : vector<128x16xf32>
    %cst_61 = arith.constant 1.000000e+00 : f32
    %104 = vector.broadcast %cst_61 : f32 to vector<128x16xf32>
    %105 = arith.addf %104, %103 : vector<128x16xf32>
    %106 = arith.divf %104, %105 : vector<128x16xf32>
    %107 = arith.mulf %101, %106 : vector<128x16xf32>
    %c0_62 = arith.constant 0 : index
    %c0_63 = arith.constant 0 : index
    %c0_64 = arith.constant 0 : index
    %108 = vector.load %arg2[%c0_62, %c0_63, %c0_64] : memref<1x128x16xbf16, #tpu.memory_space<vmem>>, vector<1x128x16xbf16>
    %109 = vector.shape_cast %108 : vector<1x128x16xbf16> to vector<128x16xbf16>
    %110 = arith.extf %109 : vector<128x16xbf16> to vector<128x16xf32>
    %111 = arith.addf %107, %110 : vector<128x16xf32>
    %112 = vector.shape_cast %111 : vector<128x16xf32> to vector<1x128x16xf32>
    %c0_65 = arith.constant 0 : index
    %c0_66 = arith.constant 0 : index
    %c0_67 = arith.constant 0 : index
    %113 = vector.load %arg11[%c0_65, %c0_66, %c0_67] : memref<1x128x16xf32, #tpu.memory_space<vmem>>, vector<1x128x16xf32>
    tpu.vector_store %arg11[%c0_65, %c0_66, %c0_67], %112 {strides = array<i32>} : memref<1x128x16xf32, #tpu.memory_space<vmem>>, vector<1x128x16xf32>,
    return
  }
  func.func @transform_0(%arg0: i32, %arg1: i32) -> (i32, i32, i32) {
    %c0_i32 = arith.constant 0 : i32
    %c0_i32_0 = arith.constant 0 : i32
    return %arg0, %arg1, %c0_i32 : i32, i32, i32
  }
  func.func @transform_1(%arg0: i32, %arg1: i32) -> (i32, i32, i32) {
    %c8_i32 = arith.constant 8 : i32
    %0 = arith.muli %arg1, %c8_i32 : i32
    %c1_i32 = arith.constant 1 : i32
    %1 = arith.subi %0, %c1_i32 : i32
    %c0_i32 = arith.constant 0 : i32
    %2 = arith.maxsi %1, %c0_i32 : i32
    %c0_i32_0 = arith.constant 0 : i32
    %c0_i32_1 = arith.constant 0 : i32
    return %arg0, %2, %c0_i32_0 : i32, i32, i32
  }
  func.func @transform_2(%arg0: i32, %arg1: i32) -> (i32, i32, i32) {
    %c1_i32 = arith.constant 1 : i32
    %0 = arith.addi %arg1, %c1_i32 : i32
    %c8_i32 = arith.constant 8 : i32
    %1 = arith.muli %0, %c8_i32 : i32
    %c15_i32 = arith.constant 15 : i32
    %2 = arith.minsi %1, %c15_i32 : i32
    %c0_i32 = arith.constant 0 : i32
    %c0_i32_0 = arith.constant 0 : i32
    return %arg0, %2, %c0_i32 : i32, i32, i32
  }
  func.func @transform_3(%arg0: i32, %arg1: i32) -> (i32, i32) {
    %c0_i32 = arith.constant 0 : i32
    %c0_i32_0 = arith.constant 0 : i32
    %c0_i32_1 = arith.constant 0 : i32
    return %c0_i32, %c0_i32_0 : i32, i32
  }
  func.func @transform_4(%arg0: i32, %arg1: i32) -> (i32, i32) {
    %c0_i32 = arith.constant 0 : i32
    %c0_i32_0 = arith.constant 0 : i32
    %c0_i32_1 = arith.constant 0 : i32
    return %c0_i32, %c0_i32_0 : i32, i32
  }
  func.func @transform_5(%arg0: i32, %arg1: i32) -> (i32, i32) {
    %c0_i32 = arith.constant 0 : i32
    %c0_i32_0 = arith.constant 0 : i32
    %c0_i32_1 = arith.constant 0 : i32
    return %c0_i32, %c0_i32_0 : i32, i32
  }
  func.func @transform_6(%arg0: i32, %arg1: i32) -> (i32, i32, i32) {
    %c0_i32 = arith.constant 0 : i32
    %c0_i32_0 = arith.constant 0 : i32
    %c0_i32_1 = arith.constant 0 : i32
    %c0_i32_2 = arith.constant 0 : i32
    return %c0_i32, %c0_i32_0, %c0_i32_1 : i32, i32, i32
  }
  func.func @transform_7(%arg0: i32, %arg1: i32) -> (i32, i32) {
    %c0_i32 = arith.constant 0 : i32
    %c0_i32_0 = arith.constant 0 : i32
    %c0_i32_1 = arith.constant 0 : i32
    return %c0_i32, %c0_i32_0 : i32, i32
  }
  func.func @transform_8(%arg0: i32, %arg1: i32) -> (i32, i32) {
    %c0_i32 = arith.constant 0 : i32
    %c0_i32_0 = arith.constant 0 : i32
    %c0_i32_1 = arith.constant 0 : i32
    return %c0_i32, %c0_i32_0 : i32, i32
  }
  func.func @transform_9(%arg0: i32, %arg1: i32) -> (i32, i32, i32) {
    %c0_i32 = arith.constant 0 : i32
    %c0_i32_0 = arith.constant 0 : i32
    return %arg0, %arg1, %c0_i32 : i32, i32, i32
  }
}

</mosaic_0001>

<llo_original>
// kernel: bottleneck_forward.1
$region0: #{bottleneck_forward.1}
  #allocation0 [shape = 'u32[]', space=smem, size = 0x4, offset = 0x4, fixed_abs, tag = 'smem constant byte address 0x4 - core index']
  #allocation1 [shape = 'u32[144,128]{1,0:T(1,128)}', space=vmem, size = 0x12000, scoped, tag = 'internal scratch']
  #allocation2 [shape = 'bf16[160,24]{1,0:T(8,128)(2,1)}', space=vmem, size = 0xa000, scoped, tag = 'scratch operand']
  #allocation3 [shape = 'f32[128,16]{1,0:T(8,128)}', space=vmem, size = 0x10000, scoped, tag = 'scratch operand']
  %s0 = inlined_call_operand.vmem [shape: bf16[2,256,16], index: 0, kind: input, shape index: {}, may-alias: {0,1,2}]
  %s1 = inlined_call_operand.vmem [shape: bf16[2,256,16], index: 1, kind: input, shape index: {}, may-alias: {0,1,2}]
  %s2 = inlined_call_operand.vmem [shape: bf16[2,256,16], index: 2, kind: input, shape index: {}, may-alias: {0,1,2}]
  %s3 = inlined_call_operand.vmem [shape: bf16[16,8], index: 3, kind: input, shape index: {}]
  %s4 = inlined_call_operand.vmem [shape: f32[1,8], index: 4, kind: input, shape index: {}]
  %s5 = inlined_call_operand.vmem [shape: f32[1,8], index: 5, kind: input, shape index: {}]
  %s6 = inlined_call_operand.vmem [shape: bf16[3,24,16], index: 6, kind: input, shape index: {}]
  %s7 = inlined_call_operand.vmem [shape: f32[1,16], index: 7, kind: input, shape index: {}]
  %s8 = inlined_call_operand.vmem [shape: f32[1,16], index: 8, kind: input, shape index: {}]
  %s9 = inlined_call_operand.vmem [shape: f32[2,256,16], index: 9, kind: output, shape index: {}]
  %s10 = sld [smem:[#allocation0]]
  $region69: #{bottleneck_forward.1} parent=0
    _
  %s12 = ssub.s32 1, %s10
  %s13 = scalar_select 0, %s12, %s10
  loop: start=0, step=1, limit=6
  $region2: #{bottleneck_forward.1} parent=0 // loop_pre_header
    _
  $region3: #{bottleneck_forward.1} parent=0 // loop_header
    %s15 = sphi 0, %s19
    %p16 = scmp.ge.s32.totalorder %s15, 6
    %s22 = sphi 0, %s34
    %s23 = sphi 0, %s30
    %s24 = sphi 0, %s22
    %s25 = sphi 0, %s23
    %s26 = sphi 0, %s24
    %s27 = sphi 0, %s25
    %s39 = sphi 0, %s41
    %s42 = sphi 0, %s39
    %s43 = sphi 0, %s42
    %s59 = sphi 0, %s43
    %s75 = sphi 0, %s77
    %s78 = sphi 0, %s75
    %s79 = sphi 0, %s78
    %s95 = sphi 0, %s79
    %s111 = sphi 0, %s113
    %s114 = sphi 0, %s111
    %s115 = sphi 0, %s114
    %s131 = sphi 0, %s115
    %s135 = sphi 0, %s135
    %s137 = sphi 0, %s135
    %s138 = sphi 0, %s137
    %s152 = sphi 0, %s138
    %s156 = sphi 0, %s156
    %s158 = sphi 0, %s156
    %s159 = sphi 0, %s158
    %s173 = sphi 0, %s159
    %s177 = sphi 0, %s177
    %s179 = sphi 0, %s177
    %s180 = sphi 0, %s179
    %s194 = sphi 0, %s180
    %s198 = sphi 0, %s198
    %s200 = sphi 0, %s198
    %s201 = sphi 0, %s200
    %s215 = sphi 0, %s201
    %s219 = sphi 0, %s219
    %s221 = sphi 0, %s219
    %s222 = sphi 0, %s221
    %s236 = sphi 0, %s222
    %s240 = sphi 0, %s240
    %s242 = sphi 0, %s240
    %s243 = sphi 0, %s242
    %s257 = sphi 0, %s243
    %s265 = sphi 0, %s267
    %s268 = sphi 0, %s265
    %s269 = sphi 0, %s268
    %s285 = sphi 0, %s269
  $region4: #{bottleneck_forward.1} parent=0 // loop_header_branch
    %18 = sbr.rel (%p16) target = $region8
  $region5: #{bottleneck_forward.1} parent=0 // loop_body
    %s20 = ssub.s32 %s15, 1
    %s21 = ssub.s32 %s15, 2
    %s28 = sadd.s32 1, %s23
    %p29 = scmp.ge.s32.totalorder %s28, 2
    %s30 = scalar_select %p29, 0, %s28
    %s31 = sadd.s32 1, %s22
    %s32 = scalar_select %p29, %s31, %s22
    %p33 = scmp.ge.s32.totalorder %s32, 2
    %s34 = scalar_select %p33, 0, %s32
    %s35 = ssub.s32 %s22, %s34
    %s36 = ssub.s32 %s23, %s30
    %s37 = sor.u32 %s35, %s36
    %p38 = scmp.eq.s32.totalorder %s37, 0
    %s40 = sadd.s32 %s39, 1
    %s41 = scalar_select %p38, %s39, %s40
    %p44 = pneg %p38
    %p45 = scmp.eq.s32.totalorder %s15, 3
    %p46 = por %p44, %p45
    %p47 = scmp.ne.s32.totalorder %s39, %s42
    %p48 = scmp.eq.s32.totalorder %s15, 0
    %p49 = por %p47, %p48
    %p50 = scmp.ne.s32.totalorder %s39, %s42
    %p51 = scmp.eq.s32.totalorder %s20, 3
    %p52 = por %p50, %p51
    %p53 = scmp.ne.s32.totalorder %s42, %s43
    %p54 = scmp.eq.s32.totalorder %s20, 0
    %p55 = por %p53, %p54
    %p56 = scmp.ne.s32.totalorder %s42, %s43
    %p57 = scmp.eq.s32.totalorder %s21, 3
    %p58 = por %p56, %p57
    %p60 = scmp.ne.s32.totalorder %s43, %s59
    %p61 = scmp.eq.s32.totalorder %s21, 0
    %p62 = por %p60, %p61
    %s63 = smul.u32 %s23, 8
    %s64 = ssub.s32 %s63, 1
    %p65 = scmp.gt.s32.totalorder %s64, 0
    %s66 = scalar_select %p65, %s64, 0
    %s67 = smul.u32 %s30, 8
    %s68 = ssub.s32 %s67, 1
    %p69 = scmp.gt.s32.totalorder %s68, 0
    %s70 = scalar_select %p69, %s68, 0
    %s71 = ssub.s32 %s22, %s34
    %s72 = ssub.s32 %s66, %s70
    %s73 = sor.u32 %s71, %s72
    %p74 = scmp.eq.s32.totalorder %s73, 0
    %s76 = sadd.s32 %s75, 1
    %s77 = scalar_select %p74, %s75, %s76
    %p80 = pneg %p74
    %p81 = scmp.eq.s32.totalorder %s15, 3
    %p82 = por %p80, %p81
    %p83 = scmp.ne.s32.totalorder %s75, %s78
    %p84 = scmp.eq.s32.totalorder %s15, 0
    %p85 = por %p83, %p84
    %p86 = scmp.ne.s32.totalorder %s75, %s78
    %p87 = scmp.eq.s32.totalorder %s20, 3
    %p88 = por %p86, %p87
    %p89 = scmp.ne.s32.totalorder %s78, %s79
    %p90 = scmp.eq.s32.totalorder %s20, 0
    %p91 = por %p89, %p90
    %p92 = scmp.ne.s32.totalorder %s78, %s79
    %p93 = scmp.eq.s32.totalorder %s21, 3
    %p94 = por %p92, %p93
    %p96 = scmp.ne.s32.totalorder %s79, %s95
    %p97 = scmp.eq.s32.totalorder %s21, 0
    %p98 = por %p96, %p97
    %s99 = sadd.s32 %s23, 1
    %s100 = smul.u32 %s99, 8
    %p101 = scmp.lt.s32.totalorder %s100, 15
    %s102 = scalar_select %p101, %s100, 15
    %s103 = sadd.s32 %s30, 1
    %s104 = smul.u32 %s103, 8
    %p105 = scmp.lt.s32.totalorder %s104, 15
    %s106 = scalar_select %p105, %s104, 15
    %s107 = ssub.s32 %s22, %s34
    %s108 = ssub.s32 %s102, %s106
    %s109 = sor.u32 %s107, %s108
    %p110 = scmp.eq.s32.totalorder %s109, 0
    %s112 = sadd.s32 %s111, 1
    %s113 = scalar_select %p110, %s111, %s112
    %p116 = pneg %p110
    %p117 = scmp.eq.s32.totalorder %s15, 3
    %p118 = por %p116, %p117
    %p119 = scmp.ne.s32.totalorder %s111, %s114
    %p120 = scmp.eq.s32.totalorder %s15, 0
    %p121 = por %p119, %p120
    %p122 = scmp.ne.s32.totalorder %s111, %s114
    %p123 = scmp.eq.s32.totalorder %s20, 3
    %p124 = por %p122, %p123
    %p125 = scmp.ne.s32.totalorder %s114, %s115
    %p126 = scmp.eq.s32.totalorder %s20, 0
    %p127 = por %p125, %p126
    %p128 = scmp.ne.s32.totalorder %s114, %s115
    %p129 = scmp.eq.s32.totalorder %s21, 3
    %p130 = por %p128, %p129
    %p132 = scmp.ne.s32.totalorder %s115, %s131
    %p133 = scmp.eq.s32.totalorder %s21, 0
    %p134 = por %p132, %p133
    %s136 = sadd.s32 %s135, 1
    %p139 = scmp.eq.s32.totalorder %s15, 3
    %p140 = scmp.ne.s32.totalorder %s135, %s137
    %p141 = scmp.eq.s32.totalorder %s15, 0
    %p142 = por %p140, %p141
    %p143 = scmp.ne.s32.totalorder %s135, %s137
    %p144 = scmp.eq.s32.totalorder %s20, 3
    %p145 = por %p143, %p144
    %p146 = scmp.ne.s32.totalorder %s137, %s138
    %p147 = scmp.eq.s32.totalorder %s20, 0
    %p148 = por %p146, %p147
    %p149 = scmp.ne.s32.totalorder %s137, %s138
    %p150 = scmp.eq.s32.totalorder %s21, 3
    %p151 = por %p149, %p150
    %p153 = scmp.ne.s32.totalorder %s138, %s152
    %p154 = scmp.eq.s32.totalorder %s21, 0
    %p155 = por %p153, %p154
    %s157 = sadd.s32 %s156, 1
    %p160 = scmp.eq.s32.totalorder %s15, 3
    %p161 = scmp.ne.s32.totalorder %s156, %s158
    %p162 = scmp.eq.s32.totalorder %s15, 0
    %p163 = por %p161, %p162
    %p164 = scmp.ne.s32.totalorder %s156, %s158
    %p165 = scmp.eq.s32.totalorder %s20, 3
    %p166 = por %p164, %p165
    %p167 = scmp.ne.s32.totalorder %s158, %s159
    %p168 = scmp.eq.s32.totalorder %s20, 0
    %p169 = por %p167, %p168
    %p170 = scmp.ne.s32.totalorder %s158, %s159
    %p171 = scmp.eq.s32.totalorder %s21, 3
    %p172 = por %p170, %p171
    %p174 = scmp.ne.s32.totalorder %s159, %s173
    %p175 = scmp.eq.s32.totalorder %s21, 0
    %p176 = por %p174, %p175
    %s178 = sadd.s32 %s177, 1
    %p181 = scmp.eq.s32.totalorder %s15, 3
    %p182 = scmp.ne.s32.totalorder %s177, %s179
    %p183 = scmp.eq.s32.totalorder %s15, 0
    %p184 = por %p182, %p183
    %p185 = scmp.ne.s32.totalorder %s177, %s179
    %p186 = scmp.eq.s32.totalorder %s20, 3
    %p187 = por %p185, %p186
    %p188 = scmp.ne.s32.totalorder %s179, %s180
    %p189 = scmp.eq.s32.totalorder %s20, 0
    %p190 = por %p188, %p189
    %p191 = scmp.ne.s32.totalorder %s179, %s180
    %p192 = scmp.eq.s32.totalorder %s21, 3
    %p193 = por %p191, %p192
    %p195 = scmp.ne.s32.totalorder %s180, %s194
    %p196 = scmp.eq.s32.totalorder %s21, 0
    %p197 = por %p195, %p196
    %s199 = sadd.s32 %s198, 1
    %p202 = scmp.eq.s32.totalorder %s15, 3
    %p203 = scmp.ne.s32.totalorder %s198, %s200
    %p204 = scmp.eq.s32.totalorder %s15, 0
    %p205 = por %p203, %p204
    %p206 = scmp.ne.s32.totalorder %s198, %s200
    %p207 = scmp.eq.s32.totalorder %s20, 3
    %p208 = por %p206, %p207
    %p209 = scmp.ne.s32.totalorder %s200, %s201
    %p210 = scmp.eq.s32.totalorder %s20, 0
    %p211 = por %p209, %p210
    %p212 = scmp.ne.s32.totalorder %s200, %s201
    %p213 = scmp.eq.s32.totalorder %s21, 3
    %p214 = por %p212, %p213
    %p216 = scmp.ne.s32.totalorder %s201, %s215
    %p217 = scmp.eq.s32.totalorder %s21, 0
    %p218 = por %p216, %p217
    %s220 = sadd.s32 %s219, 1
    %p223 = scmp.eq.s32.totalorder %s15, 3
    %p224 = scmp.ne.s32.totalorder %s219, %s221
    %p225 = scmp.eq.s32.totalorder %s15, 0
    %p226 = por %p224, %p225
    %p227 = scmp.ne.s32.totalorder %s219, %s221
    %p228 = scmp.eq.s32.totalorder %s20, 3
    %p229 = por %p227, %p228
    %p230 = scmp.ne.s32.totalorder %s221, %s222
    %p231 = scmp.eq.s32.totalorder %s20, 0
    %p232 = por %p230, %p231
    %p233 = scmp.ne.s32.totalorder %s221, %s222
    %p234 = scmp.eq.s32.totalorder %s21, 3
    %p235 = por %p233, %p234
    %p237 = scmp.ne.s32.totalorder %s222, %s236
    %p238 = scmp.eq.s32.totalorder %s21, 0
    %p239 = por %p237, %p238
    %s241 = sadd.s32 %s240, 1
    %p244 = scmp.eq.s32.totalorder %s15, 3
    %p245 = scmp.ne.s32.totalorder %s240, %s242
    %p246 = scmp.eq.s32.totalorder %s15, 0
    %p247 = por %p245, %p246
    %p248 = scmp.ne.s32.totalorder %s240, %s242
    %p249 = scmp.eq.s32.totalorder %s20, 3
    %p250 = por %p248, %p249
    %p251 = scmp.ne.s32.totalorder %s242, %s243
    %p252 = scmp.eq.s32.totalorder %s20, 0
    %p253 = por %p251, %p252
    %p254 = scmp.ne.s32.totalorder %s242, %s243
    %p255 = scmp.eq.s32.totalorder %s21, 3
    %p256 = por %p254, %p255
    %p258 = scmp.ne.s32.totalorder %s243, %s257
    %p259 = scmp.eq.s32.totalorder %s21, 0
    %p260 = por %p258, %p259
    %s261 = ssub.s32 %s22, %s34
    %s262 = ssub.s32 %s23, %s30
    %s263 = sor.u32 %s261, %s262
    %p264 = scmp.eq.s32.totalorder %s263, 0
    %s266 = sadd.s32 %s265, 1
    %s267 = scalar_select %p264, %s265, %s266
    %p270 = pneg %p264
    %p271 = scmp.eq.s32.totalorder %s15, 3
    %p272 = por %p270, %p271
    %p273 = scmp.ne.s32.totalorder %s265, %s268
    %p274 = scmp.eq.s32.totalorder %s15, 0
    %p275 = por %p273, %p274
    %p276 = scmp.ne.s32.totalorder %s265, %s268
    %p277 = scmp.eq.s32.totalorder %s20, 3
    %p278 = por %p276, %p277
    %p279 = scmp.ne.s32.totalorder %s268, %s269
    %p280 = scmp.eq.s32.totalorder %s20, 0
    %p281 = por %p279, %p280
    %p282 = scmp.ne.s32.totalorder %s268, %s269
    %p283 = scmp.eq.s32.totalorder %s21, 3
    %p284 = por %p282, %p283
    %p286 = scmp.ne.s32.totalorder %s269, %s285
    %p287 = scmp.eq.s32.totalorder %s21, 0
    %p288 = por %p286, %p287
    %p289 = scmp.le.s32.totalorder 1, %s15
    %p290 = scmp.lt.s32.totalorder %s15, 5
    %p291 = pnand %p289, %p290
    %p292 = pneg %p291
    // Predicated region
    $region9: #{bottleneck_forward.1} parent=5 // pred_check
      _
    $region10: #{bottleneck_forward.1} parent=5 // pred_check_branch
      %294 = sbr.rel (%p291) target = $region12
    $region11: #{bottleneck_forward.1} parent=5 // pred_region
      %s295 = ssub.s32 %s15, 1
      // Predicated region
      $region13: #{bottleneck_forward.1} parent=11 // pred_check
        %p296 = pneg %p148
      $region14: #{bottleneck_forward.1} parent=11 // pred_check_branch
        %298 = sbr.rel (%p296) target = $region16
      $region15: #{bottleneck_forward.1} parent=11 // pred_region
        _
      $region16: #{bottleneck_forward.1} parent=11 // pred_fallthru
        _
      // Predicated region
      $region17: #{bottleneck_forward.1} parent=11 // pred_check
        %p299 = pneg %p169
      $region18: #{bottleneck_forward.1} parent=11 // pred_check_branch
        %301 = sbr.rel (%p299) target = $region20
      $region19: #{bottleneck_forward.1} parent=11 // pred_region
        _
      $region20: #{bottleneck_forward.1} parent=11 // pred_fallthru
        _
      // Predicated region
      $region21: #{bottleneck_forward.1} parent=11 // pred_check
        %p302 = pneg %p190
      $region22: #{bottleneck_forward.1} parent=11 // pred_check_branch
        %304 = sbr.rel (%p302) target = $region24
      $region23: #{bottleneck_forward.1} parent=11 // pred_region
        _
      $region24: #{bottleneck_forward.1} parent=11 // pred_fallthru
        _
      // Predicated region
      $region25: #{bottleneck_forward.1} parent=11 // pred_check
        %p305 = pneg %p211
      $region26: #{bottleneck_forward.1} parent=11 // pred_check_branch
        %307 = sbr.rel (%p305) target = $region28
      $region27: #{bottleneck_forward.1} parent=11 // pred_region
        _
      $region28: #{bottleneck_forward.1} parent=11 // pred_fallthru
        _
      // Predicated region
      $region29: #{bottleneck_forward.1} parent=11 // pred_check
        %p308 = pneg %p232
      $region30: #{bottleneck_forward.1} parent=11 // pred_check_branch
        %310 = sbr.rel (%p308) target = $region32
      $region31: #{bottleneck_forward.1} parent=11 // pred_region
        _
      $region32: #{bottleneck_forward.1} parent=11 // pred_fallthru
        _
      // Predicated region
      $region33: #{bottleneck_forward.1} parent=11 // pred_check
        %p311 = pneg %p253
      $region34: #{bottleneck_forward.1} parent=11 // pred_check_branch
        %313 = sbr.rel (%p311) target = $region36
      $region35: #{bottleneck_forward.1} parent=11 // pred_region
        _
      $region36: #{bottleneck_forward.1} parent=11 // pred_fallthru
        _
    $region12: #{bottleneck_forward.1} parent=5 // pred_fallthru
      _
    %p314 = scmp.lt.s32.totalorder %s15, 4
    // Predicated region
    $region37: #{bottleneck_forward.1} parent=5 // pred_check
      %p315 = pneg %p314
    $region38: #{bottleneck_forward.1} parent=5 // pred_check_branch
      %317 = sbr.rel (%p315) target = $region40
    $region39: #{bottleneck_forward.1} parent=5 // pred_region
      // Predicated region
      $region41: #{bottleneck_forward.1} parent=39 // pred_check
        %p318 = pneg %p49
      $region42: #{bottleneck_forward.1} parent=39 // pred_check_branch
        %320 = sbr.rel (%p318) target = $region44
      $region43: #{bottleneck_forward.1} parent=39 // pred_region
        %s321 = smul.u32 16, %s23
        %p322 = scmp.lt.s32.totalorder %s22, 1
        %s323 = scalar_select %p322, %s22, 1
        %p324 = scmp.lt.s32.totalorder %s321, 31
        %s325 = scalar_select %p324, %s321, 31
        %s326 = smul.addr %s323, 32
        %s327 = sadd.s32 %s325, %s326
        %s328 = smul.addr %s327, 4
        %s329 = scalar_lea.vmem %s0, %s328
        %s330 = smul.u32 16, %s23
      $region44: #{bottleneck_forward.1} parent=39 // pred_fallthru
        _
      // Predicated region
      $region45: #{bottleneck_forward.1} parent=39 // pred_check
        %p331 = pneg %p85
      $region46: #{bottleneck_forward.1} parent=39 // pred_check_branch
        %333 = sbr.rel (%p331) target = $region48
      $region47: #{bottleneck_forward.1} parent=39 // pred_region
        %s334 = smul.u32 %s23, 8
        %s335 = ssub.s32 %s334, 1
        %p336 = scmp.gt.s32.totalorder %s335, 0
        %s337 = scalar_select %p336, %s335, 0
        %s338 = smul.u32 2, %s337
        %p339 = scmp.lt.s32.totalorder %s22, 1
        %s340 = scalar_select %p339, %s22, 1
        %p341 = scmp.lt.s32.totalorder %s338, 31
        %s342 = scalar_select %p341, %s338, 31
        %s343 = smul.addr %s340, 32
        %s344 = sadd.s32 %s342, %s343
        %s345 = smul.addr %s344, 4
        %s346 = scalar_lea.vmem %s1, %s345
        %s347 = smul.u32 %s23, 8
        %s348 = ssub.s32 %s347, 1
        %p349 = scmp.gt.s32.totalorder %s348, 0
        %s350 = scalar_select %p349, %s348, 0
        %s351 = smul.u32 2, %s350
      $region48: #{bottleneck_forward.1} parent=39 // pred_fallthru
        _
      // Predicated region
      $region49: #{bottleneck_forward.1} parent=39 // pred_check
        %p352 = pneg %p121
      $region50: #{bottleneck_forward.1} parent=39 // pred_check_branch
        %354 = sbr.rel (%p352) target = $region52
      $region51: #{bottleneck_forward.1} parent=39 // pred_region
        %s355 = sadd.s32 %s23, 1
        %s356 = smul.u32 %s355, 8
        %p357 = scmp.lt.s32.totalorder %s356, 15
        %s358 = scalar_select %p357, %s356, 15
        %s359 = smul.u32 2, %s358
        %p360 = scmp.lt.s32.totalorder %s22, 1
        %s361 = scalar_select %p360, %s22, 1
        %p362 = scmp.lt.s32.totalorder %s359, 31
        %s363 = scalar_select %p362, %s359, 31
        %s364 = smul.addr %s361, 32
        %s365 = sadd.s32 %s363, %s364
        %s366 = smul.addr %s365, 4
        %s367 = scalar_lea.vmem %s2, %s366
        %s368 = sadd.s32 %s23, 1
        %s369 = smul.u32 %s368, 8
        %p370 = scmp.lt.s32.totalorder %s369, 15
        %s371 = scalar_select %p370, %s369, 15
        %s372 = smul.u32 2, %s371
      $region52: #{bottleneck_forward.1} parent=39 // pred_fallthru
        _
    $region40: #{bottleneck_forward.1} parent=5 // pred_fallthru
      _
    %p373 = scmp.le.s32.totalorder 1, %s15
    %p374 = scmp.lt.s32.totalorder %s15, 5
    %p375 = pnand %p373, %p374
    %p376 = pneg %p375
    // Predicated region
    $region53: #{bottleneck_forward.1} parent=5 // pred_check
      _
    $region54: #{bottleneck_forward.1} parent=5 // pred_check_branch
      %378 = sbr.rel (%p375) target = $region56
    $region55: #{bottleneck_forward.1} parent=5 // pred_region
      %s379 = ssub.s32 %s15, 1
      %s380 = smul.u32 16, %s25
      %p381 = scmp.lt.s32.totalorder %s24, 1
      %s382 = scalar_select %p381, %s24, 1
      %p383 = scmp.lt.s32.totalorder %s380, 31
      %s384 = scalar_select %p383, %s380, 31
      %s385 = smul.addr %s382, 32
      %s386 = sadd.s32 %s384, %s385
      %s387 = smul.addr %s386, 4
      %s388 = scalar_lea.vmem %s0, %s387
      %p389 = pneg %p55
      %p390 = pneg %p52
      %s391 = smul.u32 %s25, 8
      %s392 = ssub.s32 %s391, 1
      %p393 = scmp.gt.s32.totalorder %s392, 0
      %s394 = scalar_select %p393, %s392, 0
      %s395 = smul.u32 2, %s394
      %p396 = scmp.lt.s32.totalorder %s24, 1
      %s397 = scalar_select %p396, %s24, 1
      %p398 = scmp.lt.s32.totalorder %s395, 31
      %s399 = scalar_select %p398, %s395, 31
      %s400 = smul.addr %s397, 32
      %s401 = sadd.s32 %s399, %s400
      %s402 = smul.addr %s401, 4
      %s403 = scalar_lea.vmem %s1, %s402
      %p404 = pneg %p91
      %p405 = pneg %p88
      %s406 = sadd.s32 %s25, 1
      %s407 = smul.u32 %s406, 8
      %p408 = scmp.lt.s32.totalorder %s407, 15
      %s409 = scalar_select %p408, %s407, 15
      %s410 = smul.u32 2, %s409
      %p411 = scmp.lt.s32.totalorder %s24, 1
      %s412 = scalar_select %p411, %s24, 1
      %p413 = scmp.lt.s32.totalorder %s410, 31
      %s414 = scalar_select %p413, %s410, 31
      %s415 = smul.addr %s412, 32
      %s416 = sadd.s32 %s414, %s415
      %s417 = smul.addr %s416, 4
      %s418 = scalar_lea.vmem %s2, %s417
      %p419 = pneg %p127
      %p420 = pneg %p124
      %p421 = pneg %p148
      %p422 = pneg %p145
      %p423 = pneg %p169
      %p424 = pneg %p166
      %p425 = pneg %p190
      %p426 = pneg %p187
      %p427 = pneg %p211
      %p428 = pneg %p208
      %p429 = pneg %p232
      %p430 = pneg %p229
      %p431 = pneg %p253
      %p432 = pneg %p250
      %p433 = pneg %p281
      %p434 = pneg %p278
      %s435 = smul.u32 16, %s25
      %p436 = scmp.lt.s32.totalorder %s24, 1
      %s437 = scalar_select %p436, %s24, 1
      %p438 = scmp.lt.s32.totalorder %s435, 31
      %s439 = scalar_select %p438, %s435, 31
      %s440 = smul.addr %s437, 32
      %s441 = sadd.s32 %s439, %s440
      %s442 = smul.addr %s441, 8
      %s443 = scalar_lea.vmem %s9, %s442
      %s444 = smul.u32 16, %s25
      %p445 = scmp.lt.s32.totalorder %s24, 1
      %s446 = scalar_select %p445, %s24, 1
      %p447 = scmp.lt.s32.totalorder %s444, 31
      %s448 = scalar_select %p447, %s444, 31
      %s449 = smul.addr %s446, 32
      %s450 = sadd.s32 %s448, %s449
      %s451 = smul.addr %s450, 4
      %s452 = scalar_lea.vmem %s0, %s451
      %s453 = smul.u32 16, %s25
      %s454 = smul.u32 %s25, 8
      %s455 = ssub.s32 %s454, 1
      %p456 = scmp.gt.s32.totalorder %s455, 0
      %s457 = scalar_select %p456, %s455, 0
      %s458 = smul.u32 2, %s457
      %p459 = scmp.lt.s32.totalorder %s24, 1
      %s460 = scalar_select %p459, %s24, 1
      %p461 = scmp.lt.s32.totalorder %s458, 31
      %s462 = scalar_select %p461, %s458, 31
      %s463 = smul.addr %s460, 32
      %s464 = sadd.s32 %s462, %s463
      %s465 = smul.addr %s464, 4
      %s466 = scalar_lea.vmem %s1, %s465
      %s467 = smul.u32 %s25, 8
      %s468 = ssub.s32 %s467, 1
      %p469 = scmp.gt.s32.totalorder %s468, 0
      %s470 = scalar_select %p469, %s468, 0
      %s471 = smul.u32 2, %s470
      %s472 = sadd.s32 %s25, 1
      %s473 = smul.u32 %s472, 8
      %p474 = scmp.lt.s32.totalorder %s473, 15
      %s475 = scalar_select %p474, %s473, 15
      %s476 = smul.u32 2, %s475
      %p477 = scmp.lt.s32.totalorder %s24, 1
      %s478 = scalar_select %p477, %s24, 1
      %p479 = scmp.lt.s32.totalorder %s476, 31
      %s480 = scalar_select %p479, %s476, 31
      %s481 = smul.addr %s478, 32
      %s482 = sadd.s32 %s480, %s481
      %s483 = smul.addr %s482, 4
      %s484 = scalar_lea.vmem %s2, %s483
      %s485 = sadd.s32 %s25, 1
      %s486 = smul.u32 %s485, 8
      %p487 = scmp.lt.s32.totalorder %s486, 15
      %s488 = scalar_select %p487, %s486, 15
      %s489 = smul.u32 2, %s488
      %s490 = smul.u32 16, %s25
      %p491 = scmp.lt.s32.totalorder %s24, 1
      %s492 = scalar_select %p491, %s24, 1
      %p493 = scmp.lt.s32.totalorder %s490, 31
      %s494 = scalar_select %p493, %s490, 31
      %s495 = smul.addr %s492, 32
      %s496 = sadd.s32 %s494, %s495
      %s497 = smul.addr %s496, 8
      %s498 = scalar_lea.vmem %s9, %s497
      %s499 = smul.u32 16, %s25
      %v501 = vld [vmem:[%s466] sm:$0xf]
      %v502 = vld [vmem:[%s466 + $0x4] sm:$0xf]
      %v503 = vld [vmem:[%s452] sm:$0xf]
      %v504 = vld [vmem:[%s452 + $0x4] sm:$0xf]
      %v505 = vld [vmem:[%s452 + $0x8] sm:$0xf]
      %v506 = vld [vmem:[%s452 + $0xc] sm:$0xf]
      %v507 = vld [vmem:[%s452 + $0x10] sm:$0xf]
      %v508 = vld [vmem:[%s452 + $0x14] sm:$0xf]
      %v509 = vld [vmem:[%s452 + $0x18] sm:$0xf]
      %v510 = vld [vmem:[%s452 + $0x1c] sm:$0xf]
      %v511 = vld [vmem:[%s452 + $0x20] sm:$0xf]
      %v512 = vld [vmem:[%s452 + $0x24] sm:$0xf]
      %v513 = vld [vmem:[%s452 + $0x28] sm:$0xf]
      %v514 = vld [vmem:[%s452 + $0x2c] sm:$0xf]
      %v515 = vld [vmem:[%s452 + $0x30] sm:$0xf]
      %v516 = vld [vmem:[%s452 + $0x34] sm:$0xf]
      %v517 = vld [vmem:[%s452 + $0x38] sm:$0xf]
      %v518 = vld [vmem:[%s452 + $0x3c] sm:$0xf]
      %v519 = vld [vmem:[%s484] sm:$0xf]
      %v520 = vld [vmem:[%s484 + $0x4] sm:$0xf]
      %v523 = vunpack.c.l.b16 %v501
      %v524 = vunpack.c.l.b16 %v502
      %v525 = vpack.c.b16 %v524, %v523
      %v542 = vunpack.c.l.b16 %v503
      %v543 = vunpack.c.l.b16 %v504
      %v544 = vunpack.c.l.b16 %v505
      %v545 = vunpack.c.l.b16 %v506
      %v546 = vunpack.c.l.b16 %v507
      %v547 = vunpack.c.l.b16 %v508
      %v548 = vunpack.c.l.b16 %v509
      %v549 = vunpack.c.l.b16 %v510
      %v550 = vunpack.c.l.b16 %v511
      %v551 = vunpack.c.l.b16 %v512
      %v552 = vunpack.c.l.b16 %v513
      %v553 = vunpack.c.l.b16 %v514
      %v554 = vunpack.c.l.b16 %v515
      %v555 = vunpack.c.l.b16 %v516
      %v556 = vunpack.c.l.b16 %v517
      %v557 = vunpack.c.l.b16 %v518
      %v558 = vpack.c.b16 %v543, %v542
      %v559 = vpack.c.b16 %v545, %v544
      %v560 = vpack.c.b16 %v547, %v546
      %v561 = vpack.c.b16 %v549, %v548
      %v562 = vpack.c.b16 %v551, %v550
      %v563 = vpack.c.b16 %v553, %v552
      %v564 = vpack.c.b16 %v555, %v554
      %v565 = vpack.c.b16 %v557, %v556
      %v568 = vunpack.c.l.b16 %v519
      %v569 = vunpack.c.l.b16 %v520
      %v570 = vpack.c.b16 %v569, %v568
      %v571 = vld [vmem:[%s3] sm:$0xf]
      %v572 = vld [vmem:[%s3 + $0x4] sm:$0xf]
      %v575 = vunpack.c.l.b16 %v571
      %v576 = vunpack.c.l.b16 %v572
      %v577 = vpack.c.b16 %v576, %v575
      %vm579 = vcmask 130048
      %v581 = vsel %vm579, %v525, 0
      %v584 = vsel %vm579, %v558, 0
      %v587 = vsel %vm579, %v559, 0
      %v590 = vsel %vm579, %v560, 0
      %v593 = vsel %vm579, %v561, 0
      %v596 = vsel %vm579, %v562, 0
      %v599 = vsel %vm579, %v563, 0
      %v602 = vsel %vm579, %v564, 0
      %v605 = vsel %vm579, %v565, 0
      %v608 = vsel %vm579, %v570, 0
      %610 = vmatprep.subr.bf16.mxu0 0
      %611 = vmatpush1.bf16.msra.mxu0 0
      %612 = vmatprep.subr.bf16.mxu0 0
      %613 = vmatpush1.bf16.msra.mxu0 0
      %614 = vmatprep.subr.bf16.mxu0 0
      %615 = vmatpush1.bf16.msra.mxu0 0
      %616 = vmatprep.subr.bf16.mxu0 0
      %617 = vmatpush1.bf16.msra.mxu0 0
      %618 = vmatprep.subr.bf16.mxu0 0
      %619 = vmatpush1.bf16.msra.mxu0 0
      %620 = vmatprep.subr.bf16.mxu0 0
      %621 = vmatpush1.bf16.msra.mxu0 0
      %622 = vmatprep.subr.bf16.mxu0 0
      %623 = vmatpush1.bf16.msra.mxu0 0
      %624 = vmatprep.subr.bf16.mxu0 0
      %625 = vmatpush1.bf16.msra.mxu0 %v577
      %626 = vmatprep.subr.bf16.mxu0 0
      %627 = vmatpush2.bf16.msra.mxu0 0
      %628 = vmatprep.subr.bf16.mxu0 0
      %629 = vmatpush2.bf16.msra.mxu0 0
      %630 = vmatprep.subr.bf16.mxu0 0
      %631 = vmatpush2.bf16.msra.mxu0 0
      %632 = vmatprep.subr.bf16.mxu0 0
      %633 = vmatpush2.bf16.msra.mxu0 0
      %634 = vmatprep.subr.bf16.mxu0 0
      %635 = vmatpush2.bf16.msra.mxu0 0
      %636 = vmatprep.subr.bf16.mxu0 0
      %637 = vmatpush2.bf16.msra.mxu0 0
      %638 = vmatprep.subr.bf16.mxu0 0
      %639 = vmatpush2.bf16.msra.mxu0 0
      %640 = vmatprep.subr.bf16.mxu0 0
      %641 = vmatpush2.bf16.msra.mxu0 0
      %642 = vmatprep.mubr.bf16.mxu0 0
      %643 = vmatmul.mubr.bf16.gmra.mxu0 %v581
      %v644 = vpop.f32.mrf.mxu0
      %v645 = vadd.f32 0.0, %v644
      %v646 = vpop.f32.mrf.mxu0
      %v647 = vpop.f32.mrf.mxu0
      %v648 = vadd.f32 0.0, %v647
      %v649 = vpop.f32.mrf.mxu0
      %650 = vmatprep.mubr.bf16.mxu0 0
      %651 = vmatmul.mubr.bf16.gmra.mxu0 %v584
      %v652 = vpop.f32.mrf.mxu0
      %v653 = vadd.f32 0.0, %v652
      %v654 = vpop.f32.mrf.mxu0
      %v655 = vpop.f32.mrf.mxu0
      %v656 = vadd.f32 0.0, %v655
      %v657 = vpop.f32.mrf.mxu0
      %658 = vmatprep.mubr.bf16.mxu0 0
      %659 = vmatmul.mubr.bf16.gmra.mxu0 %v587
      %v660 = vpop.f32.mrf.mxu0
      %v661 = vadd.f32 0.0, %v660
      %v662 = vpop.f32.mrf.mxu0
      %v663 = vpop.f32.mrf.mxu0
      %v664 = vadd.f32 0.0, %v663
      %v665 = vpop.f32.mrf.mxu0
      %666 = vmatprep.mubr.bf16.mxu0 0
      %667 = vmatmul.mubr.bf16.gmra.mxu0 %v590
      %v668 = vpop.f32.mrf.mxu0
      %v669 = vadd.f32 0.0, %v668
      %v670 = vpop.f32.mrf.mxu0
      %v671 = vpop.f32.mrf.mxu0
      %v672 = vadd.f32 0.0, %v671
      %v673 = vpop.f32.mrf.mxu0
      %674 = vmatprep.mubr.bf16.mxu0 0
      %675 = vmatmul.mubr.bf16.gmra.mxu0 %v593
      %v676 = vpop.f32.mrf.mxu0
      %v677 = vadd.f32 0.0, %v676
      %v678 = vpop.f32.mrf.mxu0
      %v679 = vpop.f32.mrf.mxu0
      %v680 = vadd.f32 0.0, %v679
      %v681 = vpop.f32.mrf.mxu0
      %682 = vmatprep.mubr.bf16.mxu0 0
      %683 = vmatmul.mubr.bf16.gmra.mxu0 %v596
      %v684 = vpop.f32.mrf.mxu0
      %v685 = vadd.f32 0.0, %v684
      %v686 = vpop.f32.mrf.mxu0
      %v687 = vpop.f32.mrf.mxu0
      %v688 = vadd.f32 0.0, %v687
      %v689 = vpop.f32.mrf.mxu0
      %690 = vmatprep.mubr.bf16.mxu0 0
      %691 = vmatmul.mubr.bf16.gmra.mxu0 %v599
      %v692 = vpop.f32.mrf.mxu0
      %v693 = vadd.f32 0.0, %v692
      %v694 = vpop.f32.mrf.mxu0
      %v695 = vpop.f32.mrf.mxu0
      %v696 = vadd.f32 0.0, %v695
      %v697 = vpop.f32.mrf.mxu0
      %698 = vmatprep.mubr.bf16.mxu0 0
      %699 = vmatmul.mubr.bf16.gmra.mxu0 %v602
      %v700 = vpop.f32.mrf.mxu0
      %v701 = vadd.f32 0.0, %v700
      %v702 = vpop.f32.mrf.mxu0
      %v703 = vpop.f32.mrf.mxu0
      %v704 = vadd.f32 0.0, %v703
      %v705 = vpop.f32.mrf.mxu0
      %706 = vmatprep.mubr.bf16.mxu0 0
      %707 = vmatmul.mubr.bf16.gmra.mxu0 %v605
      %v708 = vpop.f32.mrf.mxu0
      %v709 = vadd.f32 0.0, %v708
      %v710 = vpop.f32.mrf.mxu0
      %v711 = vpop.f32.mrf.mxu0
      %v712 = vadd.f32 0.0, %v711
      %v713 = vpop.f32.mrf.mxu0
      %714 = vmatprep.mubr.bf16.mxu0 0
      %715 = vmatmul.mubr.bf16.gmra.mxu0 %v608
      %v716 = vpop.f32.mrf.mxu0
      %v717 = vadd.f32 0.0, %v716
      %v718 = vpop.f32.mrf.mxu0
      %v719 = vpop.f32.mrf.mxu0
      %v720 = vadd.f32 0.0, %v719
      %v721 = vpop.f32.mrf.mxu0
      %722 = vdwg.mxu0
      %v723 = vld [vmem:[%s4] sm:$0x1]
      %v725 = vlaneseq
      %v726 = vshrl.u32 %v725, 7
      %v727 = vsub.s32 0, %v726
      %v728 = vrot.slane %v723, %v727
      %v730 = vmul.f32 %v645, %v728
      %v731 = vmul.f32 %v648, %v728
      %v732 = vmul.f32 %v653, %v728
      %v733 = vmul.f32 %v656, %v728
      %v734 = vmul.f32 %v661, %v728
      %v735 = vmul.f32 %v664, %v728
      %v736 = vmul.f32 %v669, %v728
      %v737 = vmul.f32 %v672, %v728
      %v738 = vmul.f32 %v677, %v728
      %v739 = vmul.f32 %v680, %v728
      %v740 = vmul.f32 %v685, %v728
      %v741 = vmul.f32 %v688, %v728
      %v742 = vmul.f32 %v693, %v728
      %v743 = vmul.f32 %v696, %v728
      %v744 = vmul.f32 %v701, %v728
      %v745 = vmul.f32 %v704, %v728
      %v746 = vmul.f32 %v709, %v728
      %v747 = vmul.f32 %v712, %v728
      %v748 = vmul.f32 %v717, %v728
      %v749 = vmul.f32 %v720, %v728
      %v750 = vld [vmem:[%s5] sm:$0x1]
      %v752 = vlaneseq
      %v753 = vshrl.u32 %v752, 7
      %v754 = vsub.s32 0, %v753
      %v755 = vrot.slane %v750, %v754
      %v757 = vadd.f32 %v730, %v755
      %v758 = vadd.f32 %v731, %v755
      %v759 = vadd.f32 %v732, %v755
      %v760 = vadd.f32 %v733, %v755
      %v761 = vadd.f32 %v734, %v755
      %v762 = vadd.f32 %v735, %v755
      %v763 = vadd.f32 %v736, %v755
      %v764 = vadd.f32 %v737, %v755
      %v765 = vadd.f32 %v738, %v755
      %v766 = vadd.f32 %v739, %v755
      %v767 = vadd.f32 %v740, %v755
      %v768 = vadd.f32 %v741, %v755
      %v769 = vadd.f32 %v742, %v755
      %v770 = vadd.f32 %v743, %v755
      %v771 = vadd.f32 %v744, %v755
      %v772 = vadd.f32 %v745, %v755
      %v773 = vadd.f32 %v746, %v755
      %v774 = vadd.f32 %v747, %v755
      %v775 = vadd.f32 %v748, %v755
      %v776 = vadd.f32 %v749, %v755
      %v777 = vxor.u32 %v757, 2147483648
      %v778 = vxor.u32 %v758, 2147483648
      %v779 = vxor.u32 %v759, 2147483648
      %v780 = vxor.u32 %v760, 2147483648
      %v781 = vxor.u32 %v761, 2147483648
      %v782 = vxor.u32 %v762, 2147483648
      %v783 = vxor.u32 %v763, 2147483648
      %v784 = vxor.u32 %v764, 2147483648
      %v785 = vxor.u32 %v765, 2147483648
      %v786 = vxor.u32 %v766, 2147483648
      %v787 = vxor.u32 %v767, 2147483648
      %v788 = vxor.u32 %v768, 2147483648
      %v789 = vxor.u32 %v769, 2147483648
      %v790 = vxor.u32 %v770, 2147483648
      %v791 = vxor.u32 %v771, 2147483648
      %v792 = vxor.u32 %v772, 2147483648
      %v793 = vxor.u32 %v773, 2147483648
      %v794 = vxor.u32 %v774, 2147483648
      %v795 = vxor.u32 %v775, 2147483648
      %v796 = vxor.u32 %v776, 2147483648
      %v797 = vmul.f32 %v777, 1.442695
      %v798 = vpow.pop %v797
      %v799 = vmul.f32 %v778, 1.442695
      %v800 = vpow.pop %v799
      %v801 = vmul.f32 %v779, 1.442695
      %v802 = vpow.pop %v801
      %v803 = vmul.f32 %v780, 1.442695
      %v804 = vpow.pop %v803
      %v805 = vmul.f32 %v781, 1.442695
      %v806 = vpow.pop %v805
      %v807 = vmul.f32 %v782, 1.442695
      %v808 = vpow.pop %v807
      %v809 = vmul.f32 %v783, 1.442695
      %v810 = vpow.pop %v809
      %v811 = vmul.f32 %v784, 1.442695
      %v812 = vpow.pop %v811
      %v813 = vmul.f32 %v785, 1.442695
      %v814 = vpow.pop %v813
      %v815 = vmul.f32 %v786, 1.442695
      %v816 = vpow.pop %v815
      %v817 = vmul.f32 %v787, 1.442695
      %v818 = vpow.pop %v817
      %v819 = vmul.f32 %v788, 1.442695
      %v820 = vpow.pop %v819
      %v821 = vmul.f32 %v789, 1.442695
      %v822 = vpow.pop %v821
      %v823 = vmul.f32 %v790, 1.442695
      %v824 = vpow.pop %v823
      %v825 = vmul.f32 %v791, 1.442695
      %v826 = vpow.pop %v825
      %v827 = vmul.f32 %v792, 1.442695
      %v828 = vpow.pop %v827
      %v829 = vmul.f32 %v793, 1.442695
      %v830 = vpow.pop %v829
      %v831 = vmul.f32 %v794, 1.442695
      %v832 = vpow.pop %v831
      %v833 = vmul.f32 %v795, 1.442695
      %v834 = vpow.pop %v833
      %v835 = vmul.f32 %v796, 1.442695
      %v836 = vpow.pop %v835
      %v837 = vadd.f32 %v798, 1.0
      %v838 = vadd.f32 %v800, 1.0
      %v839 = vadd.f32 %v802, 1.0
      %v840 = vadd.f32 %v804, 1.0
      %v841 = vadd.f32 %v806, 1.0
      %v842 = vadd.f32 %v808, 1.0
      %v843 = vadd.f32 %v810, 1.0
      %v844 = vadd.f32 %v812, 1.0
      %v845 = vadd.f32 %v814, 1.0
      %v846 = vadd.f32 %v816, 1.0
      %v847 = vadd.f32 %v818, 1.0
      %v848 = vadd.f32 %v820, 1.0
      %v849 = vadd.f32 %v822, 1.0
      %v850 = vadd.f32 %v824, 1.0
      %v851 = vadd.f32 %v826, 1.0
      %v852 = vadd.f32 %v828, 1.0
      %v853 = vadd.f32 %v830, 1.0
      %v854 = vadd.f32 %v832, 1.0
      %v855 = vadd.f32 %v834, 1.0
      %v856 = vadd.f32 %v836, 1.0
      %v857 = vrcp.pop %v837
      %v858 = vmul.f32 1.0, %v857
      %v859 = vrcp.pop %v838
      %v860 = vmul.f32 1.0, %v859
      %v861 = vrcp.pop %v839
      %v862 = vmul.f32 1.0, %v861
      %v863 = vrcp.pop %v840
      %v864 = vmul.f32 1.0, %v863
      %v865 = vrcp.pop %v841
      %v866 = vmul.f32 1.0, %v865
      %v867 = vrcp.pop %v842
      %v868 = vmul.f32 1.0, %v867
      %v869 = vrcp.pop %v843
      %v870 = vmul.f32 1.0, %v869
      %v871 = vrcp.pop %v844
      %v872 = vmul.f32 1.0, %v871
      %v873 = vrcp.pop %v845
      %v874 = vmul.f32 1.0, %v873
      %v875 = vrcp.pop %v846
      %v876 = vmul.f32 1.0, %v875
      %v877 = vrcp.pop %v847
      %v878 = vmul.f32 1.0, %v877
      %v879 = vrcp.pop %v848
      %v880 = vmul.f32 1.0, %v879
      %v881 = vrcp.pop %v849
      %v882 = vmul.f32 1.0, %v881
      %v883 = vrcp.pop %v850
      %v884 = vmul.f32 1.0, %v883
      %v885 = vrcp.pop %v851
      %v886 = vmul.f32 1.0, %v885
      %v887 = vrcp.pop %v852
      %v888 = vmul.f32 1.0, %v887
      %v889 = vrcp.pop %v853
      %v890 = vmul.f32 1.0, %v889
      %v891 = vrcp.pop %v854
      %v892 = vmul.f32 1.0, %v891
      %v893 = vrcp.pop %v855
      %v894 = vmul.f32 1.0, %v893
      %v895 = vrcp.pop %v856
      %v896 = vmul.f32 1.0, %v895
      %v897 = vmul.f32 %v757, %v858
      %v898 = vmul.f32 %v758, %v860
      %v899 = vmul.f32 %v759, %v862
      %v900 = vmul.f32 %v760, %v864
      %v901 = vmul.f32 %v761, %v866
      %v902 = vmul.f32 %v762, %v868
      %v903 = vmul.f32 %v763, %v870
      %v904 = vmul.f32 %v764, %v872
      %v905 = vmul.f32 %v765, %v874
      %v906 = vmul.f32 %v766, %v876
      %v907 = vmul.f32 %v767, %v878
      %v908 = vmul.f32 %v768, %v880
      %v909 = vmul.f32 %v769, %v882
      %v910 = vmul.f32 %v770, %v884
      %v911 = vmul.f32 %v771, %v886
      %v912 = vmul.f32 %v772, %v888
      %v913 = vmul.f32 %v773, %v890
      %v914 = vmul.f32 %v774, %v892
      %v915 = vmul.f32 %v775, %v894
      %v916 = vmul.f32 %v776, %v896
      %v917 = vlaneseq
      %v918 = vshrl.u32 %v917, 7
      %v919 = vadd.s32 %v918, 8
      %v920 = vadd.s32 %v918, 16
      %v921 = vadd.s32 %v918, 24
      %v922 = vadd.s32 %v918, 32
      %v923 = vadd.s32 %v918, 40
      %v924 = vadd.s32 %v918, 48
      %v925 = vadd.s32 %v918, 56
      %v926 = vadd.s32 %v918, 64
      %v927 = vadd.s32 %v918, 72
      %v928 = vadd.s32 %v918, 80
      %v929 = vadd.s32 %v918, 88
      %v930 = vadd.s32 %v918, 96
      %v931 = vadd.s32 %v918, 104
      %v932 = vadd.s32 %v918, 112
      %v933 = vadd.s32 %v918, 120
      %v934 = vadd.s32 %v918, 128
      %v935 = vadd.s32 %v918, 136
      %v936 = vadd.s32 %v918, 144
      %v937 = vadd.s32 %v918, 152
      %vm938 = vcmp.lt.s32.totalorder %v918, 16
      %vm939 = vcmp.lt.s32.totalorder %v919, 16
      %vm940 = vcmp.lt.s32.totalorder %v920, 16
      %vm941 = vcmp.lt.s32.totalorder %v921, 16
      %vm942 = vcmp.lt.s32.totalorder %v922, 16
      %vm943 = vcmp.lt.s32.totalorder %v923, 16
      %vm944 = vcmp.lt.s32.totalorder %v924, 16
      %vm945 = vcmp.lt.s32.totalorder %v925, 16
      %vm946 = vcmp.lt.s32.totalorder %v926, 16
      %vm947 = vcmp.lt.s32.totalorder %v927, 16
      %vm948 = vcmp.lt.s32.totalorder %v928, 16
      %vm949 = vcmp.lt.s32.totalorder %v929, 16
      %vm950 = vcmp.lt.s32.totalorder %v930, 16
      %vm951 = vcmp.lt.s32.totalorder %v931, 16
      %vm952 = vcmp.lt.s32.totalorder %v932, 16
      %vm953 = vcmp.lt.s32.totalorder %v933, 16
      %vm954 = vcmp.lt.s32.totalorder %v934, 16
      %vm955 = vcmp.lt.s32.totalorder %v935, 16
      %vm956 = vcmp.lt.s32.totalorder %v936, 16
      %vm957 = vcmp.lt.s32.totalorder %v937, 16
      %p958 = scmp.eq.s32.totalorder %s25, 0
      %s959 = scalar_select %p958, 1, 0
      %v960 = vstv %s959
      %vm961 = vcmp.eq.s32.totalorder %v960, 1
      %vm962 = vmand %vm938, %vm961
      %vm963 = vmand %vm939, %vm961
      %vm964 = vmand %vm940, %vm961
      %vm965 = vmand %vm941, %vm961
      %vm966 = vmand %vm942, %vm961
      %vm967 = vmand %vm943, %vm961
      %vm968 = vmand %vm944, %vm961
      %vm969 = vmand %vm945, %vm961
      %vm970 = vmand %vm946, %vm961
      %vm971 = vmand %vm947, %vm961
      %vm972 = vmand %vm948, %vm961
      %vm973 = vmand %vm949, %vm961
      %vm974 = vmand %vm950, %vm961
      %vm975 = vmand %vm951, %vm961
      %vm976 = vmand %vm952, %vm961
      %vm977 = vmand %vm953, %vm961
      %vm978 = vmand %vm954, %vm961
      %vm979 = vmand %vm955, %vm961
      %vm980 = vmand %vm956, %vm961
      %vm981 = vmand %vm957, %vm961
      %vm982 = vcmp.ge.s32.totalorder %v918, 144
      %vm983 = vcmp.ge.s32.totalorder %v919, 144
      %vm984 = vcmp.ge.s32.totalorder %v920, 144
      %vm985 = vcmp.ge.s32.totalorder %v921, 144
      %vm986 = vcmp.ge.s32.totalorder %v922, 144
      %vm987 = vcmp.ge.s32.totalorder %v923, 144
      %vm988 = vcmp.ge.s32.totalorder %v924, 144
      %vm989 = vcmp.ge.s32.totalorder %v925, 144
      %vm990 = vcmp.ge.s32.totalorder %v926, 144
      %vm991 = vcmp.ge.s32.totalorder %v927, 144
      %vm992 = vcmp.ge.s32.totalorder %v928, 144
      %vm993 = vcmp.ge.s32.totalorder %v929, 144
      %vm994 = vcmp.ge.s32.totalorder %v930, 144
      %vm995 = vcmp.ge.s32.totalorder %v931, 144
      %vm996 = vcmp.ge.s32.totalorder %v932, 144
      %vm997 = vcmp.ge.s32.totalorder %v933, 144
      %vm998 = vcmp.ge.s32.totalorder %v934, 144
      %vm999 = vcmp.ge.s32.totalorder %v935, 144
      %vm1000 = vcmp.ge.s32.totalorder %v936, 144
      %vm1001 = vcmp.ge.s32.totalorder %v937, 144
      %p1002 = scmp.eq.s32.totalorder %s25, 1
      %s1003 = scalar_select %p1002, 1, 0
      %v1004 = vstv %s1003
      %vm1005 = vcmp.eq.s32.totalorder %v1004, 1
      %vm1006 = vmand %vm982, %vm1005
      %vm1007 = vmand %vm983, %vm1005
      %vm1008 = vmand %vm984, %vm1005
      %vm1009 = vmand %vm985, %vm1005
      %vm1010 = vmand %vm986, %vm1005
      %vm1011 = vmand %vm987, %vm1005
      %vm1012 = vmand %vm988, %vm1005
      %vm1013 = vmand %vm989, %vm1005
      %vm1014 = vmand %vm990, %vm1005
      %vm1015 = vmand %vm991, %vm1005
      %vm1016 = vmand %vm992, %vm1005
      %vm1017 = vmand %vm993, %vm1005
      %vm1018 = vmand %vm994, %vm1005
      %vm1019 = vmand %vm995, %vm1005
      %vm1020 = vmand %vm996, %vm1005
      %vm1021 = vmand %vm997, %vm1005
      %vm1022 = vmand %vm998, %vm1005
      %vm1023 = vmand %vm999, %vm1005
      %vm1024 = vmand %vm1000, %vm1005
      %vm1025 = vmand %vm1001, %vm1005
      %vm1026 = vmor %vm962, %vm1006
      %vm1027 = vmor %vm963, %vm1007
      %vm1028 = vmor %vm964, %vm1008
      %vm1029 = vmor %vm965, %vm1009
      %vm1030 = vmor %vm966, %vm1010
      %vm1031 = vmor %vm967, %vm1011
      %vm1032 = vmor %vm968, %vm1012
      %vm1033 = vmor %vm969, %vm1013
      %vm1034 = vmor %vm970, %vm1014
      %vm1035 = vmor %vm971, %vm1015
      %vm1036 = vmor %vm972, %vm1016
      %vm1037 = vmor %vm973, %vm1017
      %vm1038 = vmor %vm974, %vm1018
      %vm1039 = vmor %vm975, %vm1019
      %vm1040 = vmor %vm976, %vm1020
      %vm1041 = vmor %vm977, %vm1021
      %vm1042 = vmor %vm978, %vm1022
      %vm1043 = vmor %vm979, %vm1023
      %vm1044 = vmor %vm980, %vm1024
      %vm1045 = vmor %vm981, %vm1025
      %v1046 = vsel %vm1026, 1, 0
      %v1047 = vsel %vm1027, 1, 0
      %v1048 = vsel %vm1028, 1, 0
      %v1049 = vsel %vm1029, 1, 0
      %v1050 = vsel %vm1030, 1, 0
      %v1051 = vsel %vm1031, 1, 0
      %v1052 = vsel %vm1032, 1, 0
      %v1053 = vsel %vm1033, 1, 0
      %v1054 = vsel %vm1034, 1, 0
      %v1055 = vsel %vm1035, 1, 0
      %v1056 = vsel %vm1036, 1, 0
      %v1057 = vsel %vm1037, 1, 0
      %v1058 = vsel %vm1038, 1, 0
      %v1059 = vsel %vm1039, 1, 0
      %v1060 = vsel %vm1040, 1, 0
      %v1061 = vsel %vm1041, 1, 0
      %v1062 = vsel %vm1042, 1, 0
      %v1063 = vsel %vm1043, 1, 0
      %v1064 = vsel %vm1044, 1, 0
      %v1065 = vsel %vm1045, 1, 0
      %vm1066 = vcmp.eq.s32.totalorder %v1046, 1
      %vm1067 = vcmp.eq.s32.totalorder %v1047, 1
      %vm1068 = vcmp.eq.s32.totalorder %v1048, 1
      %vm1069 = vcmp.eq.s32.totalorder %v1049, 1
      %vm1070 = vcmp.eq.s32.totalorder %v1050, 1
      %vm1071 = vcmp.eq.s32.totalorder %v1051, 1
      %vm1072 = vcmp.eq.s32.totalorder %v1052, 1
      %vm1073 = vcmp.eq.s32.totalorder %v1053, 1
      %vm1074 = vcmp.eq.s32.totalorder %v1054, 1
      %vm1075 = vcmp.eq.s32.totalorder %v1055, 1
      %vm1076 = vcmp.eq.s32.totalorder %v1056, 1
      %vm1077 = vcmp.eq.s32.totalorder %v1057, 1
      %vm1078 = vcmp.eq.s32.totalorder %v1058, 1
      %vm1079 = vcmp.eq.s32.totalorder %v1059, 1
      %vm1080 = vcmp.eq.s32.totalorder %v1060, 1
      %vm1081 = vcmp.eq.s32.totalorder %v1061, 1
      %vm1082 = vcmp.eq.s32.totalorder %v1062, 1
      %vm1083 = vcmp.eq.s32.totalorder %v1063, 1
      %vm1084 = vcmp.eq.s32.totalorder %v1064, 1
      %vm1085 = vcmp.eq.s32.totalorder %v1065, 1
      %v1086 = vsel %vm1066, 0.0, %v897
      %v1087 = vsel %vm1067, 0.0, %v898
      %v1088 = vsel %vm1068, 0.0, %v899
      %v1089 = vsel %vm1069, 0.0, %v900
      %v1090 = vsel %vm1070, 0.0, %v901
      %v1091 = vsel %vm1071, 0.0, %v902
      %v1092 = vsel %vm1072, 0.0, %v903
      %v1093 = vsel %vm1073, 0.0, %v904
      %v1094 = vsel %vm1074, 0.0, %v905
      %v1095 = vsel %vm1075, 0.0, %v906
      %v1096 = vsel %vm1076, 0.0, %v907
      %v1097 = vsel %vm1077, 0.0, %v908
      %v1098 = vsel %vm1078, 0.0, %v909
      %v1099 = vsel %vm1079, 0.0, %v910
      %v1100 = vsel %vm1080, 0.0, %v911
      %v1101 = vsel %vm1081, 0.0, %v912
      %v1102 = vsel %vm1082, 0.0, %v913
      %v1103 = vsel %vm1083, 0.0, %v914
      %v1104 = vsel %vm1084, 0.0, %v915
      %v1105 = vsel %vm1085, 0.0, %v916
      %vm1106 = vcmp.lt.s32.totalorder %v918, 0
      %v1107 = vsub.s32 0, %v918
      %v1108 = vsel %vm1106, %v1107, %v918
      %v1109 = vshrl.u32 %v1108, 4
      %v1110 = vand.u32 %v1108, 15
      %v1111 = vsub.s32 0, %v1110
      %v1112 = vsel %vm1106, %v1111, %v1110
      %vm1113 = vcmp.lt.s32.totalorder %v919, 0
      %v1114 = vsub.s32 0, %v919
      %v1115 = vsel %vm1113, %v1114, %v919
      %v1116 = vshrl.u32 %v1115, 4
      %v1117 = vand.u32 %v1115, 15
      %v1118 = vsub.s32 0, %v1117
      %v1119 = vsel %vm1113, %v1118, %v1117
      %vm1120 = vcmp.lt.s32.totalorder %v920, 0
      %v1121 = vsub.s32 0, %v920
      %v1122 = vsel %vm1120, %v1121, %v920
      %v1123 = vshrl.u32 %v1122, 4
      %v1124 = vand.u32 %v1122, 15
      %v1125 = vsub.s32 0, %v1124
      %v1126 = vsel %vm1120, %v1125, %v1124
      %vm1127 = vcmp.lt.s32.totalorder %v921, 0
      %v1128 = vsub.s32 0, %v921
      %v1129 = vsel %vm1127, %v1128, %v921
      %v1130 = vshrl.u32 %v1129, 4
      %v1131 = vand.u32 %v1129, 15
      %v1132 = vsub.s32 0, %v1131
      %v1133 = vsel %vm1127, %v1132, %v1131
      %vm1134 = vcmp.lt.s32.totalorder %v922, 0
      %v1135 = vsub.s32 0, %v922
      %v1136 = vsel %vm1134, %v1135, %v922
      %v1137 = vshrl.u32 %v1136, 4
      %v1138 = vand.u32 %v1136, 15
      %v1139 = vsub.s32 0, %v1138
      %v1140 = vsel %vm1134, %v1139, %v1138
      %vm1141 = vcmp.lt.s32.totalorder %v923, 0
      %v1142 = vsub.s32 0, %v923
      %v1143 = vsel %vm1141, %v1142, %v923
      %v1144 = vshrl.u32 %v1143, 4
      %v1145 = vand.u32 %v1143, 15
      %v1146 = vsub.s32 0, %v1145
      %v1147 = vsel %vm1141, %v1146, %v1145
      %vm1148 = vcmp.lt.s32.totalorder %v924, 0
      %v1149 = vsub.s32 0, %v924
      %v1150 = vsel %vm1148, %v1149, %v924
      %v1151 = vshrl.u32 %v1150, 4
      %v1152 = vand.u32 %v1150, 15
      %v1153 = vsub.s32 0, %v1152
      %v1154 = vsel %vm1148, %v1153, %v1152
      %vm1155 = vcmp.lt.s32.totalorder %v925, 0
      %v1156 = vsub.s32 0, %v925
      %v1157 = vsel %vm1155, %v1156, %v925
      %v1158 = vshrl.u32 %v1157, 4
      %v1159 = vand.u32 %v1157, 15
      %v1160 = vsub.s32 0, %v1159
      %v1161 = vsel %vm1155, %v1160, %v1159
      %vm1162 = vcmp.lt.s32.totalorder %v926, 0
      %v1163 = vsub.s32 0, %v926
      %v1164 = vsel %vm1162, %v1163, %v926
      %v1165 = vshrl.u32 %v1164, 4
      %v1166 = vand.u32 %v1164, 15
      %v1167 = vsub.s32 0, %v1166
      %v1168 = vsel %vm1162, %v1167, %v1166
      %vm1169 = vcmp.lt.s32.totalorder %v927, 0
      %v1170 = vsub.s32 0, %v927
      %v1171 = vsel %vm1169, %v1170, %v927
      %v1172 = vshrl.u32 %v1171, 4
      %v1173 = vand.u32 %v1171, 15
      %v1174 = vsub.s32 0, %v1173
      %v1175 = vsel %vm1169, %v1174, %v1173
      %vm1176 = vcmp.lt.s32.totalorder %v928, 0
      %v1177 = vsub.s32 0, %v928
      %v1178 = vsel %vm1176, %v1177, %v928
      %v1179 = vshrl.u32 %v1178, 4
      %v1180 = vand.u32 %v1178, 15
      %v1181 = vsub.s32 0, %v1180
      %v1182 = vsel %vm1176, %v1181, %v1180
      %vm1183 = vcmp.lt.s32.totalorder %v929, 0
      %v1184 = vsub.s32 0, %v929
      %v1185 = vsel %vm1183, %v1184, %v929
      %v1186 = vshrl.u32 %v1185, 4
      %v1187 = vand.u32 %v1185, 15
      %v1188 = vsub.s32 0, %v1187
      %v1189 = vsel %vm1183, %v1188, %v1187
      %vm1190 = vcmp.lt.s32.totalorder %v930, 0
      %v1191 = vsub.s32 0, %v930
      %v1192 = vsel %vm1190, %v1191, %v930
      %v1193 = vshrl.u32 %v1192, 4
      %v1194 = vand.u32 %v1192, 15
      %v1195 = vsub.s32 0, %v1194
      %v1196 = vsel %vm1190, %v1195, %v1194
      %vm1197 = vcmp.lt.s32.totalorder %v931, 0
      %v1198 = vsub.s32 0, %v931
      %v1199 = vsel %vm1197, %v1198, %v931
      %v1200 = vshrl.u32 %v1199, 4
      %v1201 = vand.u32 %v1199, 15
      %v1202 = vsub.s32 0, %v1201
      %v1203 = vsel %vm1197, %v1202, %v1201
      %vm1204 = vcmp.lt.s32.totalorder %v932, 0
      %v1205 = vsub.s32 0, %v932
      %v1206 = vsel %vm1204, %v1205, %v932
      %v1207 = vshrl.u32 %v1206, 4
      %v1208 = vand.u32 %v1206, 15
      %v1209 = vsub.s32 0, %v1208
      %v1210 = vsel %vm1204, %v1209, %v1208
      %vm1211 = vcmp.lt.s32.totalorder %v933, 0
      %v1212 = vsub.s32 0, %v933
      %v1213 = vsel %vm1211, %v1212, %v933
      %v1214 = vshrl.u32 %v1213, 4
      %v1215 = vand.u32 %v1213, 15
      %v1216 = vsub.s32 0, %v1215
      %v1217 = vsel %vm1211, %v1216, %v1215
      %vm1218 = vcmp.lt.s32.totalorder %v934, 0
      %v1219 = vsub.s32 0, %v934
      %v1220 = vsel %vm1218, %v1219, %v934
      %v1221 = vshrl.u32 %v1220, 4
      %v1222 = vand.u32 %v1220, 15
      %v1223 = vsub.s32 0, %v1222
      %v1224 = vsel %vm1218, %v1223, %v1222
      %vm1225 = vcmp.lt.s32.totalorder %v935, 0
      %v1226 = vsub.s32 0, %v935
      %v1227 = vsel %vm1225, %v1226, %v935
      %v1228 = vshrl.u32 %v1227, 4
      %v1229 = vand.u32 %v1227, 15
      %v1230 = vsub.s32 0, %v1229
      %v1231 = vsel %vm1225, %v1230, %v1229
      %vm1232 = vcmp.lt.s32.totalorder %v936, 0
      %v1233 = vsub.s32 0, %v936
      %v1234 = vsel %vm1232, %v1233, %v936
      %v1235 = vshrl.u32 %v1234, 4
      %v1236 = vand.u32 %v1234, 15
      %v1237 = vsub.s32 0, %v1236
      %v1238 = vsel %vm1232, %v1237, %v1236
      %vm1239 = vcmp.lt.s32.totalorder %v937, 0
      %v1240 = vsub.s32 0, %v937
      %v1241 = vsel %vm1239, %v1240, %v937
      %v1242 = vshrl.u32 %v1241, 4
      %v1243 = vand.u32 %v1241, 15
      %v1244 = vsub.s32 0, %v1243
      %v1245 = vsel %vm1239, %v1244, %v1243
      %vm1246 = vcmp.ne.s32.totalorder %v1112, 0
      %vm1247 = vcmp.ne.s32.totalorder %v1119, 0
      %vm1248 = vcmp.ne.s32.totalorder %v1126, 0
      %vm1249 = vcmp.ne.s32.totalorder %v1133, 0
      %vm1250 = vcmp.ne.s32.totalorder %v1140, 0
      %vm1251 = vcmp.ne.s32.totalorder %v1147, 0
      %vm1252 = vcmp.ne.s32.totalorder %v1154, 0
      %vm1253 = vcmp.ne.s32.totalorder %v1161, 0
      %vm1254 = vcmp.ne.s32.totalorder %v1168, 0
      %vm1255 = vcmp.ne.s32.totalorder %v1175, 0
      %vm1256 = vcmp.ne.s32.totalorder %v1182, 0
      %vm1257 = vcmp.ne.s32.totalorder %v1189, 0
      %vm1258 = vcmp.ne.s32.totalorder %v1196, 0
      %vm1259 = vcmp.ne.s32.totalorder %v1203, 0
      %vm1260 = vcmp.ne.s32.totalorder %v1210, 0
      %vm1261 = vcmp.ne.s32.totalorder %v1217, 0
      %vm1262 = vcmp.ne.s32.totalorder %v1224, 0
      %vm1263 = vcmp.ne.s32.totalorder %v1231, 0
      %vm1264 = vcmp.ne.s32.totalorder %v1238, 0
      %vm1265 = vcmp.ne.s32.totalorder %v1245, 0
      %vm1266 = vcmp.lt.s32.totalorder %v1112, 0
      %vm1267 = vcmp.lt.s32.totalorder %v1119, 0
      %vm1268 = vcmp.lt.s32.totalorder %v1126, 0
      %vm1269 = vcmp.lt.s32.totalorder %v1133, 0
      %vm1270 = vcmp.lt.s32.totalorder %v1140, 0
      %vm1271 = vcmp.lt.s32.totalorder %v1147, 0
      %vm1272 = vcmp.lt.s32.totalorder %v1154, 0
      %vm1273 = vcmp.lt.s32.totalorder %v1161, 0
      %vm1274 = vcmp.lt.s32.totalorder %v1168, 0
      %vm1275 = vcmp.lt.s32.totalorder %v1175, 0
      %vm1276 = vcmp.lt.s32.totalorder %v1182, 0
      %vm1277 = vcmp.lt.s32.totalorder %v1189, 0
      %vm1278 = vcmp.lt.s32.totalorder %v1196, 0
      %vm1279 = vcmp.lt.s32.totalorder %v1203, 0
      %vm1280 = vcmp.lt.s32.totalorder %v1210, 0
      %vm1281 = vcmp.lt.s32.totalorder %v1217, 0
      %vm1282 = vcmp.lt.s32.totalorder %v1224, 0
      %vm1283 = vcmp.lt.s32.totalorder %v1231, 0
      %vm1284 = vcmp.lt.s32.totalorder %v1238, 0
      %vm1285 = vcmp.lt.s32.totalorder %v1245, 0
      %vm1286 = vmand %vm1266, %vm1246
      %vm1287 = vmand %vm1267, %vm1247
      %vm1288 = vmand %vm1268, %vm1248
      %vm1289 = vmand %vm1269, %vm1249
      %vm1290 = vmand %vm1270, %vm1250
      %vm1291 = vmand %vm1271, %vm1251
      %vm1292 = vmand %vm1272, %vm1252
      %vm1293 = vmand %vm1273, %vm1253
      %vm1294 = vmand %vm1274, %vm1254
      %vm1295 = vmand %vm1275, %vm1255
      %vm1296 = vmand %vm1276, %vm1256
      %vm1297 = vmand %vm1277, %vm1257
      %vm1298 = vmand %vm1278, %vm1258
      %vm1299 = vmand %vm1279, %vm1259
      %vm1300 = vmand %vm1280, %vm1260
      %vm1301 = vmand %vm1281, %vm1261
      %vm1302 = vmand %vm1282, %vm1262
      %vm1303 = vmand %vm1283, %vm1263
      %vm1304 = vmand %vm1284, %vm1264
      %vm1305 = vmand %vm1285, %vm1265
      %v1306 = vadd.s32 %v1112, 16
      %v1307 = vadd.s32 %v1119, 16
      %v1308 = vadd.s32 %v1126, 16
      %v1309 = vadd.s32 %v1133, 16
      %v1310 = vadd.s32 %v1140, 16
      %v1311 = vadd.s32 %v1147, 16
      %v1312 = vadd.s32 %v1154, 16
      %v1313 = vadd.s32 %v1161, 16
      %v1314 = vadd.s32 %v1168, 16
      %v1315 = vadd.s32 %v1175, 16
      %v1316 = vadd.s32 %v1182, 16
      %v1317 = vadd.s32 %v1189, 16
      %v1318 = vadd.s32 %v1196, 16
      %v1319 = vadd.s32 %v1203, 16
      %v1320 = vadd.s32 %v1210, 16
      %v1321 = vadd.s32 %v1217, 16
      %v1322 = vadd.s32 %v1224, 16
      %v1323 = vadd.s32 %v1231, 16
      %v1324 = vadd.s32 %v1238, 16
      %v1325 = vadd.s32 %v1245, 16
      %v1326 = vsel %vm1286, %v1306, %v1112
      %v1327 = vsel %vm1287, %v1307, %v1119
      %v1328 = vsel %vm1288, %v1308, %v1126
      %v1329 = vsel %vm1289, %v1309, %v1133
      %v1330 = vsel %vm1290, %v1310, %v1140
      %v1331 = vsel %vm1291, %v1311, %v1147
      %v1332 = vsel %vm1292, %v1312, %v1154
      %v1333 = vsel %vm1293, %v1313, %v1161
      %v1334 = vsel %vm1294, %v1314, %v1168
      %v1335 = vsel %vm1295, %v1315, %v1175
      %v1336 = vsel %vm1296, %v1316, %v1182
      %v1337 = vsel %vm1297, %v1317, %v1189
      %v1338 = vsel %vm1298, %v1318, %v1196
      %v1339 = vsel %vm1299, %v1319, %v1203
      %v1340 = vsel %vm1300, %v1320, %v1210
      %v1341 = vsel %vm1301, %v1321, %v1217
      %v1342 = vsel %vm1302, %v1322, %v1224
      %v1343 = vsel %vm1303, %v1323, %v1231
      %v1344 = vsel %vm1304, %v1324, %v1238
      %v1345 = vsel %vm1305, %v1325, %v1245
      %vm1346 = vcmp.ge.s32.totalorder %v1326, 1
      %vm1347 = vcmp.ge.s32.totalorder %v1327, 1
      %vm1348 = vcmp.ge.s32.totalorder %v1328, 1
      %vm1349 = vcmp.ge.s32.totalorder %v1329, 1
      %vm1350 = vcmp.ge.s32.totalorder %v1330, 1
      %vm1351 = vcmp.ge.s32.totalorder %v1331, 1
      %vm1352 = vcmp.ge.s32.totalorder %v1332, 1
      %vm1353 = vcmp.ge.s32.totalorder %v1333, 1
      %vm1354 = vcmp.ge.s32.totalorder %v1334, 1
      %vm1355 = vcmp.ge.s32.totalorder %v1335, 1
      %vm1356 = vcmp.ge.s32.totalorder %v1336, 1
      %vm1357 = vcmp.ge.s32.totalorder %v1337, 1
      %vm1358 = vcmp.ge.s32.totalorder %v1338, 1
      %vm1359 = vcmp.ge.s32.totalorder %v1339, 1
      %vm1360 = vcmp.ge.s32.totalorder %v1340, 1
      %vm1361 = vcmp.ge.s32.totalorder %v1341, 1
      %vm1362 = vcmp.ge.s32.totalorder %v1342, 1
      %vm1363 = vcmp.ge.s32.totalorder %v1343, 1
      %vm1364 = vcmp.ge.s32.totalorder %v1344, 1
      %vm1365 = vcmp.ge.s32.totalorder %v1345, 1
      %vm1386 = vcmask 1040384
      %v1387 = vrot.slane %v1086, 7
      %v1388 = vrot.slane %v1087, 7
      %v1389 = vsel %vm1386, %v1387, %v1388
      %v1390 = vrot.slane %v1088, 7
      %v1391 = vsel %vm1386, %v1388, %v1390
      %v1392 = vrot.slane %v1089, 7
      %v1393 = vsel %vm1386, %v1390, %v1392
      %v1394 = vrot.slane %v1090, 7
      %v1395 = vsel %vm1386, %v1392, %v1394
      %v1396 = vrot.slane %v1091, 7
      %v1397 = vsel %vm1386, %v1394, %v1396
      %v1398 = vrot.slane %v1092, 7
      %v1399 = vsel %vm1386, %v1396, %v1398
      %v1400 = vrot.slane %v1093, 7
      %v1401 = vsel %vm1386, %v1398, %v1400
      %v1402 = vrot.slane %v1094, 7
      %v1403 = vsel %vm1386, %v1400, %v1402
      %v1404 = vrot.slane %v1095, 7
      %v1405 = vsel %vm1386, %v1402, %v1404
      %v1406 = vrot.slane %v1096, 7
      %v1407 = vsel %vm1386, %v1404, %v1406
      %v1408 = vrot.slane %v1097, 7
      %v1409 = vsel %vm1386, %v1406, %v1408
      %v1410 = vrot.slane %v1098, 7
      %v1411 = vsel %vm1386, %v1408, %v1410
      %v1412 = vrot.slane %v1099, 7
      %v1413 = vsel %vm1386, %v1410, %v1412
      %v1414 = vrot.slane %v1100, 7
      %v1415 = vsel %vm1386, %v1412, %v1414
      %v1416 = vrot.slane %v1101, 7
      %v1417 = vsel %vm1386, %v1414, %v1416
      %v1418 = vrot.slane %v1102, 7
      %v1419 = vsel %vm1386, %v1416, %v1418
      %v1420 = vrot.slane %v1103, 7
      %v1421 = vsel %vm1386, %v1418, %v1420
      %v1422 = vrot.slane %v1104, 7
      %v1423 = vsel %vm1386, %v1420, %v1422
      %v1424 = vrot.slane %v1105, 7
      %v1425 = vsel %vm1386, %v1422, %v1424
      %v1446 = vsel %vm1386, 0.0, %v1387
      %v1447 = vsel %vm1346, 1, 0
      %v1448 = vsel %vm1347, 1, 0
      %v1449 = vsel %vm1348, 1, 0
      %v1450 = vsel %vm1349, 1, 0
      %v1451 = vsel %vm1350, 1, 0
      %v1452 = vsel %vm1351, 1, 0
      %v1453 = vsel %vm1352, 1, 0
      %v1454 = vsel %vm1353, 1, 0
      %v1455 = vsel %vm1354, 1, 0
      %v1456 = vsel %vm1355, 1, 0
      %v1457 = vsel %vm1356, 1, 0
      %v1458 = vsel %vm1357, 1, 0
      %v1459 = vsel %vm1358, 1, 0
      %v1460 = vsel %vm1359, 1, 0
      %v1461 = vsel %vm1360, 1, 0
      %v1462 = vsel %vm1361, 1, 0
      %v1463 = vsel %vm1362, 1, 0
      %v1464 = vsel %vm1363, 1, 0
      %v1465 = vsel %vm1364, 1, 0
      %v1466 = vsel %vm1365, 1, 0
      %vm1467 = vcmp.eq.s32.totalorder %v1447, 1
      %vm1468 = vcmp.eq.s32.totalorder %v1448, 1
      %vm1469 = vcmp.eq.s32.totalorder %v1449, 1
      %vm1470 = vcmp.eq.s32.totalorder %v1450, 1
      %vm1471 = vcmp.eq.s32.totalorder %v1451, 1
      %vm1472 = vcmp.eq.s32.totalorder %v1452, 1
      %vm1473 = vcmp.eq.s32.totalorder %v1453, 1
      %vm1474 = vcmp.eq.s32.totalorder %v1454, 1
      %vm1475 = vcmp.eq.s32.totalorder %v1455, 1
      %vm1476 = vcmp.eq.s32.totalorder %v1456, 1
      %vm1477 = vcmp.eq.s32.totalorder %v1457, 1
      %vm1478 = vcmp.eq.s32.totalorder %v1458, 1
      %vm1479 = vcmp.eq.s32.totalorder %v1459, 1
      %vm1480 = vcmp.eq.s32.totalorder %v1460, 1
      %vm1481 = vcmp.eq.s32.totalorder %v1461, 1
      %vm1482 = vcmp.eq.s32.totalorder %v1462, 1
      %vm1483 = vcmp.eq.s32.totalorder %v1463, 1
      %vm1484 = vcmp.eq.s32.totalorder %v1464, 1
      %vm1485 = vcmp.eq.s32.totalorder %v1465, 1
      %vm1486 = vcmp.eq.s32.totalorder %v1466, 1
      %v1487 = vsel %vm1467, %v1446, 0.0
      %v1488 = vsel %vm1468, %v1389, 0.0
      %v1489 = vsel %vm1469, %v1391, 0.0
      %v1490 = vsel %vm1470, %v1393, 0.0
      %v1491 = vsel %vm1471, %v1395, 0.0
      %v1492 = vsel %vm1472, %v1397, 0.0
      %v1493 = vsel %vm1473, %v1399, 0.0
      %v1494 = vsel %vm1474, %v1401, 0.0
      %v1495 = vsel %vm1475, %v1403, 0.0
      %v1496 = vsel %vm1476, %v1405, 0.0
      %v1497 = vsel %vm1477, %v1407, 0.0
      %v1498 = vsel %vm1478, %v1409, 0.0
      %v1499 = vsel %vm1479, %v1411, 0.0
      %v1500 = vsel %vm1480, %v1413, 0.0
      %v1501 = vsel %vm1481, %v1415, 0.0
      %v1502 = vsel %vm1482, %v1417, 0.0
      %v1503 = vsel %vm1483, %v1419, 0.0
      %v1504 = vsel %vm1484, %v1421, 0.0
      %v1505 = vsel %vm1485, %v1423, 0.0
      %v1506 = vsel %vm1486, %v1425, 0.0
      %vm1507 = vcmp.le.s32.totalorder %v1326, 14
      %vm1508 = vcmp.le.s32.totalorder %v1327, 14
      %vm1509 = vcmp.le.s32.totalorder %v1328, 14
      %vm1510 = vcmp.le.s32.totalorder %v1329, 14
      %vm1511 = vcmp.le.s32.totalorder %v1330, 14
      %vm1512 = vcmp.le.s32.totalorder %v1331, 14
      %vm1513 = vcmp.le.s32.totalorder %v1332, 14
      %vm1514 = vcmp.le.s32.totalorder %v1333, 14
      %vm1515 = vcmp.le.s32.totalorder %v1334, 14
      %vm1516 = vcmp.le.s32.totalorder %v1335, 14
      %vm1517 = vcmp.le.s32.totalorder %v1336, 14
      %vm1518 = vcmp.le.s32.totalorder %v1337, 14
      %vm1519 = vcmp.le.s32.totalorder %v1338, 14
      %vm1520 = vcmp.le.s32.totalorder %v1339, 14
      %vm1521 = vcmp.le.s32.totalorder %v1340, 14
      %vm1522 = vcmp.le.s32.totalorder %v1341, 14
      %vm1523 = vcmp.le.s32.totalorder %v1342, 14
      %vm1524 = vcmp.le.s32.totalorder %v1343, 14
      %vm1525 = vcmp.le.s32.totalorder %v1344, 14
      %vm1526 = vcmp.le.s32.totalorder %v1345, 14
      %vm1527 = vcmask 1046528
      %v1528 = vrot.slane %v1086, 1
      %v1529 = vrot.slane %v1087, 1
      %v1530 = vsel %vm1527, %v1528, %v1529
      %v1531 = vrot.slane %v1088, 1
      %v1532 = vsel %vm1527, %v1529, %v1531
      %v1533 = vrot.slane %v1089, 1
      %v1534 = vsel %vm1527, %v1531, %v1533
      %v1535 = vrot.slane %v1090, 1
      %v1536 = vsel %vm1527, %v1533, %v1535
      %v1537 = vrot.slane %v1091, 1
      %v1538 = vsel %vm1527, %v1535, %v1537
      %v1539 = vrot.slane %v1092, 1
      %v1540 = vsel %vm1527, %v1537, %v1539
      %v1541 = vrot.slane %v1093, 1
      %v1542 = vsel %vm1527, %v1539, %v1541
      %v1543 = vrot.slane %v1094, 1
      %v1544 = vsel %vm1527, %v1541, %v1543
      %v1545 = vrot.slane %v1095, 1
      %v1546 = vsel %vm1527, %v1543, %v1545
      %v1547 = vrot.slane %v1096, 1
      %v1548 = vsel %vm1527, %v1545, %v1547
      %v1549 = vrot.slane %v1097, 1
      %v1550 = vsel %vm1527, %v1547, %v1549
      %v1551 = vrot.slane %v1098, 1
      %v1552 = vsel %vm1527, %v1549, %v1551
      %v1553 = vrot.slane %v1099, 1
      %v1554 = vsel %vm1527, %v1551, %v1553
      %v1555 = vrot.slane %v1100, 1
      %v1556 = vsel %vm1527, %v1553, %v1555
      %v1557 = vrot.slane %v1101, 1
      %v1558 = vsel %vm1527, %v1555, %v1557
      %v1559 = vrot.slane %v1102, 1
      %v1560 = vsel %vm1527, %v1557, %v1559
      %v1561 = vrot.slane %v1103, 1
      %v1562 = vsel %vm1527, %v1559, %v1561
      %v1563 = vrot.slane %v1104, 1
      %v1564 = vsel %vm1527, %v1561, %v1563
      %v1565 = vrot.slane %v1105, 1
      %v1566 = vsel %vm1527, %v1563, %v1565
      %v1587 = vsel %vm1527, %v1565, 0.0
      %v1588 = vsel %vm1507, 1, 0
      %v1589 = vsel %vm1508, 1, 0
      %v1590 = vsel %vm1509, 1, 0
      %v1591 = vsel %vm1510, 1, 0
      %v1592 = vsel %vm1511, 1, 0
      %v1593 = vsel %vm1512, 1, 0
      %v1594 = vsel %vm1513, 1, 0
      %v1595 = vsel %vm1514, 1, 0
      %v1596 = vsel %vm1515, 1, 0
      %v1597 = vsel %vm1516, 1, 0
      %v1598 = vsel %vm1517, 1, 0
      %v1599 = vsel %vm1518, 1, 0
      %v1600 = vsel %vm1519, 1, 0
      %v1601 = vsel %vm1520, 1, 0
      %v1602 = vsel %vm1521, 1, 0
      %v1603 = vsel %vm1522, 1, 0
      %v1604 = vsel %vm1523, 1, 0
      %v1605 = vsel %vm1524, 1, 0
      %v1606 = vsel %vm1525, 1, 0
      %v1607 = vsel %vm1526, 1, 0
      %vm1608 = vcmp.eq.s32.totalorder %v1588, 1
      %vm1609 = vcmp.eq.s32.totalorder %v1589, 1
      %vm1610 = vcmp.eq.s32.totalorder %v1590, 1
      %vm1611 = vcmp.eq.s32.totalorder %v1591, 1
      %vm1612 = vcmp.eq.s32.totalorder %v1592, 1
      %vm1613 = vcmp.eq.s32.totalorder %v1593, 1
      %vm1614 = vcmp.eq.s32.totalorder %v1594, 1
      %vm1615 = vcmp.eq.s32.totalorder %v1595, 1
      %vm1616 = vcmp.eq.s32.totalorder %v1596, 1
      %vm1617 = vcmp.eq.s32.totalorder %v1597, 1
      %vm1618 = vcmp.eq.s32.totalorder %v1598, 1
      %vm1619 = vcmp.eq.s32.totalorder %v1599, 1
      %vm1620 = vcmp.eq.s32.totalorder %v1600, 1
      %vm1621 = vcmp.eq.s32.totalorder %v1601, 1
      %vm1622 = vcmp.eq.s32.totalorder %v1602, 1
      %vm1623 = vcmp.eq.s32.totalorder %v1603, 1
      %vm1624 = vcmp.eq.s32.totalorder %v1604, 1
      %vm1625 = vcmp.eq.s32.totalorder %v1605, 1
      %vm1626 = vcmp.eq.s32.totalorder %v1606, 1
      %vm1627 = vcmp.eq.s32.totalorder %v1607, 1
      %v1628 = vsel %vm1608, %v1530, 0.0
      %v1629 = vsel %vm1609, %v1532, 0.0
      %v1630 = vsel %vm1610, %v1534, 0.0
      %v1631 = vsel %vm1611, %v1536, 0.0
      %v1632 = vsel %vm1612, %v1538, 0.0
      %v1633 = vsel %vm1613, %v1540, 0.0
      %v1634 = vsel %vm1614, %v1542, 0.0
      %v1635 = vsel %vm1615, %v1544, 0.0
      %v1636 = vsel %vm1616, %v1546, 0.0
      %v1637 = vsel %vm1617, %v1548, 0.0
      %v1638 = vsel %vm1618, %v1550, 0.0
      %v1639 = vsel %vm1619, %v1552, 0.0
      %v1640 = vsel %vm1620, %v1554, 0.0
      %v1641 = vsel %vm1621, %v1556, 0.0
      %v1642 = vsel %vm1622, %v1558, 0.0
      %v1643 = vsel %vm1623, %v1560, 0.0
      %v1644 = vsel %vm1624, %v1562, 0.0
      %v1645 = vsel %vm1625, %v1564, 0.0
      %v1646 = vsel %vm1626, %v1566, 0.0
      %v1647 = vsel %vm1627, %v1587, 0.0
      %v1648 = vpack.c.bf16 %v1488, %v1487
      %v1649 = vpack.c.bf16 %v1490, %v1489
      %v1650 = vpack.c.bf16 %v1492, %v1491
      %v1651 = vpack.c.bf16 %v1494, %v1493
      %v1652 = vpack.c.bf16 %v1496, %v1495
      %v1653 = vpack.c.bf16 %v1498, %v1497
      %v1654 = vpack.c.bf16 %v1500, %v1499
      %v1655 = vpack.c.bf16 %v1502, %v1501
      %v1656 = vpack.c.bf16 %v1504, %v1503
      %v1657 = vpack.c.bf16 %v1506, %v1505
      %v1668 = vunpack.c.l.b16 %v1648
      %v1669 = vunpack.c.h.b16 %v1648
      %v1670 = vunpack.c.l.b16 %v1649
      %v1671 = vunpack.c.h.b16 %v1649
      %v1672 = vunpack.c.l.b16 %v1650
      %v1673 = vunpack.c.h.b16 %v1650
      %v1674 = vunpack.c.l.b16 %v1651
      %v1675 = vunpack.c.h.b16 %v1651
      %v1676 = vunpack.c.l.b16 %v1652
      %v1677 = vunpack.c.h.b16 %v1652
      %v1678 = vunpack.c.l.b16 %v1653
      %v1679 = vunpack.c.h.b16 %v1653
      %v1680 = vunpack.c.l.b16 %v1654
      %v1681 = vunpack.c.h.b16 %v1654
      %v1682 = vunpack.c.l.b16 %v1655
      %v1683 = vunpack.c.h.b16 %v1655
      %v1684 = vunpack.c.l.b16 %v1656
      %v1685 = vunpack.c.h.b16 %v1656
      %v1686 = vunpack.c.l.b16 %v1657
      %v1687 = vunpack.c.h.b16 %v1657
      %v1688 = vpack.c.b16 %v1668, %v1668
      %v1689 = vpack.c.b16 %v1669, %v1669
      %v1690 = vpack.c.b16 %v1670, %v1670
      %v1691 = vpack.c.b16 %v1671, %v1671
      %v1692 = vpack.c.b16 %v1672, %v1672
      %v1693 = vpack.c.b16 %v1673, %v1673
      %v1694 = vpack.c.b16 %v1674, %v1674
      %v1695 = vpack.c.b16 %v1675, %v1675
      %v1696 = vpack.c.b16 %v1676, %v1676
      %v1697 = vpack.c.b16 %v1677, %v1677
      %v1698 = vpack.c.b16 %v1678, %v1678
      %v1699 = vpack.c.b16 %v1679, %v1679
      %v1700 = vpack.c.b16 %v1680, %v1680
      %v1701 = vpack.c.b16 %v1681, %v1681
      %v1702 = vpack.c.b16 %v1682, %v1682
      %v1703 = vpack.c.b16 %v1683, %v1683
      %v1704 = vpack.c.b16 %v1684, %v1684
      %v1705 = vpack.c.b16 %v1685, %v1685
      %v1706 = vpack.c.b16 %v1686, %v1686
      %v1707 = vpack.c.b16 %v1687, %v1687
      %vm1728 = vcmask 60416
      %1729 = vst.msk [vmem:[#allocation2] sm:$0xf] %vm1728, %v1688
      %1730 = vst.msk [vmem:[#allocation2 + $0x4] sm:$0xf] %vm1728, %v1689
      %1731 = vst.msk [vmem:[#allocation2 + $0x8] sm:$0xf] %vm1728, %v1690
      %1732 = vst.msk [vmem:[#allocation2 + $0xc] sm:$0xf] %vm1728, %v1691
      %1733 = vst.msk [vmem:[#allocation2 + $0x10] sm:$0xf] %vm1728, %v1692
      %1734 = vst.msk [vmem:[#allocation2 + $0x14] sm:$0xf] %vm1728, %v1693
      %1735 = vst.msk [vmem:[#allocation2 + $0x18] sm:$0xf] %vm1728, %v1694
      %1736 = vst.msk [vmem:[#allocation2 + $0x1c] sm:$0xf] %vm1728, %v1695
      %1737 = vst.msk [vmem:[#allocation2 + $0x20] sm:$0xf] %vm1728, %v1696
      %1738 = vst.msk [vmem:[#allocation2 + $0x24] sm:$0xf] %vm1728, %v1697
      %1739 = vst.msk [vmem:[#allocation2 + $0x28] sm:$0xf] %vm1728, %v1698
      %1740 = vst.msk [vmem:[#allocation2 + $0x2c] sm:$0xf] %vm1728, %v1699
      %1741 = vst.msk [vmem:[#allocation2 + $0x30] sm:$0xf] %vm1728, %v1700
      %1742 = vst.msk [vmem:[#allocation2 + $0x34] sm:$0xf] %vm1728, %v1701
      %1743 = vst.msk [vmem:[#allocation2 + $0x38] sm:$0xf] %vm1728, %v1702
      %1744 = vst.msk [vmem:[#allocation2 + $0x3c] sm:$0xf] %vm1728, %v1703
      %1745 = vst.msk [vmem:[#allocation2 + $0x40] sm:$0xf] %vm1728, %v1704
      %1746 = vst.msk [vmem:[#allocation2 + $0x44] sm:$0xf] %vm1728, %v1705
      %1747 = vst.msk [vmem:[#allocation2 + $0x48] sm:$0xf] %vm1728, %v1706
      %1748 = vst.msk [vmem:[#allocation2 + $0x4c] sm:$0xf] %vm1728, %v1707
      %v1749 = vpack.c.bf16 %v1087, %v1086
      %v1750 = vpack.c.bf16 %v1089, %v1088
      %v1751 = vpack.c.bf16 %v1091, %v1090
      %v1752 = vpack.c.bf16 %v1093, %v1092
      %v1753 = vpack.c.bf16 %v1095, %v1094
      %v1754 = vpack.c.bf16 %v1097, %v1096
      %v1755 = vpack.c.bf16 %v1099, %v1098
      %v1756 = vpack.c.bf16 %v1101, %v1100
      %v1757 = vpack.c.bf16 %v1103, %v1102
      %v1758 = vpack.c.bf16 %v1105, %v1104
      %v1769 = vunpack.c.l.b16 %v1749
      %v1770 = vunpack.c.h.b16 %v1749
      %v1771 = vunpack.c.l.b16 %v1750
      %v1772 = vunpack.c.h.b16 %v1750
      %v1773 = vunpack.c.l.b16 %v1751
      %v1774 = vunpack.c.h.b16 %v1751
      %v1775 = vunpack.c.l.b16 %v1752
      %v1776 = vunpack.c.h.b16 %v1752
      %v1777 = vunpack.c.l.b16 %v1753
      %v1778 = vunpack.c.h.b16 %v1753
      %v1779 = vunpack.c.l.b16 %v1754
      %v1780 = vunpack.c.h.b16 %v1754
      %v1781 = vunpack.c.l.b16 %v1755
      %v1782 = vunpack.c.h.b16 %v1755
      %v1783 = vunpack.c.l.b16 %v1756
      %v1784 = vunpack.c.h.b16 %v1756
      %v1785 = vunpack.c.l.b16 %v1757
      %v1786 = vunpack.c.h.b16 %v1757
      %v1787 = vunpack.c.l.b16 %v1758
      %v1788 = vunpack.c.h.b16 %v1758
      %v1789 = vpack.c.b16 %v1769, %v1769
      %v1790 = vpack.c.b16 %v1770, %v1770
      %v1791 = vpack.c.b16 %v1771, %v1771
      %v1792 = vpack.c.b16 %v1772, %v1772
      %v1793 = vpack.c.b16 %v1773, %v1773
      %v1794 = vpack.c.b16 %v1774, %v1774
      %v1795 = vpack.c.b16 %v1775, %v1775
      %v1796 = vpack.c.b16 %v1776, %v1776
      %v1797 = vpack.c.b16 %v1777, %v1777
      %v1798 = vpack.c.b16 %v1778, %v1778
      %v1799 = vpack.c.b16 %v1779, %v1779
      %v1800 = vpack.c.b16 %v1780, %v1780
      %v1801 = vpack.c.b16 %v1781, %v1781
      %v1802 = vpack.c.b16 %v1782, %v1782
      %v1803 = vpack.c.b16 %v1783, %v1783
      %v1804 = vpack.c.b16 %v1784, %v1784
      %v1805 = vpack.c.b16 %v1785, %v1785
      %v1806 = vpack.c.b16 %v1786, %v1786
      %v1807 = vpack.c.b16 %v1787, %v1787
      %v1808 = vpack.c.b16 %v1788, %v1788
      %1809 = vrot.lane.b32.xlu0 %v1789, 8
      %v1810 = vpop.permute.xlu0 %1809
      %1811 = vrot.lane.b32.xlu0 %v1790, 8
      %v1812 = vpop.permute.xlu0 %1811
      %1813 = vrot.lane.b32.xlu0 %v1791, 8
      %v1814 = vpop.permute.xlu0 %1813
      %1815 = vrot.lane.b32.xlu0 %v1792, 8
      %v1816 = vpop.permute.xlu0 %1815
      %1817 = vrot.lane.b32.xlu0 %v1793, 8
      %v1818 = vpop.permute.xlu0 %1817
      %1819 = vrot.lane.b32.xlu0 %v1794, 8
      %v1820 = vpop.permute.xlu0 %1819
      %1821 = vrot.lane.b32.xlu0 %v1795, 8
      %v1822 = vpop.permute.xlu0 %1821
      %1823 = vrot.lane.b32.xlu0 %v1796, 8
      %v1824 = vpop.permute.xlu0 %1823
      %1825 = vrot.lane.b32.xlu0 %v1797, 8
      %v1826 = vpop.permute.xlu0 %1825
      %1827 = vrot.lane.b32.xlu0 %v1798, 8
      %v1828 = vpop.permute.xlu0 %1827
      %1829 = vrot.lane.b32.xlu0 %v1799, 8
      %v1830 = vpop.permute.xlu0 %1829
      %1831 = vrot.lane.b32.xlu0 %v1800, 8
      %v1832 = vpop.permute.xlu0 %1831
      %1833 = vrot.lane.b32.xlu0 %v1801, 8
      %v1834 = vpop.permute.xlu0 %1833
      %1835 = vrot.lane.b32.xlu0 %v1802, 8
      %v1836 = vpop.permute.xlu0 %1835
      %1837 = vrot.lane.b32.xlu0 %v1803, 8
      %v1838 = vpop.permute.xlu0 %1837
      %1839 = vrot.lane.b32.xlu0 %v1804, 8
      %v1840 = vpop.permute.xlu0 %1839
      %1841 = vrot.lane.b32.xlu0 %v1805, 8
      %v1842 = vpop.permute.xlu0 %1841
      %1843 = vrot.lane.b32.xlu0 %v1806, 8
      %v1844 = vpop.permute.xlu0 %1843
      %1845 = vrot.lane.b32.xlu0 %v1807, 8
      %v1846 = vpop.permute.xlu0 %1845
      %1847 = vrot.lane.b32.xlu0 %v1808, 8
      %v1848 = vpop.permute.xlu0 %1847
      %vm1869 = vcmask 126016
      %1870 = vst.msk [vmem:[#allocation2] sm:$0xf] %vm1869, %v1810
      %1871 = vst.msk [vmem:[#allocation2 + $0x4] sm:$0xf] %vm1869, %v1812
      %1872 = vst.msk [vmem:[#allocation2 + $0x8] sm:$0xf] %vm1869, %v1814
      %1873 = vst.msk [vmem:[#allocation2 + $0xc] sm:$0xf] %vm1869, %v1816
      %1874 = vst.msk [vmem:[#allocation2 + $0x10] sm:$0xf] %vm1869, %v1818
      %1875 = vst.msk [vmem:[#allocation2 + $0x14] sm:$0xf] %vm1869, %v1820
      %1876 = vst.msk [vmem:[#allocation2 + $0x18] sm:$0xf] %vm1869, %v1822
      %1877 = vst.msk [vmem:[#allocation2 + $0x1c] sm:$0xf] %vm1869, %v1824
      %1878 = vst.msk [vmem:[#allocation2 + $0x20] sm:$0xf] %vm1869, %v1826
      %1879 = vst.msk [vmem:[#allocation2 + $0x24] sm:$0xf] %vm1869, %v1828
      %1880 = vst.msk [vmem:[#allocation2 + $0x28] sm:$0xf] %vm1869, %v1830
      %1881 = vst.msk [vmem:[#allocation2 + $0x2c] sm:$0xf] %vm1869, %v1832
      %1882 = vst.msk [vmem:[#allocation2 + $0x30] sm:$0xf] %vm1869, %v1834
      %1883 = vst.msk [vmem:[#allocation2 + $0x34] sm:$0xf] %vm1869, %v1836
      %1884 = vst.msk [vmem:[#allocation2 + $0x38] sm:$0xf] %vm1869, %v1838
      %1885 = vst.msk [vmem:[#allocation2 + $0x3c] sm:$0xf] %vm1869, %v1840
      %1886 = vst.msk [vmem:[#allocation2 + $0x40] sm:$0xf] %vm1869, %v1842
      %1887 = vst.msk [vmem:[#allocation2 + $0x44] sm:$0xf] %vm1869, %v1844
      %1888 = vst.msk [vmem:[#allocation2 + $0x48] sm:$0xf] %vm1869, %v1846
      %1889 = vst.msk [vmem:[#allocation2 + $0x4c] sm:$0xf] %vm1869, %v1848
      %v1890 = vpack.c.bf16 %v1629, %v1628
      %v1891 = vpack.c.bf16 %v1631, %v1630
      %v1892 = vpack.c.bf16 %v1633, %v1632
      %v1893 = vpack.c.bf16 %v1635, %v1634
      %v1894 = vpack.c.bf16 %v1637, %v1636
      %v1895 = vpack.c.bf16 %v1639, %v1638
      %v1896 = vpack.c.bf16 %v1641, %v1640
      %v1897 = vpack.c.bf16 %v1643, %v1642
      %v1898 = vpack.c.bf16 %v1645, %v1644
      %v1899 = vpack.c.bf16 %v1647, %v1646
      %v1910 = vunpack.c.l.b16 %v1890
      %v1911 = vunpack.c.h.b16 %v1890
      %v1912 = vunpack.c.l.b16 %v1891
      %v1913 = vunpack.c.h.b16 %v1891
      %v1914 = vunpack.c.l.b16 %v1892
      %v1915 = vunpack.c.h.b16 %v1892
      %v1916 = vunpack.c.l.b16 %v1893
      %v1917 = vunpack.c.h.b16 %v1893
      %v1918 = vunpack.c.l.b16 %v1894
      %v1919 = vunpack.c.h.b16 %v1894
      %v1920 = vunpack.c.l.b16 %v1895
      %v1921 = vunpack.c.h.b16 %v1895
      %v1922 = vunpack.c.l.b16 %v1896
      %v1923 = vunpack.c.h.b16 %v1896
      %v1924 = vunpack.c.l.b16 %v1897
      %v1925 = vunpack.c.h.b16 %v1897
      %v1926 = vunpack.c.l.b16 %v1898
      %v1927 = vunpack.c.h.b16 %v1898
      %v1928 = vunpack.c.l.b16 %v1899
      %v1929 = vunpack.c.h.b16 %v1899
      %v1930 = vpack.c.b16 %v1910, %v1910
      %v1931 = vpack.c.b16 %v1911, %v1911
      %v1932 = vpack.c.b16 %v1912, %v1912
      %v1933 = vpack.c.b16 %v1913, %v1913
      %v1934 = vpack.c.b16 %v1914, %v1914
      %v1935 = vpack.c.b16 %v1915, %v1915
      %v1936 = vpack.c.b16 %v1916, %v1916
      %v1937 = vpack.c.b16 %v1917, %v1917
      %v1938 = vpack.c.b16 %v1918, %v1918
      %v1939 = vpack.c.b16 %v1919, %v1919
      %v1940 = vpack.c.b16 %v1920, %v1920
      %v1941 = vpack.c.b16 %v1921, %v1921
      %v1942 = vpack.c.b16 %v1922, %v1922
      %v1943 = vpack.c.b16 %v1923, %v1923
      %v1944 = vpack.c.b16 %v1924, %v1924
      %v1945 = vpack.c.b16 %v1925, %v1925
      %v1946 = vpack.c.b16 %v1926, %v1926
      %v1947 = vpack.c.b16 %v1927, %v1927
      %v1948 = vpack.c.b16 %v1928, %v1928
      %v1949 = vpack.c.b16 %v1929, %v1929
      %1950 = vrot.lane.b32.xlu0 %v1930, 16
      %v1951 = vpop.permute.xlu0 %1950
      %1952 = vrot.lane.b32.xlu0 %v1931, 16
      %v1953 = vpop.permute.xlu0 %1952
      %1954 = vrot.lane.b32.xlu0 %v1932, 16
      %v1955 = vpop.permute.xlu0 %1954
      %1956 = vrot.lane.b32.xlu0 %v1933, 16
      %v1957 = vpop.permute.xlu0 %1956
      %1958 = vrot.lane.b32.xlu0 %v1934, 16
      %v1959 = vpop.permute.xlu0 %1958
      %1960 = vrot.lane.b32.xlu0 %v1935, 16
      %v1961 = vpop.permute.xlu0 %1960
      %1962 = vrot.lane.b32.xlu0 %v1936, 16
      %v1963 = vpop.permute.xlu0 %1962
      %1964 = vrot.lane.b32.xlu0 %v1937, 16
      %v1965 = vpop.permute.xlu0 %1964
      %1966 = vrot.lane.b32.xlu0 %v1938, 16
      %v1967 = vpop.permute.xlu0 %1966
      %1968 = vrot.lane.b32.xlu0 %v1939, 16
      %v1969 = vpop.permute.xlu0 %1968
      %1970 = vrot.lane.b32.xlu0 %v1940, 16
      %v1971 = vpop.permute.xlu0 %1970
      %1972 = vrot.lane.b32.xlu0 %v1941, 16
      %v1973 = vpop.permute.xlu0 %1972
      %1974 = vrot.lane.b32.xlu0 %v1942, 16
      %v1975 = vpop.permute.xlu0 %1974
      %1976 = vrot.lane.b32.xlu0 %v1943, 16
      %v1977 = vpop.permute.xlu0 %1976
      %1978 = vrot.lane.b32.xlu0 %v1944, 16
      %v1979 = vpop.permute.xlu0 %1978
      %1980 = vrot.lane.b32.xlu0 %v1945, 16
      %v1981 = vpop.permute.xlu0 %1980
      %1982 = vrot.lane.b32.xlu0 %v1946, 16
      %v1983 = vpop.permute.xlu0 %1982
      %1984 = vrot.lane.b32.xlu0 %v1947, 16
      %v1985 = vpop.permute.xlu0 %1984
      %1986 = vrot.lane.b32.xlu0 %v1948, 16
      %v1987 = vpop.permute.xlu0 %1986
      %1988 = vrot.lane.b32.xlu0 %v1949, 16
      %v1989 = vpop.permute.xlu0 %1988
      %vm2010 = vcmask 191616
      %2011 = vst.msk [vmem:[#allocation2] sm:$0xf] %vm2010, %v1951
      %2012 = vst.msk [vmem:[#allocation2 + $0x4] sm:$0xf] %vm2010, %v1953
      %2013 = vst.msk [vmem:[#allocation2 + $0x8] sm:$0xf] %vm2010, %v1955
      %2014 = vst.msk [vmem:[#allocation2 + $0xc] sm:$0xf] %vm2010, %v1957
      %2015 = vst.msk [vmem:[#allocation2 + $0x10] sm:$0xf] %vm2010, %v1959
      %2016 = vst.msk [vmem:[#allocation2 + $0x14] sm:$0xf] %vm2010, %v1961
      %2017 = vst.msk [vmem:[#allocation2 + $0x18] sm:$0xf] %vm2010, %v1963
      %2018 = vst.msk [vmem:[#allocation2 + $0x1c] sm:$0xf] %vm2010, %v1965
      %2019 = vst.msk [vmem:[#allocation2 + $0x20] sm:$0xf] %vm2010, %v1967
      %2020 = vst.msk [vmem:[#allocation2 + $0x24] sm:$0xf] %vm2010, %v1969
      %2021 = vst.msk [vmem:[#allocation2 + $0x28] sm:$0xf] %vm2010, %v1971
      %2022 = vst.msk [vmem:[#allocation2 + $0x2c] sm:$0xf] %vm2010, %v1973
      %2023 = vst.msk [vmem:[#allocation2 + $0x30] sm:$0xf] %vm2010, %v1975
      %2024 = vst.msk [vmem:[#allocation2 + $0x34] sm:$0xf] %vm2010, %v1977
      %2025 = vst.msk [vmem:[#allocation2 + $0x38] sm:$0xf] %vm2010, %v1979
      %2026 = vst.msk [vmem:[#allocation2 + $0x3c] sm:$0xf] %vm2010, %v1981
      %2027 = vst.msk [vmem:[#allocation2 + $0x40] sm:$0xf] %vm2010, %v1983
      %2028 = vst.msk [vmem:[#allocation2 + $0x44] sm:$0xf] %vm2010, %v1985
      %2029 = vst.msk [vmem:[#allocation2 + $0x48] sm:$0xf] %vm2010, %v1987
      %2030 = vst.msk [vmem:[#allocation2 + $0x4c] sm:$0xf] %vm2010, %v1989
      %v2031 = vld [vmem:[#allocation2] sm:$0xf]
      %v2032 = vld [vmem:[#allocation2 + $0x4] sm:$0xf]
      %v2033 = vld [vmem:[#allocation2 + $0x8] sm:$0xf]
      %v2034 = vld [vmem:[#allocation2 + $0xc] sm:$0xf]
      %v2035 = vld [vmem:[#allocation2 + $0x10] sm:$0xf]
      %v2036 = vld [vmem:[#allocation2 + $0x14] sm:$0xf]
      %v2037 = vld [vmem:[#allocation2 + $0x18] sm:$0xf]
      %v2038 = vld [vmem:[#allocation2 + $0x1c] sm:$0xf]
      %v2039 = vld [vmem:[#allocation2 + $0x20] sm:$0xf]
      %v2040 = vld [vmem:[#allocation2 + $0x24] sm:$0xf]
      %v2041 = vld [vmem:[#allocation2 + $0x28] sm:$0xf]
      %v2042 = vld [vmem:[#allocation2 + $0x2c] sm:$0xf]
      %v2043 = vld [vmem:[#allocation2 + $0x30] sm:$0xf]
      %v2044 = vld [vmem:[#allocation2 + $0x34] sm:$0xf]
      %v2045 = vld [vmem:[#allocation2 + $0x38] sm:$0xf]
      %v2046 = vld [vmem:[#allocation2 + $0x3c] sm:$0xf]
      %v2047 = vld [vmem:[%s6] sm:$0xf]
      %v2048 = vld [vmem:[%s6 + $0x4] sm:$0xf]
      %v2049 = vld [vmem:[%s6 + $0x8] sm:$0xf]
      %v2066 = vunpack.c.l.b16 %v2031
      %v2067 = vunpack.c.l.b16 %v2032
      %v2068 = vunpack.c.l.b16 %v2033
      %v2069 = vunpack.c.l.b16 %v2034
      %v2070 = vunpack.c.l.b16 %v2035
      %v2071 = vunpack.c.l.b16 %v2036
      %v2072 = vunpack.c.l.b16 %v2037
      %v2073 = vunpack.c.l.b16 %v2038
      %v2074 = vunpack.c.l.b16 %v2039
      %v2075 = vunpack.c.l.b16 %v2040
      %v2076 = vunpack.c.l.b16 %v2041
      %v2077 = vunpack.c.l.b16 %v2042
      %v2078 = vunpack.c.l.b16 %v2043
      %v2079 = vunpack.c.l.b16 %v2044
      %v2080 = vunpack.c.l.b16 %v2045
      %v2081 = vunpack.c.l.b16 %v2046
      %v2082 = vpack.c.b16 %v2067, %v2066
      %v2083 = vpack.c.b16 %v2069, %v2068
      %v2084 = vpack.c.b16 %v2071, %v2070
      %v2085 = vpack.c.b16 %v2073, %v2072
      %v2086 = vpack.c.b16 %v2075, %v2074
      %v2087 = vpack.c.b16 %v2077, %v2076
      %v2088 = vpack.c.b16 %v2079, %v2078
      %v2089 = vpack.c.b16 %v2081, %v2080
      %v2093 = vunpack.c.l.b16 %v2047
      %v2094 = vunpack.c.l.b16 %v2048
      %v2095 = vunpack.c.l.b16 %v2049
      %v2096 = vpack.c.b16 %v2094, %v2093
      %v2097 = vpack.c.b16 %v2095, %v2095
      %vm2099 = vcmask 195584
      %v2101 = vsel %vm2099, %v2082, 0
      %v2104 = vsel %vm2099, %v2083, 0
      %v2107 = vsel %vm2099, %v2084, 0
      %v2110 = vsel %vm2099, %v2085, 0
      %v2113 = vsel %vm2099, %v2086, 0
      %v2116 = vsel %vm2099, %v2087, 0
      %v2119 = vsel %vm2099, %v2088, 0
      %v2122 = vsel %vm2099, %v2089, 0
      %vm2124 = vcmask 1043456
      %v2126 = vsel %vm2124, %v2097, 0
      %2128 = vmatprep.subr.bf16.mxu0 0
      %2129 = vmatpush1.bf16.msra.mxu0 0
      %2130 = vmatprep.subr.bf16.mxu0 0
      %2131 = vmatpush1.bf16.msra.mxu0 0
      %2132 = vmatprep.subr.bf16.mxu0 0
      %2133 = vmatpush1.bf16.msra.mxu0 0
      %2134 = vmatprep.subr.bf16.mxu0 0
      %2135 = vmatpush1.bf16.msra.mxu0 0
      %2136 = vmatprep.subr.bf16.mxu0 0
      %2137 = vmatpush1.bf16.msra.mxu0 0
      %2138 = vmatprep.subr.bf16.mxu0 0
      %2139 = vmatpush1.bf16.msra.mxu0 0
      %2140 = vmatprep.subr.bf16.mxu0 0
      %2141 = vmatpush1.bf16.msra.mxu0 %v2126
      %2142 = vmatprep.subr.bf16.mxu0 0
      %2143 = vmatpush1.bf16.msra.mxu0 %v2096
      %2144 = vmatprep.subr.bf16.mxu0 0
      %2145 = vmatpush2.bf16.msra.mxu0 0
      %2146 = vmatprep.subr.bf16.mxu0 0
      %2147 = vmatpush2.bf16.msra.mxu0 0
      %2148 = vmatprep.subr.bf16.mxu0 0
      %2149 = vmatpush2.bf16.msra.mxu0 0
      %2150 = vmatprep.subr.bf16.mxu0 0
      %2151 = vmatpush2.bf16.msra.mxu0 0
      %2152 = vmatprep.subr.bf16.mxu0 0
      %2153 = vmatpush2.bf16.msra.mxu0 0
      %2154 = vmatprep.subr.bf16.mxu0 0
      %2155 = vmatpush2.bf16.msra.mxu0 0
      %2156 = vmatprep.subr.bf16.mxu0 0
      %2157 = vmatpush2.bf16.msra.mxu0 0
      %2158 = vmatprep.subr.bf16.mxu0 0
      %2159 = vmatpush2.bf16.msra.mxu0 0
      %2160 = vmatprep.mubr.bf16.mxu0 0
      %2161 = vmatmul.mubr.bf16.gmra.mxu0 %v2101
      %v2162 = vpop.f32.mrf.mxu0
      %v2163 = vadd.f32 0.0, %v2162
      %v2164 = vpop.f32.mrf.mxu0
      %v2165 = vpop.f32.mrf.mxu0
      %v2166 = vadd.f32 0.0, %v2165
      %v2167 = vpop.f32.mrf.mxu0
      %2168 = vmatprep.mubr.bf16.mxu0 0
      %2169 = vmatmul.mubr.bf16.gmra.mxu0 %v2104
      %v2170 = vpop.f32.mrf.mxu0
      %v2171 = vadd.f32 0.0, %v2170
      %v2172 = vpop.f32.mrf.mxu0
      %v2173 = vpop.f32.mrf.mxu0
      %v2174 = vadd.f32 0.0, %v2173
      %v2175 = vpop.f32.mrf.mxu0
      %2176 = vmatprep.mubr.bf16.mxu0 0
      %2177 = vmatmul.mubr.bf16.gmra.mxu0 %v2107
      %v2178 = vpop.f32.mrf.mxu0
      %v2179 = vadd.f32 0.0, %v2178
      %v2180 = vpop.f32.mrf.mxu0
      %v2181 = vpop.f32.mrf.mxu0
      %v2182 = vadd.f32 0.0, %v2181
      %v2183 = vpop.f32.mrf.mxu0
      %2184 = vmatprep.mubr.bf16.mxu0 0
      %2185 = vmatmul.mubr.bf16.gmra.mxu0 %v2110
      %v2186 = vpop.f32.mrf.mxu0
      %v2187 = vadd.f32 0.0, %v2186
      %v2188 = vpop.f32.mrf.mxu0
      %v2189 = vpop.f32.mrf.mxu0
      %v2190 = vadd.f32 0.0, %v2189
      %v2191 = vpop.f32.mrf.mxu0
      %2192 = vmatprep.mubr.bf16.mxu0 0
      %2193 = vmatmul.mubr.bf16.gmra.mxu0 %v2113
      %v2194 = vpop.f32.mrf.mxu0
      %v2195 = vadd.f32 0.0, %v2194
      %v2196 = vpop.f32.mrf.mxu0
      %v2197 = vpop.f32.mrf.mxu0
      %v2198 = vadd.f32 0.0, %v2197
      %v2199 = vpop.f32.mrf.mxu0
      %2200 = vmatprep.mubr.bf16.mxu0 0
      %2201 = vmatmul.mubr.bf16.gmra.mxu0 %v2116
      %v2202 = vpop.f32.mrf.mxu0
      %v2203 = vadd.f32 0.0, %v2202
      %v2204 = vpop.f32.mrf.mxu0
      %v2205 = vpop.f32.mrf.mxu0
      %v2206 = vadd.f32 0.0, %v2205
      %v2207 = vpop.f32.mrf.mxu0
      %2208 = vmatprep.mubr.bf16.mxu0 0
      %2209 = vmatmul.mubr.bf16.gmra.mxu0 %v2119
      %v2210 = vpop.f32.mrf.mxu0
      %v2211 = vadd.f32 0.0, %v2210
      %v2212 = vpop.f32.mrf.mxu0
      %v2213 = vpop.f32.mrf.mxu0
      %v2214 = vadd.f32 0.0, %v2213
      %v2215 = vpop.f32.mrf.mxu0
      %2216 = vmatprep.mubr.bf16.mxu0 0
      %2217 = vmatmul.mubr.bf16.gmra.mxu0 %v2122
      %v2218 = vpop.f32.mrf.mxu0
      %v2219 = vadd.f32 0.0, %v2218
      %v2220 = vpop.f32.mrf.mxu0
      %v2221 = vpop.f32.mrf.mxu0
      %v2222 = vadd.f32 0.0, %v2221
      %v2223 = vpop.f32.mrf.mxu0
      %2224 = vdwg.mxu0
      %2225 = vst.msk [vmem:[#allocation3] sm:$0xff] %vm579, %v2163
      %2226 = vst.msk [vmem:[#allocation3 + $0x8] sm:$0xff] %vm579, %v2166
      %2227 = vst.msk [vmem:[#allocation3 + $0x10] sm:$0xff] %vm579, %v2171
      %2228 = vst.msk [vmem:[#allocation3 + $0x18] sm:$0xff] %vm579, %v2174
      %2229 = vst.msk [vmem:[#allocation3 + $0x20] sm:$0xff] %vm579, %v2179
      %2230 = vst.msk [vmem:[#allocation3 + $0x28] sm:$0xff] %vm579, %v2182
      %2231 = vst.msk [vmem:[#allocation3 + $0x30] sm:$0xff] %vm579, %v2187
      %2232 = vst.msk [vmem:[#allocation3 + $0x38] sm:$0xff] %vm579, %v2190
      %2233 = vst.msk [vmem:[#allocation3 + $0x40] sm:$0xff] %vm579, %v2195
      %2234 = vst.msk [vmem:[#allocation3 + $0x48] sm:$0xff] %vm579, %v2198
      %2235 = vst.msk [vmem:[#allocation3 + $0x50] sm:$0xff] %vm579, %v2203
      %2236 = vst.msk [vmem:[#allocation3 + $0x58] sm:$0xff] %vm579, %v2206
      %2237 = vst.msk [vmem:[#allocation3 + $0x60] sm:$0xff] %vm579, %v2211
      %2238 = vst.msk [vmem:[#allocation3 + $0x68] sm:$0xff] %vm579, %v2214
      %2239 = vst.msk [vmem:[#allocation3 + $0x70] sm:$0xff] %vm579, %v2219
      %2240 = vst.msk [vmem:[#allocation3 + $0x78] sm:$0xff] %vm579, %v2222
      %v2241 = vld [vmem:[#allocation2 + $0x8] sm:$0xf]
      %v2242 = vld [vmem:[#allocation2 + $0xc] sm:$0xf]
      %v2243 = vld [vmem:[#allocation2 + $0x10] sm:$0xf]
      %v2244 = vld [vmem:[#allocation2 + $0x14] sm:$0xf]
      %v2245 = vld [vmem:[#allocation2 + $0x18] sm:$0xf]
      %v2246 = vld [vmem:[#allocation2 + $0x1c] sm:$0xf]
      %v2247 = vld [vmem:[#allocation2 + $0x20] sm:$0xf]
      %v2248 = vld [vmem:[#allocation2 + $0x24] sm:$0xf]
      %v2249 = vld [vmem:[#allocation2 + $0x28] sm:$0xf]
      %v2250 = vld [vmem:[#allocation2 + $0x2c] sm:$0xf]
      %v2251 = vld [vmem:[#allocation2 + $0x30] sm:$0xf]
      %v2252 = vld [vmem:[#allocation2 + $0x34] sm:$0xf]
      %v2253 = vld [vmem:[#allocation2 + $0x38] sm:$0xf]
      %v2254 = vld [vmem:[#allocation2 + $0x3c] sm:$0xf]
      %v2255 = vld [vmem:[#allocation2 + $0x40] sm:$0xf]
      %v2256 = vld [vmem:[#allocation2 + $0x44] sm:$0xf]
      %s2257 = scalar_lea.vmem %s6, 12
      %v2258 = vld [vmem:[%s2257] sm:$0xf]
      %v2259 = vld [vmem:[%s2257 + $0x4] sm:$0xf]
      %v2260 = vld [vmem:[%s2257 + $0x8] sm:$0xf]
      %v2277 = vunpack.c.l.b16 %v2241
      %v2278 = vunpack.c.l.b16 %v2242
      %v2279 = vunpack.c.l.b16 %v2243
      %v2280 = vunpack.c.l.b16 %v2244
      %v2281 = vunpack.c.l.b16 %v2245
      %v2282 = vunpack.c.l.b16 %v2246
      %v2283 = vunpack.c.l.b16 %v2247
      %v2284 = vunpack.c.l.b16 %v2248
      %v2285 = vunpack.c.l.b16 %v2249
      %v2286 = vunpack.c.l.b16 %v2250
      %v2287 = vunpack.c.l.b16 %v2251
      %v2288 = vunpack.c.l.b16 %v2252
      %v2289 = vunpack.c.l.b16 %v2253
      %v2290 = vunpack.c.l.b16 %v2254
      %v2291 = vunpack.c.l.b16 %v2255
      %v2292 = vunpack.c.l.b16 %v2256
      %v2293 = vpack.c.b16 %v2278, %v2277
      %v2294 = vpack.c.b16 %v2280, %v2279
      %v2295 = vpack.c.b16 %v2282, %v2281
      %v2296 = vpack.c.b16 %v2284, %v2283
      %v2297 = vpack.c.b16 %v2286, %v2285
      %v2298 = vpack.c.b16 %v2288, %v2287
      %v2299 = vpack.c.b16 %v2290, %v2289
      %v2300 = vpack.c.b16 %v2292, %v2291
      %v2304 = vunpack.c.l.b16 %v2258
      %v2305 = vunpack.c.l.b16 %v2259
      %v2306 = vunpack.c.l.b16 %v2260
      %v2307 = vpack.c.b16 %v2305, %v2304
      %v2308 = vpack.c.b16 %v2306, %v2306
      %v2311 = vsel %vm2099, %v2293, 0
      %v2314 = vsel %vm2099, %v2294, 0
      %v2317 = vsel %vm2099, %v2295, 0
      %v2320 = vsel %vm2099, %v2296, 0
      %v2323 = vsel %vm2099, %v2297, 0
      %v2326 = vsel %vm2099, %v2298, 0
      %v2329 = vsel %vm2099, %v2299, 0
      %v2332 = vsel %vm2099, %v2300, 0
      %v2335 = vsel %vm2124, %v2308, 0
      %2337 = vmatprep.subr.bf16.mxu0 0
      %2338 = vmatpush1.bf16.msra.mxu0 0
      %2339 = vmatprep.subr.bf16.mxu0 0
      %2340 = vmatpush1.bf16.msra.mxu0 0
      %2341 = vmatprep.subr.bf16.mxu0 0
      %2342 = vmatpush1.bf16.msra.mxu0 0
      %2343 = vmatprep.subr.bf16.mxu0 0
      %2344 = vmatpush1.bf16.msra.mxu0 0
      %2345 = vmatprep.subr.bf16.mxu0 0
      %2346 = vmatpush1.bf16.msra.mxu0 0
      %2347 = vmatprep.subr.bf16.mxu0 0
      %2348 = vmatpush1.bf16.msra.mxu0 0
      %2349 = vmatprep.subr.bf16.mxu0 0
      %2350 = vmatpush1.bf16.msra.mxu0 %v2335
      %2351 = vmatprep.subr.bf16.mxu0 0
      %2352 = vmatpush1.bf16.msra.mxu0 %v2307
      %2353 = vmatprep.subr.bf16.mxu0 0
      %2354 = vmatpush2.bf16.msra.mxu0 0
      %2355 = vmatprep.subr.bf16.mxu0 0
      %2356 = vmatpush2.bf16.msra.mxu0 0
      %2357 = vmatprep.subr.bf16.mxu0 0
      %2358 = vmatpush2.bf16.msra.mxu0 0
      %2359 = vmatprep.subr.bf16.mxu0 0
      %2360 = vmatpush2.bf16.msra.mxu0 0
      %2361 = vmatprep.subr.bf16.mxu0 0
      %2362 = vmatpush2.bf16.msra.mxu0 0
      %2363 = vmatprep.subr.bf16.mxu0 0
      %2364 = vmatpush2.bf16.msra.mxu0 0
      %2365 = vmatprep.subr.bf16.mxu0 0
      %2366 = vmatpush2.bf16.msra.mxu0 0
      %2367 = vmatprep.subr.bf16.mxu0 0
      %2368 = vmatpush2.bf16.msra.mxu0 0
      %2369 = vmatprep.mubr.bf16.mxu0 0
      %2370 = vmatmul.mubr.bf16.gmra.mxu0 %v2311
      %v2371 = vpop.f32.mrf.mxu0
      %v2372 = vadd.f32 0.0, %v2371
      %v2373 = vpop.f32.mrf.mxu0
      %v2374 = vpop.f32.mrf.mxu0
      %v2375 = vadd.f32 0.0, %v2374
      %v2376 = vpop.f32.mrf.mxu0
      %2377 = vmatprep.mubr.bf16.mxu0 0
      %2378 = vmatmul.mubr.bf16.gmra.mxu0 %v2314
      %v2379 = vpop.f32.mrf.mxu0
      %v2380 = vadd.f32 0.0, %v2379
      %v2381 = vpop.f32.mrf.mxu0
      %v2382 = vpop.f32.mrf.mxu0
      %v2383 = vadd.f32 0.0, %v2382
      %v2384 = vpop.f32.mrf.mxu0
      %2385 = vmatprep.mubr.bf16.mxu0 0
      %2386 = vmatmul.mubr.bf16.gmra.mxu0 %v2317
      %v2387 = vpop.f32.mrf.mxu0
      %v2388 = vadd.f32 0.0, %v2387
      %v2389 = vpop.f32.mrf.mxu0
      %v2390 = vpop.f32.mrf.mxu0
      %v2391 = vadd.f32 0.0, %v2390
      %v2392 = vpop.f32.mrf.mxu0
      %2393 = vmatprep.mubr.bf16.mxu0 0
      %2394 = vmatmul.mubr.bf16.gmra.mxu0 %v2320
      %v2395 = vpop.f32.mrf.mxu0
      %v2396 = vadd.f32 0.0, %v2395
      %v2397 = vpop.f32.mrf.mxu0
      %v2398 = vpop.f32.mrf.mxu0
      %v2399 = vadd.f32 0.0, %v2398
      %v2400 = vpop.f32.mrf.mxu0
      %2401 = vmatprep.mubr.bf16.mxu0 0
      %2402 = vmatmul.mubr.bf16.gmra.mxu0 %v2323
      %v2403 = vpop.f32.mrf.mxu0
      %v2404 = vadd.f32 0.0, %v2403
      %v2405 = vpop.f32.mrf.mxu0
      %v2406 = vpop.f32.mrf.mxu0
      %v2407 = vadd.f32 0.0, %v2406
      %v2408 = vpop.f32.mrf.mxu0
      %2409 = vmatprep.mubr.bf16.mxu0 0
      %2410 = vmatmul.mubr.bf16.gmra.mxu0 %v2326
      %v2411 = vpop.f32.mrf.mxu0
      %v2412 = vadd.f32 0.0, %v2411
      %v2413 = vpop.f32.mrf.mxu0
      %v2414 = vpop.f32.mrf.mxu0
      %v2415 = vadd.f32 0.0, %v2414
      %v2416 = vpop.f32.mrf.mxu0
      %2417 = vmatprep.mubr.bf16.mxu0 0
      %2418 = vmatmul.mubr.bf16.gmra.mxu0 %v2329
      %v2419 = vpop.f32.mrf.mxu0
      %v2420 = vadd.f32 0.0, %v2419
      %v2421 = vpop.f32.mrf.mxu0
      %v2422 = vpop.f32.mrf.mxu0
      %v2423 = vadd.f32 0.0, %v2422
      %v2424 = vpop.f32.mrf.mxu0
      %2425 = vmatprep.mubr.bf16.mxu0 0
      %2426 = vmatmul.mubr.bf16.gmra.mxu0 %v2332
      %v2427 = vpop.f32.mrf.mxu0
      %v2428 = vadd.f32 0.0, %v2427
      %v2429 = vpop.f32.mrf.mxu0
      %v2430 = vpop.f32.mrf.mxu0
      %v2431 = vadd.f32 0.0, %v2430
      %v2432 = vpop.f32.mrf.mxu0
      %2433 = vdwg.mxu0
      %v2434 = vld [vmem:[#allocation3] sm:$0xff]
      %v2435 = vld [vmem:[#allocation3 + $0x8] sm:$0xff]
      %v2436 = vld [vmem:[#allocation3 + $0x10] sm:$0xff]
      %v2437 = vld [vmem:[#allocation3 + $0x18] sm:$0xff]
      %v2438 = vld [vmem:[#allocation3 + $0x20] sm:$0xff]
      %v2439 = vld [vmem:[#allocation3 + $0x28] sm:$0xff]
      %v2440 = vld [vmem:[#allocation3 + $0x30] sm:$0xff]
      %v2441 = vld [vmem:[#allocation3 + $0x38] sm:$0xff]
      %v2442 = vld [vmem:[#allocation3 + $0x40] sm:$0xff]
      %v2443 = vld [vmem:[#allocation3 + $0x48] sm:$0xff]
      %v2444 = vld [vmem:[#allocation3 + $0x50] sm:$0xff]
      %v2445 = vld [vmem:[#allocation3 + $0x58] sm:$0xff]
      %v2446 = vld [vmem:[#allocation3 + $0x60] sm:$0xff]
      %v2447 = vld [vmem:[#allocation3 + $0x68] sm:$0xff]
      %v2448 = vld [vmem:[#allocation3 + $0x70] sm:$0xff]
      %v2449 = vld [vmem:[#allocation3 + $0x78] sm:$0xff]
      %v2450 = vadd.f32 %v2434, %v2372
      %v2451 = vadd.f32 %v2435, %v2375
      %v2452 = vadd.f32 %v2436, %v2380
      %v2453 = vadd.f32 %v2437, %v2383
      %v2454 = vadd.f32 %v2438, %v2388
      %v2455 = vadd.f32 %v2439, %v2391
      %v2456 = vadd.f32 %v2440, %v2396
      %v2457 = vadd.f32 %v2441, %v2399
      %v2458 = vadd.f32 %v2442, %v2404
      %v2459 = vadd.f32 %v2443, %v2407
      %v2460 = vadd.f32 %v2444, %v2412
      %v2461 = vadd.f32 %v2445, %v2415
      %v2462 = vadd.f32 %v2446, %v2420
      %v2463 = vadd.f32 %v2447, %v2423
      %v2464 = vadd.f32 %v2448, %v2428
      %v2465 = vadd.f32 %v2449, %v2431
      %2466 = vst.msk [vmem:[#allocation3] sm:$0xff] %vm579, %v2450
      %2467 = vst.msk [vmem:[#allocation3 + $0x8] sm:$0xff] %vm579, %v2451
      %2468 = vst.msk [vmem:[#allocation3 + $0x10] sm:$0xff] %vm579, %v2452
      %2469 = vst.msk [vmem:[#allocation3 + $0x18] sm:$0xff] %vm579, %v2453
      %2470 = vst.msk [vmem:[#allocation3 + $0x20] sm:$0xff] %vm579, %v2454
      %2471 = vst.msk [vmem:[#allocation3 + $0x28] sm:$0xff] %vm579, %v2455
      %2472 = vst.msk [vmem:[#allocation3 + $0x30] sm:$0xff] %vm579, %v2456
      %2473 = vst.msk [vmem:[#allocation3 + $0x38] sm:$0xff] %vm579, %v2457
      %2474 = vst.msk [vmem:[#allocation3 + $0x40] sm:$0xff] %vm579, %v2458
      %2475 = vst.msk [vmem:[#allocation3 + $0x48] sm:$0xff] %vm579, %v2459
      %2476 = vst.msk [vmem:[#allocation3 + $0x50] sm:$0xff] %vm579, %v2460
      %2477 = vst.msk [vmem:[#allocation3 + $0x58] sm:$0xff] %vm579, %v2461
      %2478 = vst.msk [vmem:[#allocation3 + $0x60] sm:$0xff] %vm579, %v2462
      %2479 = vst.msk [vmem:[#allocation3 + $0x68] sm:$0xff] %vm579, %v2463
      %2480 = vst.msk [vmem:[#allocation3 + $0x70] sm:$0xff] %vm579, %v2464
      %2481 = vst.msk [vmem:[#allocation3 + $0x78] sm:$0xff] %vm579, %v2465
      %v2482 = vld [vmem:[#allocation2 + $0x10] sm:$0xf]
      %v2483 = vld [vmem:[#allocation2 + $0x14] sm:$0xf]
      %v2484 = vld [vmem:[#allocation2 + $0x18] sm:$0xf]
      %v2485 = vld [vmem:[#allocation2 + $0x1c] sm:$0xf]
      %v2486 = vld [vmem:[#allocation2 + $0x20] sm:$0xf]
      %v2487 = vld [vmem:[#allocation2 + $0x24] sm:$0xf]
      %v2488 = vld [vmem:[#allocation2 + $0x28] sm:$0xf]
      %v2489 = vld [vmem:[#allocation2 + $0x2c] sm:$0xf]
      %v2490 = vld [vmem:[#allocation2 + $0x30] sm:$0xf]
      %v2491 = vld [vmem:[#allocation2 + $0x34] sm:$0xf]
      %v2492 = vld [vmem:[#allocation2 + $0x38] sm:$0xf]
      %v2493 = vld [vmem:[#allocation2 + $0x3c] sm:$0xf]
      %v2494 = vld [vmem:[#allocation2 + $0x40] sm:$0xf]
      %v2495 = vld [vmem:[#allocation2 + $0x44] sm:$0xf]
      %v2496 = vld [vmem:[#allocation2 + $0x48] sm:$0xf]
      %v2497 = vld [vmem:[#allocation2 + $0x4c] sm:$0xf]
      %s2498 = scalar_lea.vmem %s6, 24
      %v2499 = vld [vmem:[%s2498] sm:$0xf]
      %v2500 = vld [vmem:[%s2498 + $0x4] sm:$0xf]
      %v2501 = vld [vmem:[%s2498 + $0x8] sm:$0xf]
      %v2518 = vunpack.c.l.b16 %v2482
      %v2519 = vunpack.c.l.b16 %v2483
      %v2520 = vunpack.c.l.b16 %v2484
      %v2521 = vunpack.c.l.b16 %v2485
      %v2522 = vunpack.c.l.b16 %v2486
      %v2523 = vunpack.c.l.b16 %v2487
      %v2524 = vunpack.c.l.b16 %v2488
      %v2525 = vunpack.c.l.b16 %v2489
      %v2526 = vunpack.c.l.b16 %v2490
      %v2527 = vunpack.c.l.b16 %v2491
      %v2528 = vunpack.c.l.b16 %v2492
      %v2529 = vunpack.c.l.b16 %v2493
      %v2530 = vunpack.c.l.b16 %v2494
      %v2531 = vunpack.c.l.b16 %v2495
      %v2532 = vunpack.c.l.b16 %v2496
      %v2533 = vunpack.c.l.b16 %v2497
      %v2534 = vpack.c.b16 %v2519, %v2518
      %v2535 = vpack.c.b16 %v2521, %v2520
      %v2536 = vpack.c.b16 %v2523, %v2522
      %v2537 = vpack.c.b16 %v2525, %v2524
      %v2538 = vpack.c.b16 %v2527, %v2526
      %v2539 = vpack.c.b16 %v2529, %v2528
      %v2540 = vpack.c.b16 %v2531, %v2530
      %v2541 = vpack.c.b16 %v2533, %v2532
      %v2545 = vunpack.c.l.b16 %v2499
      %v2546 = vunpack.c.l.b16 %v2500
      %v2547 = vunpack.c.l.b16 %v2501
      %v2548 = vpack.c.b16 %v2546, %v2545
      %v2549 = vpack.c.b16 %v2547, %v2547
      %v2552 = vsel %vm2099, %v2534, 0
      %v2555 = vsel %vm2099, %v2535, 0
      %v2558 = vsel %vm2099, %v2536, 0
      %v2561 = vsel %vm2099, %v2537, 0
      %v2564 = vsel %vm2099, %v2538, 0
      %v2567 = vsel %vm2099, %v2539, 0
      %v2570 = vsel %vm2099, %v2540, 0
      %v2573 = vsel %vm2099, %v2541, 0
      %v2576 = vsel %vm2124, %v2549, 0
      %2578 = vmatprep.subr.bf16.mxu0 0
      %2579 = vmatpush1.bf16.msra.mxu0 0
      %2580 = vmatprep.subr.bf16.mxu0 0
      %2581 = vmatpush1.bf16.msra.mxu0 0
      %2582 = vmatprep.subr.bf16.mxu0 0
      %2583 = vmatpush1.bf16.msra.mxu0 0
      %2584 = vmatprep.subr.bf16.mxu0 0
      %2585 = vmatpush1.bf16.msra.mxu0 0
      %2586 = vmatprep.subr.bf16.mxu0 0
      %2587 = vmatpush1.bf16.msra.mxu0 0
      %2588 = vmatprep.subr.bf16.mxu0 0
      %2589 = vmatpush1.bf16.msra.mxu0 0
      %2590 = vmatprep.subr.bf16.mxu0 0
      %2591 = vmatpush1.bf16.msra.mxu0 %v2576
      %2592 = vmatprep.subr.bf16.mxu0 0
      %2593 = vmatpush1.bf16.msra.mxu0 %v2548
      %2594 = vmatprep.subr.bf16.mxu0 0
      %2595 = vmatpush2.bf16.msra.mxu0 0
      %2596 = vmatprep.subr.bf16.mxu0 0
      %2597 = vmatpush2.bf16.msra.mxu0 0
      %2598 = vmatprep.subr.bf16.mxu0 0
      %2599 = vmatpush2.bf16.msra.mxu0 0
      %2600 = vmatprep.subr.bf16.mxu0 0
      %2601 = vmatpush2.bf16.msra.mxu0 0
      %2602 = vmatprep.subr.bf16.mxu0 0
      %2603 = vmatpush2.bf16.msra.mxu0 0
      %2604 = vmatprep.subr.bf16.mxu0 0
      %2605 = vmatpush2.bf16.msra.mxu0 0
      %2606 = vmatprep.subr.bf16.mxu0 0
      %2607 = vmatpush2.bf16.msra.mxu0 0
      %2608 = vmatprep.subr.bf16.mxu0 0
      %2609 = vmatpush2.bf16.msra.mxu0 0
      %2610 = vmatprep.mubr.bf16.mxu0 0
      %2611 = vmatmul.mubr.bf16.gmra.mxu0 %v2552
      %v2612 = vpop.f32.mrf.mxu0
      %v2613 = vadd.f32 0.0, %v2612
      %v2614 = vpop.f32.mrf.mxu0
      %v2615 = vpop.f32.mrf.mxu0
      %v2616 = vadd.f32 0.0, %v2615
      %v2617 = vpop.f32.mrf.mxu0
      %2618 = vmatprep.mubr.bf16.mxu0 0
      %2619 = vmatmul.mubr.bf16.gmra.mxu0 %v2555
      %v2620 = vpop.f32.mrf.mxu0
      %v2621 = vadd.f32 0.0, %v2620
      %v2622 = vpop.f32.mrf.mxu0
      %v2623 = vpop.f32.mrf.mxu0
      %v2624 = vadd.f32 0.0, %v2623
      %v2625 = vpop.f32.mrf.mxu0
      %2626 = vmatprep.mubr.bf16.mxu0 0
      %2627 = vmatmul.mubr.bf16.gmra.mxu0 %v2558
      %v2628 = vpop.f32.mrf.mxu0
      %v2629 = vadd.f32 0.0, %v2628
      %v2630 = vpop.f32.mrf.mxu0
      %v2631 = vpop.f32.mrf.mxu0
      %v2632 = vadd.f32 0.0, %v2631
      %v2633 = vpop.f32.mrf.mxu0
      %2634 = vmatprep.mubr.bf16.mxu0 0
      %2635 = vmatmul.mubr.bf16.gmra.mxu0 %v2561
      %v2636 = vpop.f32.mrf.mxu0
      %v2637 = vadd.f32 0.0, %v2636
      %v2638 = vpop.f32.mrf.mxu0
      %v2639 = vpop.f32.mrf.mxu0
      %v2640 = vadd.f32 0.0, %v2639
      %v2641 = vpop.f32.mrf.mxu0
      %2642 = vmatprep.mubr.bf16.mxu0 0
      %2643 = vmatmul.mubr.bf16.gmra.mxu0 %v2564
      %v2644 = vpop.f32.mrf.mxu0
      %v2645 = vadd.f32 0.0, %v2644
      %v2646 = vpop.f32.mrf.mxu0
      %v2647 = vpop.f32.mrf.mxu0
      %v2648 = vadd.f32 0.0, %v2647
      %v2649 = vpop.f32.mrf.mxu0
      %2650 = vmatprep.mubr.bf16.mxu0 0
      %2651 = vmatmul.mubr.bf16.gmra.mxu0 %v2567
      %v2652 = vpop.f32.mrf.mxu0
      %v2653 = vadd.f32 0.0, %v2652
      %v2654 = vpop.f32.mrf.mxu0
      %v2655 = vpop.f32.mrf.mxu0
      %v2656 = vadd.f32 0.0, %v2655
      %v2657 = vpop.f32.mrf.mxu0
      %2658 = vmatprep.mubr.bf16.mxu0 0
      %2659 = vmatmul.mubr.bf16.gmra.mxu0 %v2570
      %v2660 = vpop.f32.mrf.mxu0
      %v2661 = vadd.f32 0.0, %v2660
      %v2662 = vpop.f32.mrf.mxu0
      %v2663 = vpop.f32.mrf.mxu0
      %v2664 = vadd.f32 0.0, %v2663
      %v2665 = vpop.f32.mrf.mxu0
      %2666 = vmatprep.mubr.bf16.mxu0 0
      %2667 = vmatmul.mubr.bf16.gmra.mxu0 %v2573
      %v2668 = vpop.f32.mrf.mxu0
      %v2669 = vadd.f32 0.0, %v2668
      %v2670 = vpop.f32.mrf.mxu0
      %v2671 = vpop.f32.mrf.mxu0
      %v2672 = vadd.f32 0.0, %v2671
      %v2673 = vpop.f32.mrf.mxu0
      %2674 = vdwg.mxu0
      %v2675 = vld [vmem:[#allocation3] sm:$0xff]
      %v2676 = vld [vmem:[#allocation3 + $0x8] sm:$0xff]
      %v2677 = vld [vmem:[#allocation3 + $0x10] sm:$0xff]
      %v2678 = vld [vmem:[#allocation3 + $0x18] sm:$0xff]
      %v2679 = vld [vmem:[#allocation3 + $0x20] sm:$0xff]
      %v2680 = vld [vmem:[#allocation3 + $0x28] sm:$0xff]
      %v2681 = vld [vmem:[#allocation3 + $0x30] sm:$0xff]
      %v2682 = vld [vmem:[#allocation3 + $0x38] sm:$0xff]
      %v2683 = vld [vmem:[#allocation3 + $0x40] sm:$0xff]
      %v2684 = vld [vmem:[#allocation3 + $0x48] sm:$0xff]
      %v2685 = vld [vmem:[#allocation3 + $0x50] sm:$0xff]
      %v2686 = vld [vmem:[#allocation3 + $0x58] sm:$0xff]
      %v2687 = vld [vmem:[#allocation3 + $0x60] sm:$0xff]
      %v2688 = vld [vmem:[#allocation3 + $0x68] sm:$0xff]
      %v2689 = vld [vmem:[#allocation3 + $0x70] sm:$0xff]
      %v2690 = vld [vmem:[#allocation3 + $0x78] sm:$0xff]
      %v2691 = vadd.f32 %v2675, %v2613
      %v2692 = vadd.f32 %v2676, %v2616
      %v2693 = vadd.f32 %v2677, %v2621
      %v2694 = vadd.f32 %v2678, %v2624
      %v2695 = vadd.f32 %v2679, %v2629
      %v2696 = vadd.f32 %v2680, %v2632
      %v2697 = vadd.f32 %v2681, %v2637
      %v2698 = vadd.f32 %v2682, %v2640
      %v2699 = vadd.f32 %v2683, %v2645
      %v2700 = vadd.f32 %v2684, %v2648
      %v2701 = vadd.f32 %v2685, %v2653
      %v2702 = vadd.f32 %v2686, %v2656
      %v2703 = vadd.f32 %v2687, %v2661
      %v2704 = vadd.f32 %v2688, %v2664
      %v2705 = vadd.f32 %v2689, %v2669
      %v2706 = vadd.f32 %v2690, %v2672
      %2707 = vst.msk [vmem:[#allocation3] sm:$0xff] %vm579, %v2691
      %2708 = vst.msk [vmem:[#allocation3 + $0x8] sm:$0xff] %vm579, %v2692
      %2709 = vst.msk [vmem:[#allocation3 + $0x10] sm:$0xff] %vm579, %v2693
      %2710 = vst.msk [vmem:[#allocation3 + $0x18] sm:$0xff] %vm579, %v2694
      %2711 = vst.msk [vmem:[#allocation3 + $0x20] sm:$0xff] %vm579, %v2695
      %2712 = vst.msk [vmem:[#allocation3 + $0x28] sm:$0xff] %vm579, %v2696
      %2713 = vst.msk [vmem:[#allocation3 + $0x30] sm:$0xff] %vm579, %v2697
      %2714 = vst.msk [vmem:[#allocation3 + $0x38] sm:$0xff] %vm579, %v2698
      %2715 = vst.msk [vmem:[#allocation3 + $0x40] sm:$0xff] %vm579, %v2699
      %2716 = vst.msk [vmem:[#allocation3 + $0x48] sm:$0xff] %vm579, %v2700
      %2717 = vst.msk [vmem:[#allocation3 + $0x50] sm:$0xff] %vm579, %v2701
      %2718 = vst.msk [vmem:[#allocation3 + $0x58] sm:$0xff] %vm579, %v2702
      %2719 = vst.msk [vmem:[#allocation3 + $0x60] sm:$0xff] %vm579, %v2703
      %2720 = vst.msk [vmem:[#allocation3 + $0x68] sm:$0xff] %vm579, %v2704
      %2721 = vst.msk [vmem:[#allocation3 + $0x70] sm:$0xff] %vm579, %v2705
      %2722 = vst.msk [vmem:[#allocation3 + $0x78] sm:$0xff] %vm579, %v2706
      %v2723 = vld [vmem:[#allocation3] sm:$0xff]
      %v2724 = vld [vmem:[#allocation3 + $0x8] sm:$0xff]
      %v2725 = vld [vmem:[#allocation3 + $0x10] sm:$0xff]
      %v2726 = vld [vmem:[#allocation3 + $0x18] sm:$0xff]
      %v2727 = vld [vmem:[#allocation3 + $0x20] sm:$0xff]
      %v2728 = vld [vmem:[#allocation3 + $0x28] sm:$0xff]
      %v2729 = vld [vmem:[#allocation3 + $0x30] sm:$0xff]
      %v2730 = vld [vmem:[#allocation3 + $0x38] sm:$0xff]
      %v2731 = vld [vmem:[#allocation3 + $0x40] sm:$0xff]
      %v2732 = vld [vmem:[#allocation3 + $0x48] sm:$0xff]
      %v2733 = vld [vmem:[#allocation3 + $0x50] sm:$0xff]
      %v2734 = vld [vmem:[#allocation3 + $0x58] sm:$0xff]
      %v2735 = vld [vmem:[#allocation3 + $0x60] sm:$0xff]
      %v2736 = vld [vmem:[#allocation3 + $0x68] sm:$0xff]
      %v2737 = vld [vmem:[#allocation3 + $0x70] sm:$0xff]
      %v2738 = vld [vmem:[#allocation3 + $0x78] sm:$0xff]
      %v2739 = vld [vmem:[%s7] sm:$0x1]
      %v2741 = vlaneseq
      %v2742 = vshrl.u32 %v2741, 7
      %v2743 = vsub.s32 0, %v2742
      %v2744 = vrot.slane %v2739, %v2743
      %v2746 = vmul.f32 %v2723, %v2744
      %v2747 = vmul.f32 %v2724, %v2744
      %v2748 = vmul.f32 %v2725, %v2744
      %v2749 = vmul.f32 %v2726, %v2744
      %v2750 = vmul.f32 %v2727, %v2744
      %v2751 = vmul.f32 %v2728, %v2744
      %v2752 = vmul.f32 %v2729, %v2744
      %v2753 = vmul.f32 %v2730, %v2744
      %v2754 = vmul.f32 %v2731, %v2744
      %v2755 = vmul.f32 %v2732, %v2744
      %v2756 = vmul.f32 %v2733, %v2744
      %v2757 = vmul.f32 %v2734, %v2744
      %v2758 = vmul.f32 %v2735, %v2744
      %v2759 = vmul.f32 %v2736, %v2744
      %v2760 = vmul.f32 %v2737, %v2744
      %v2761 = vmul.f32 %v2738, %v2744
      %v2762 = vld [vmem:[%s8] sm:$0x1]
      %v2764 = vlaneseq
      %v2765 = vshrl.u32 %v2764, 7
      %v2766 = vsub.s32 0, %v2765
      %v2767 = vrot.slane %v2762, %v2766
      %v2769 = vadd.f32 %v2746, %v2767
      %v2770 = vadd.f32 %v2747, %v2767
      %v2771 = vadd.f32 %v2748, %v2767
      %v2772 = vadd.f32 %v2749, %v2767
      %v2773 = vadd.f32 %v2750, %v2767
      %v2774 = vadd.f32 %v2751, %v2767
      %v2775 = vadd.f32 %v2752, %v2767
      %v2776 = vadd.f32 %v2753, %v2767
      %v2777 = vadd.f32 %v2754, %v2767
      %v2778 = vadd.f32 %v2755, %v2767
      %v2779 = vadd.f32 %v2756, %v2767
      %v2780 = vadd.f32 %v2757, %v2767
      %v2781 = vadd.f32 %v2758, %v2767
      %v2782 = vadd.f32 %v2759, %v2767
      %v2783 = vadd.f32 %v2760, %v2767
      %v2784 = vadd.f32 %v2761, %v2767
      %v2785 = vxor.u32 %v2769, 2147483648
      %v2786 = vxor.u32 %v2770, 2147483648
      %v2787 = vxor.u32 %v2771, 2147483648
      %v2788 = vxor.u32 %v2772, 2147483648
      %v2789 = vxor.u32 %v2773, 2147483648
      %v2790 = vxor.u32 %v2774, 2147483648
      %v2791 = vxor.u32 %v2775, 2147483648
      %v2792 = vxor.u32 %v2776, 2147483648
      %v2793 = vxor.u32 %v2777, 2147483648
      %v2794 = vxor.u32 %v2778, 2147483648
      %v2795 = vxor.u32 %v2779, 2147483648
      %v2796 = vxor.u32 %v2780, 2147483648
      %v2797 = vxor.u32 %v2781, 2147483648
      %v2798 = vxor.u32 %v2782, 2147483648
      %v2799 = vxor.u32 %v2783, 2147483648
      %v2800 = vxor.u32 %v2784, 2147483648
      %v2801 = vmul.f32 %v2785, 1.442695
      %v2802 = vpow.pop %v2801
      %v2803 = vmul.f32 %v2786, 1.442695
      %v2804 = vpow.pop %v2803
      %v2805 = vmul.f32 %v2787, 1.442695
      %v2806 = vpow.pop %v2805
      %v2807 = vmul.f32 %v2788, 1.442695
      %v2808 = vpow.pop %v2807
      %v2809 = vmul.f32 %v2789, 1.442695
      %v2810 = vpow.pop %v2809
      %v2811 = vmul.f32 %v2790, 1.442695
      %v2812 = vpow.pop %v2811
      %v2813 = vmul.f32 %v2791, 1.442695
      %v2814 = vpow.pop %v2813
      %v2815 = vmul.f32 %v2792, 1.442695
      %v2816 = vpow.pop %v2815
      %v2817 = vmul.f32 %v2793, 1.442695
      %v2818 = vpow.pop %v2817
      %v2819 = vmul.f32 %v2794, 1.442695
      %v2820 = vpow.pop %v2819
      %v2821 = vmul.f32 %v2795, 1.442695
      %v2822 = vpow.pop %v2821
      %v2823 = vmul.f32 %v2796, 1.442695
      %v2824 = vpow.pop %v2823
      %v2825 = vmul.f32 %v2797, 1.442695
      %v2826 = vpow.pop %v2825
      %v2827 = vmul.f32 %v2798, 1.442695
      %v2828 = vpow.pop %v2827
      %v2829 = vmul.f32 %v2799, 1.442695
      %v2830 = vpow.pop %v2829
      %v2831 = vmul.f32 %v2800, 1.442695
      %v2832 = vpow.pop %v2831
      %v2833 = vadd.f32 %v2802, 1.0
      %v2834 = vadd.f32 %v2804, 1.0
      %v2835 = vadd.f32 %v2806, 1.0
      %v2836 = vadd.f32 %v2808, 1.0
      %v2837 = vadd.f32 %v2810, 1.0
      %v2838 = vadd.f32 %v2812, 1.0
      %v2839 = vadd.f32 %v2814, 1.0
      %v2840 = vadd.f32 %v2816, 1.0
      %v2841 = vadd.f32 %v2818, 1.0
      %v2842 = vadd.f32 %v2820, 1.0
      %v2843 = vadd.f32 %v2822, 1.0
      %v2844 = vadd.f32 %v2824, 1.0
      %v2845 = vadd.f32 %v2826, 1.0
      %v2846 = vadd.f32 %v2828, 1.0
      %v2847 = vadd.f32 %v2830, 1.0
      %v2848 = vadd.f32 %v2832, 1.0
      %v2849 = vrcp.pop %v2833
      %v2850 = vmul.f32 1.0, %v2849
      %v2851 = vrcp.pop %v2834
      %v2852 = vmul.f32 1.0, %v2851
      %v2853 = vrcp.pop %v2835
      %v2854 = vmul.f32 1.0, %v2853
      %v2855 = vrcp.pop %v2836
      %v2856 = vmul.f32 1.0, %v2855
      %v2857 = vrcp.pop %v2837
      %v2858 = vmul.f32 1.0, %v2857
      %v2859 = vrcp.pop %v2838
      %v2860 = vmul.f32 1.0, %v2859
      %v2861 = vrcp.pop %v2839
      %v2862 = vmul.f32 1.0, %v2861
      %v2863 = vrcp.pop %v2840
      %v2864 = vmul.f32 1.0, %v2863
      %v2865 = vrcp.pop %v2841
      %v2866 = vmul.f32 1.0, %v2865
      %v2867 = vrcp.pop %v2842
      %v2868 = vmul.f32 1.0, %v2867
      %v2869 = vrcp.pop %v2843
      %v2870 = vmul.f32 1.0, %v2869
      %v2871 = vrcp.pop %v2844
      %v2872 = vmul.f32 1.0, %v2871
      %v2873 = vrcp.pop %v2845
      %v2874 = vmul.f32 1.0, %v2873
      %v2875 = vrcp.pop %v2846
      %v2876 = vmul.f32 1.0, %v2875
      %v2877 = vrcp.pop %v2847
      %v2878 = vmul.f32 1.0, %v2877
      %v2879 = vrcp.pop %v2848
      %v2880 = vmul.f32 1.0, %v2879
      %v2881 = vmul.f32 %v2769, %v2850
      %v2882 = vmul.f32 %v2770, %v2852
      %v2883 = vmul.f32 %v2771, %v2854
      %v2884 = vmul.f32 %v2772, %v2856
      %v2885 = vmul.f32 %v2773, %v2858
      %v2886 = vmul.f32 %v2774, %v2860
      %v2887 = vmul.f32 %v2775, %v2862
      %v2888 = vmul.f32 %v2776, %v2864
      %v2889 = vmul.f32 %v2777, %v2866
      %v2890 = vmul.f32 %v2778, %v2868
      %v2891 = vmul.f32 %v2779, %v2870
      %v2892 = vmul.f32 %v2780, %v2872
      %v2893 = vmul.f32 %v2781, %v2874
      %v2894 = vmul.f32 %v2782, %v2876
      %v2895 = vmul.f32 %v2783, %v2878
      %v2896 = vmul.f32 %v2784, %v2880
      %v2897 = vld [vmem:[%s452] sm:$0xf]
      %v2898 = vld [vmem:[%s452 + $0x4] sm:$0xf]
      %v2899 = vld [vmem:[%s452 + $0x8] sm:$0xf]
      %v2900 = vld [vmem:[%s452 + $0xc] sm:$0xf]
      %v2901 = vld [vmem:[%s452 + $0x10] sm:$0xf]
      %v2902 = vld [vmem:[%s452 + $0x14] sm:$0xf]
      %v2903 = vld [vmem:[%s452 + $0x18] sm:$0xf]
      %v2904 = vld [vmem:[%s452 + $0x1c] sm:$0xf]
      %v2905 = vld [vmem:[%s452 + $0x20] sm:$0xf]
      %v2906 = vld [vmem:[%s452 + $0x24] sm:$0xf]
      %v2907 = vld [vmem:[%s452 + $0x28] sm:$0xf]
      %v2908 = vld [vmem:[%s452 + $0x2c] sm:$0xf]
      %v2909 = vld [vmem:[%s452 + $0x30] sm:$0xf]
      %v2910 = vld [vmem:[%s452 + $0x34] sm:$0xf]
      %v2911 = vld [vmem:[%s452 + $0x38] sm:$0xf]
      %v2912 = vld [vmem:[%s452 + $0x3c] sm:$0xf]
      %v2913 = vunpack.c.l.bf16 %v2897
      %v2914 = vunpack.c.l.bf16 %v2898
      %v2915 = vunpack.c.l.bf16 %v2899
      %v2916 = vunpack.c.l.bf16 %v2900
      %v2917 = vunpack.c.l.bf16 %v2901
      %v2918 = vunpack.c.l.bf16 %v2902
      %v2919 = vunpack.c.l.bf16 %v2903
      %v2920 = vunpack.c.l.bf16 %v2904
      %v2921 = vunpack.c.l.bf16 %v2905
      %v2922 = vunpack.c.l.bf16 %v2906
      %v2923 = vunpack.c.l.bf16 %v2907
      %v2924 = vunpack.c.l.bf16 %v2908
      %v2925 = vunpack.c.l.bf16 %v2909
      %v2926 = vunpack.c.l.bf16 %v2910
      %v2927 = vunpack.c.l.bf16 %v2911
      %v2928 = vunpack.c.l.bf16 %v2912
      %v2929 = vadd.f32 %v2881, %v2913
      %v2930 = vadd.f32 %v2882, %v2914
      %v2931 = vadd.f32 %v2883, %v2915
      %v2932 = vadd.f32 %v2884, %v2916
      %v2933 = vadd.f32 %v2885, %v2917
      %v2934 = vadd.f32 %v2886, %v2918
      %v2935 = vadd.f32 %v2887, %v2919
      %v2936 = vadd.f32 %v2888, %v2920
      %v2937 = vadd.f32 %v2889, %v2921
      %v2938 = vadd.f32 %v2890, %v2922
      %v2939 = vadd.f32 %v2891, %v2923
      %v2940 = vadd.f32 %v2892, %v2924
      %v2941 = vadd.f32 %v2893, %v2925
      %v2942 = vadd.f32 %v2894, %v2926
      %v2943 = vadd.f32 %v2895, %v2927
      %v2944 = vadd.f32 %v2896, %v2928
      %2945 = vst.msk [vmem:[%s498] sm:$0xff] %vm579, %v2929
      %2946 = vst.msk [vmem:[%s498 + $0x8] sm:$0xff] %vm579, %v2930
      %2947 = vst.msk [vmem:[%s498 + $0x10] sm:$0xff] %vm579, %v2931
      %2948 = vst.msk [vmem:[%s498 + $0x18] sm:$0xff] %vm579, %v2932
      %2949 = vst.msk [vmem:[%s498 + $0x20] sm:$0xff] %vm579, %v2933
      %2950 = vst.msk [vmem:[%s498 + $0x28] sm:$0xff] %vm579, %v2934
      %2951 = vst.msk [vmem:[%s498 + $0x30] sm:$0xff] %vm579, %v2935
      %2952 = vst.msk [vmem:[%s498 + $0x38] sm:$0xff] %vm579, %v2936
      %2953 = vst.msk [vmem:[%s498 + $0x40] sm:$0xff] %vm579, %v2937
      %2954 = vst.msk [vmem:[%s498 + $0x48] sm:$0xff] %vm579, %v2938
      %2955 = vst.msk [vmem:[%s498 + $0x50] sm:$0xff] %vm579, %v2939
      %2956 = vst.msk [vmem:[%s498 + $0x58] sm:$0xff] %vm579, %v2940
      %2957 = vst.msk [vmem:[%s498 + $0x60] sm:$0xff] %vm579, %v2941
      %2958 = vst.msk [vmem:[%s498 + $0x68] sm:$0xff] %vm579, %v2942
      %2959 = vst.msk [vmem:[%s498 + $0x70] sm:$0xff] %vm579, %v2943
      %2960 = vst.msk [vmem:[%s498 + $0x78] sm:$0xff] %vm579, %v2944
      %s2961 = smul.u32 16, %s25
      %p2962 = scmp.lt.s32.totalorder %s24, 1
      %s2963 = scalar_select %p2962, %s24, 1
      %p2964 = scmp.lt.s32.totalorder %s2961, 31
      %s2965 = scalar_select %p2964, %s2961, 31
      %s2966 = smul.addr %s2963, 32
      %s2967 = sadd.s32 %s2965, %s2966
      %s2968 = smul.addr %s2967, 8
      %s2969 = scalar_lea.vmem %s9, %s2968
      // Predicated region
      $region57: #{bottleneck_forward.1} parent=55 // pred_check
        %p2970 = pneg %p278
      $region58: #{bottleneck_forward.1} parent=55 // pred_check_branch
        %2972 = sbr.rel (%p2970) target = $region60
      $region59: #{bottleneck_forward.1} parent=55 // pred_region
        %s2973 = smul.u32 16, %s25
      $region60: #{bottleneck_forward.1} parent=55 // pred_fallthru
        _
    $region56: #{bottleneck_forward.1} parent=5 // pred_fallthru
      _
    %p2974 = scmp.le.s32.totalorder 2, %s15
    // Predicated region
    $region61: #{bottleneck_forward.1} parent=5 // pred_check
      %p2975 = pneg %p2974
    $region62: #{bottleneck_forward.1} parent=5 // pred_check_branch
      %2977 = sbr.rel (%p2975) target = $region64
    $region63: #{bottleneck_forward.1} parent=5 // pred_region
      %s2978 = ssub.s32 %s15, 2
      // Predicated region
      $region65: #{bottleneck_forward.1} parent=63 // pred_check
        %p2979 = pneg %p284
      $region66: #{bottleneck_forward.1} parent=63 // pred_check_branch
        %2981 = sbr.rel (%p2979) target = $region68
      $region67: #{bottleneck_forward.1} parent=63 // pred_region
        %s2982 = smul.u32 16, %s27
        %p2983 = scmp.lt.s32.totalorder %s26, 1
        %s2984 = scalar_select %p2983, %s26, 1
        %p2985 = scmp.lt.s32.totalorder %s2982, 31
        %s2986 = scalar_select %p2985, %s2982, 31
        %s2987 = smul.addr %s2984, 32
        %s2988 = sadd.s32 %s2986, %s2987
        %s2989 = smul.addr %s2988, 8
        %s2990 = scalar_lea.vmem %s9, %s2989
      $region68: #{bottleneck_forward.1} parent=63 // pred_fallthru
        _
    $region64: #{bottleneck_forward.1} parent=5 // pred_fallthru
      _
  $region6: #{bottleneck_forward.1} parent=0 // loop_footer
    %s19 = sadd.s32 1, %s15
  $region7: #{bottleneck_forward.1} parent=0 // loop_footer_branch
    %14 = sbr.rel target = $region3
  $region8: #{bottleneck_forward.1} parent=0 // loop_exit
    _

</llo_original>
